<compile_context>
chip_gen: v5e
topology: v5e:2x2
jax: 0.10.0
libtpu: 0.0.40
codegen_flags: <defaults>
</compile_context>

<pallas_src>
import numpy as np
import jax
import jax.numpy as jnp
from jax import lax
from jax.experimental import pallas as pl
from jax.experimental.pallas import tpu as pltpu

LANE = 128
ROW_ALIGN = 16          # bf16 packs 2 rows per sublane -> align row counts to 16


def _round_up(x, m):
    return (x + m - 1) // m * m


# --------------------------------------------------------------------------
# Kernel 1: fused conv (patch matmul) + 2x2 max-pool + bias + tanh.
#   x_ref : (Bt, 4, Pp, K)  bf16   4 = pooling-window quadrants (dh, dw)
#   w_ref : (K, Cp)         bf16   Cp = Cout padded to 128
#   b_ref : (1, Cp)         f32
#   o_ref : (Bt, Pp, Cp)    bf16
# --------------------------------------------------------------------------
def _conv_tanh_pool_kernel(x_ref, w_ref, b_ref, o_ref):
    bt, nq, pp, kk = x_ref.shape
    cp = w_ref.shape[1]
    # One long MXU stream: fold (batch, quadrant, pooled-pos) into M.
    x = x_ref[...].reshape(bt * nq * pp, kk)
    y = jnp.dot(x, w_ref[...], preferred_element_type=jnp.float32)
    y = y.reshape(bt, nq, pp, cp)
    # Max-pool on raw matmul outputs, then bias + tanh once (tanh monotone,
    # bias identical across the 4 window members -> result unchanged).
    pooled = jnp.maximum(jnp.maximum(y[:, 0], y[:, 1]),
                         jnp.maximum(y[:, 2], y[:, 3]))
    o_ref[...] = jnp.tanh(pooled + b_ref[...]).astype(o_ref.dtype)


def conv_tanh_pool(patches, w, b, *, block_n=8):
    """patches: (N, 4, Pp, K) bf16, w: (K, Cp) bf16, b: (1, Cp) f32
    -> (N, Pp, Cp) bf16."""
    n, nq, pp, kk = patches.shape
    cp = w.shape[1]
    bn = min(block_n, n)
    n_pad = _round_up(n, bn)
    if n_pad != n:
        patches = jnp.pad(patches, ((0, n_pad - n), (0, 0), (0, 0), (0, 0)))
    out = pl.pallas_call(
        _conv_tanh_pool_kernel,
        out_shape=jax.ShapeDtypeStruct((n_pad, pp, cp), jnp.bfloat16),
        grid_spec=pltpu.PrefetchScalarGridSpec(
            num_scalar_prefetch=0,
            grid=(n_pad // bn,),
            in_specs=[
                pl.BlockSpec((bn, nq, pp, kk), lambda i: (i, 0, 0, 0)),
                pl.BlockSpec((kk, cp), lambda i: (0, 0)),
                pl.BlockSpec((1, cp), lambda i: (0, 0)),
            ],
            out_specs=pl.BlockSpec((bn, pp, cp), lambda i: (i, 0, 0)),
        ),
        compiler_params=pltpu.CompilerParams(
            dimension_semantics=("parallel",)),
    )(patches, w, b)
    return out[:n]


# --------------------------------------------------------------------------
# Kernel 2: fused classifier  fc1 -> tanh -> fc2 -> tanh -> fc3.
# bf16 matmul operands, f32 accumulation; weights VMEM-resident.
# --------------------------------------------------------------------------
def _mlp_kernel(x_ref, w1_ref, b1_ref, w2_ref, b2_ref, w3_ref, b3_ref, o_ref):
    h = jnp.tanh(jnp.dot(x_ref[...], w1_ref[...],
                         preferred_element_type=jnp.float32) + b1_ref[...])
    h = jnp.tanh(jnp.dot(h.astype(jnp.bfloat16), w2_ref[...],
                         preferred_element_type=jnp.float32) + b2_ref[...])
    o_ref[...] = (jnp.dot(h.astype(jnp.bfloat16), w3_ref[...],
                          preferred_element_type=jnp.float32) + b3_ref[...])


def mlp_fused(x, w1, b1, w2, b2, w3, b3, *, row_tile=512):
    m, kdim = x.shape
    n3 = w3.shape[1]
    bm = min(row_tile, _round_up(m, 8))
    m_pad = _round_up(m, bm)
    if m_pad != m:
        x = jnp.pad(x, ((0, m_pad - m), (0, 0)))

    def full_spec(arr):
        nd = arr.ndim
        return pl.BlockSpec(arr.shape, lambda i, _nd=nd: (0,) * _nd)

    out = pl.pallas_call(
        _mlp_kernel,
        out_shape=jax.ShapeDtypeStruct((m_pad, n3), jnp.float32),
        grid_spec=pltpu.PrefetchScalarGridSpec(
            num_scalar_prefetch=0,
            grid=(m_pad // bm,),
            in_specs=[
                pl.BlockSpec((bm, kdim), lambda i: (i, 0)),
                full_spec(w1), full_spec(b1),
                full_spec(w2), full_spec(b2),
                full_spec(w3), full_spec(b3),
            ],
            out_specs=pl.BlockSpec((bm, n3), lambda i: (i, 0)),
        ),
        compiler_params=pltpu.CompilerParams(
            dimension_semantics=("parallel",)),
    )(x, w1, b1, w2, b2, w3, b3)
    return out[:m]


# ------------------------------- Glue ---------------------------------------

def _pool_patches(x, k, pp_pad, dtype):
    """x: NHWC (N, H, W, C), valid conv k, even Ho/Wo.
    Returns (N, 4, pp_pad, C*k*k) in `dtype`; feature order (kh, kw, c);
    axis 1 = the four (dh, dw) members of each 2x2 pooling window."""
    n, h, w, c = x.shape
    ho, wo = h - k + 1, w - k + 1
    hp, wp = ho // 2, wo // 2
    slabs = []
    for i in range(k):
        for j in range(k):
            slabs.append(x[:, i:i + ho, j:j + wo, :])            # (N, Ho, Wo, C)
    pat = jnp.stack(slabs, axis=3)                                # (N, Ho, Wo, k*k, C)
    pat = pat.reshape(n, ho, wo, k * k * c)                       # features (kh, kw, c)
    quads = []
    for dh in (0, 1):
        for dw in (0, 1):
            quads.append(pat[:, dh::2, dw::2, :].reshape(n, hp * wp, k * k * c))
    out = jnp.stack(quads, axis=1)                                # (N, 4, Hp*Wp, K)
    out = jnp.pad(out, ((0, 0), (0, 0), (0, pp_pad - hp * wp), (0, 0)))
    return out.astype(dtype)


def _conv_weight(w, b, cp):
    """PyTorch conv weight (out_c, in_c, k, k) -> bf16 (K, Cp) with (kh, kw, c)
    rows (K unpadded) and f32 bias (1, Cp)."""
    out_c, in_c, k, _ = w.shape
    w2 = jnp.transpose(w, (2, 3, 1, 0)).reshape(k * k * in_c, out_c)
    w2 = jnp.pad(w2, ((0, 0), (0, cp - out_c))).astype(jnp.bfloat16)
    b2 = jnp.pad(b, (0, cp - out_c)).reshape(1, cp)
    return w2, b2


def init_params(key, num_classes=10, grayscale=False):
    in_c = 1 if grayscale else 3
    keys = jax.random.split(key, 10)

    def u(k, shape, fan_in):
        bound = 1.0 / jnp.sqrt(float(fan_in))
        return jax.random.uniform(k, shape, jnp.float32, -bound, bound)

    p = {}
    p["conv1_w"] = u(keys[0], (6 * in_c, in_c, 5, 5), in_c * 25)
    p["conv1_b"] = u(keys[1], (6 * in_c,), in_c * 25)
    p["conv2_w"] = u(keys[2], (16 * in_c, 6 * in_c, 5, 5), 6 * in_c * 25)
    p["conv2_b"] = u(keys[3], (16 * in_c,), 6 * in_c * 25)
    p["fc1_w"] = u(keys[4], (120 * in_c, 16 * 5 * 5 * in_c), 16 * 5 * 5 * in_c)
    p["fc1_b"] = u(keys[5], (120 * in_c,), 16 * 5 * 5 * in_c)
    p["fc2_w"] = u(keys[6], (84 * in_c, 120 * in_c), 120 * in_c)
    p["fc2_b"] = u(keys[7], (84 * in_c,), 120 * in_c)
    p["fc3_w"] = u(keys[8], (num_classes, 84 * in_c), 84 * in_c)
    p["fc3_b"] = u(keys[9], (num_classes,), 84 * in_c)
    return p


def lenet5_forward(params, x, *, conv_block=8, mlp_row_tile=512):
    """x: NCHW (PyTorch layout). Returns (N, num_classes) f32 logits."""
    n, in_c = x.shape[0], x.shape[1]
    k = 5
    x = jnp.transpose(x, (0, 2, 3, 1))                            # NHWC f32

    # ---- conv1 + pool + tanh -------------------------------------------------
    c1_out = params["conv1_w"].shape[0]                           # 6*in_c
    cp = LANE
    ho1 = x.shape[1] - k + 1                                      # 28
    hp1 = ho1 // 2                                                # 14
    pp1 = hp1 * hp1                                               # 196
    pp1_pad = _round_up(pp1, ROW_ALIGN)                           # 208
    pat = _pool_patches(x, k, pp1_pad, jnp.bfloat16)              # (N, 4, 208, 75)
    w1, b1 = _conv_weight(params["conv1_w"], params["conv1_b"], cp)
    y = conv_tanh_pool(pat, w1, b1, block_n=conv_block)           # (N, 208, 128) bf16
    h1 = y[:, :pp1, :c1_out].reshape(n, hp1, hp1, c1_out)         # (N, 14, 14, 18) bf16

    # ---- conv2 + pool + tanh -------------------------------------------------
    c2_out = params["conv2_w"].shape[0]                           # 16*in_c
    ho2 = hp1 - k + 1                                             # 10
    hp2 = ho2 // 2                                                # 5
    pp2 = hp2 * hp2                                               # 25
    pp2_pad = _round_up(pp2, ROW_ALIGN)                           # 32
    pat = _pool_patches(h1, k, pp2_pad, jnp.bfloat16)             # (N, 4, 32, 450)
    w2, b2 = _conv_weight(params["conv2_w"], params["conv2_b"], cp)
    y = conv_tanh_pool(pat, w2, b2, block_n=conv_block)           # (N, 32, 128) bf16
    h2 = y[:, :pp2, :c2_out]                                      # (N, 25, 48) rows in (H, W) order

    # ---- classifier (single fused kernel) --------------------------------------
    fc_in = params["fc1_w"].shape[1]                              # 16*5*5*in_c = 1200
    fc1_out = params["fc1_w"].shape[0]
    fc2_out = params["fc2_w"].shape[0]
    fc3_out = params["fc3_w"].shape[0]

    # permute fc1 columns from PyTorch (C, H, W) flatten order to our (H, W, C)
    w_fc1 = params["fc1_w"].reshape(fc1_out, c2_out, hp2, hp2)
    w_fc1 = jnp.transpose(w_fc1, (0, 2, 3, 1)).reshape(fc1_out, fc_in).T  # (1200, 360)

    n1p = _round_up(fc1_out, LANE)                                # 384
    n2p = _round_up(fc2_out, LANE)                                # 256
    n3p = _round_up(fc3_out, LANE)                                # 128

    w1m = jnp.pad(w_fc1, ((0, 0), (0, n1p - fc1_out))).astype(jnp.bfloat16)
    b1m = jnp.pad(params["fc1_b"], (0, n1p - fc1_out)).reshape(1, n1p)
    w2m = jnp.pad(params["fc2_w"].T,
                  ((0, n1p - fc1_out), (0, n2p - fc2_out))).astype(jnp.bfloat16)
    b2m = jnp.pad(params["fc2_b"], (0, n2p - fc2_out)).reshape(1, n2p)
    w3m = jnp.pad(params["fc3_w"].T,
                  ((0, n2p - fc2_out), (0, n3p - fc3_out))).astype(jnp.bfloat16)
    b3m = jnp.pad(params["fc3_b"], (0, n3p - fc3_out)).reshape(1, n3p)

    flat = h2.reshape(n, hp2 * hp2 * c2_out)                      # (N, 1200) bf16, (H,W,C) order
    logits = mlp_fused(flat, w1m, b1m, w2m, b2m, w3m, b3m,
                       row_tile=mlp_row_tile)                     # (N, 128) f32
    return logits[:, :fc3_out]


# ------------------------- pure-JAX reference (for checking) -----------------

def _reference_forward(params, x):
    dn = ("NCHW", "OIHW", "NCHW")
    y = lax.conv_general_dilated(x, params["conv1_w"], (1, 1), "VALID",
                                 dimension_numbers=dn)
    y = jnp.tanh(y + params["conv1_b"][None, :, None, None])
    y = lax.reduce_window(y, -jnp.inf, lax.max, (1, 1, 2, 2), (1, 1, 2, 2), "VALID")
    y = lax.conv_general_dilated(y, params["conv2_w"], (1, 1), "VALID",
                                 dimension_numbers=dn)
    y = jnp.tanh(y + params["conv2_b"][None, :, None, None])
    y = lax.reduce_window(y, -jnp.inf, lax.max, (1, 1, 2, 2), (1, 1, 2, 2), "VALID")
    y = y.reshape(y.shape[0], -1)
    y = jnp.tanh(y @ params["fc1_w"].T + params["fc1_b"])
    y = jnp.tanh(y @ params["fc2_w"].T + params["fc2_b"])
    return y @ params["fc3_w"].T + params["fc3_b"]


if __name__ == "__main__":
    key = jax.random.PRNGKey(0)
    pkey, xkey = jax.random.split(key)
    params = init_params(pkey, num_classes=10, grayscale=False)
    # The classifier's 16*5*5*in_c input dim forces 32x32 spatial input (CIFAR-sized).
    x = jax.random.normal(xkey, (2, 3, 32, 32), jnp.float32)

    logits = jax.jit(lenet5_forward)(params, x)
    jax.block_until_ready(logits)
    assert logits.shape == (2, 10)

    ref = jax.jit(_reference_forward)(params, x)
    jax.block_until_ready(ref)
    # Tolerance accounts for bf16 MXU operands (f32 accumulation).
    np.testing.assert_allclose(np.asarray(logits), np.asarray(ref),
                               rtol=2e-2, atol=5e-2)
    print("KERNEL_OK")
</pallas_src>

<mosaic_0001>
module attributes {stable_mosaic.version = 11 : i64} {
  func.func @_conv_tanh_pool_kernel(%arg0: i32, %arg1: memref<2x4x208x75xbf16, #tpu.memory_space<vmem>>, %arg2: memref<75x128xbf16, #tpu.memory_space<vmem>>, %arg3: memref<1x128xf32, #tpu.memory_space<vmem>>, %arg4: memref<2x208x128xbf16, #tpu.memory_space<vmem>>) attributes {dimension_semantics = [#tpu.dimension_semantics<parallel>], iteration_bounds = array<i64: 1>, scalar_prefetch = 0 : i64, scratch_operands = 0 : i64, tpu.core_type = #tpu.core_type<tc>, window_params = [{transform_indices = @transform_0, window_bounds = array<i64: 2, 4, 208, 75>}, {pipeline_mode = #tpu.pipeline_mode<synchronous>, transform_indices = @transform_1, window_bounds = array<i64: 75, 128>}, {pipeline_mode = #tpu.pipeline_mode<synchronous>, transform_indices = @transform_2, window_bounds = array<i64: 1, 128>}, {transform_indices = @transform_3, window_bounds = array<i64: 2, 208, 128>}]} {
    %c0 = arith.constant 0 : index
    %c0_0 = arith.constant 0 : index
    %c0_1 = arith.constant 0 : index
    %c0_2 = arith.constant 0 : index
    %0 = vector.load %arg1[%c0, %c0_0, %c0_1, %c0_2] : memref<2x4x208x75xbf16, #tpu.memory_space<vmem>>, vector<2x4x208x75xbf16>
    %1 = vector.shape_cast %0 : vector<2x4x208x75xbf16> to vector<1664x75xbf16>
    %c0_3 = arith.constant 0 : index
    %c0_4 = arith.constant 0 : index
    %2 = vector.load %arg2[%c0_3, %c0_4] : memref<75x128xbf16, #tpu.memory_space<vmem>>, vector<75x128xbf16>
    %cst = arith.constant dense<0.000000e+00> : vector<1664x128xf32>
    %3 = tpu.matmul %1, %2, %cst {dimension_numbers = #tpu.dot_dimension_numbers<[1], [0], [0], [1], [0, 0, 1, 1], [], []>} : vector<1664x75xbf16>, vector<75x128xbf16>, vector<1664x128xf32> -> vector<1664x128xf32>
    %4 = vector.shape_cast %3 : vector<1664x128xf32> to vector<2x4x208x128xf32>
    %5 = vector.extract_strided_slice %4 {offsets = [0, 0, 0, 0], sizes = [2, 1, 208, 128], strides = [1, 1, 1, 1]} : vector<2x4x208x128xf32> to vector<2x1x208x128xf32>
    %6 = vector.shape_cast %5 : vector<2x1x208x128xf32> to vector<2x208x128xf32>
    %7 = vector.extract_strided_slice %4 {offsets = [0, 1, 0, 0], sizes = [2, 1, 208, 128], strides = [1, 1, 1, 1]} : vector<2x4x208x128xf32> to vector<2x1x208x128xf32>
    %8 = vector.shape_cast %7 : vector<2x1x208x128xf32> to vector<2x208x128xf32>
    %9 = arith.maximumf %6, %8 : vector<2x208x128xf32>
    %10 = vector.extract_strided_slice %4 {offsets = [0, 2, 0, 0], sizes = [2, 1, 208, 128], strides = [1, 1, 1, 1]} : vector<2x4x208x128xf32> to vector<2x1x208x128xf32>
    %11 = vector.shape_cast %10 : vector<2x1x208x128xf32> to vector<2x208x128xf32>
    %12 = vector.extract_strided_slice %4 {offsets = [0, 3, 0, 0], sizes = [2, 1, 208, 128], strides = [1, 1, 1, 1]} : vector<2x4x208x128xf32> to vector<2x1x208x128xf32>
    %13 = vector.shape_cast %12 : vector<2x1x208x128xf32> to vector<2x208x128xf32>
    %14 = arith.maximumf %11, %13 : vector<2x208x128xf32>
    %15 = arith.maximumf %9, %14 : vector<2x208x128xf32>
    %c0_5 = arith.constant 0 : index
    %c0_6 = arith.constant 0 : index
    %16 = vector.load %arg3[%c0_5, %c0_6] : memref<1x128xf32, #tpu.memory_space<vmem>>, vector<1x128xf32>
    %17 = vector.shape_cast %16 : vector<1x128xf32> to vector<1x1x128xf32>
    %18 = vector.broadcast %17 : vector<1x1x128xf32> to vector<2x208x128xf32>
    %19 = arith.addf %15, %18 : vector<2x208x128xf32>
    %20 = math.tanh %19 : vector<2x208x128xf32>
    %21 = arith.truncf %20 : vector<2x208x128xf32> to vector<2x208x128xbf16>
    %c0_7 = arith.constant 0 : index
    %c0_8 = arith.constant 0 : index
    %c0_9 = arith.constant 0 : index
    %22 = vector.load %arg4[%c0_7, %c0_8, %c0_9] : memref<2x208x128xbf16, #tpu.memory_space<vmem>>, vector<2x208x128xbf16>
    tpu.vector_store %arg4[%c0_7, %c0_8, %c0_9], %21 {strides = array<i32>} : memref<2x208x128xbf16, #tpu.memory_space<vmem>>, vector<2x208x128xbf16>,
    return
  }
  func.func @transform_0(%arg0: i32) -> (i32, i32, i32, i32) {
    %c0_i32 = arith.constant 0 : i32
    %c0_i32_0 = arith.constant 0 : i32
    %c0_i32_1 = arith.constant 0 : i32
    %c0_i32_2 = arith.constant 0 : i32
    return %arg0, %c0_i32, %c0_i32_0, %c0_i32_1 : i32, i32, i32, i32
  }
  func.func @transform_1(%arg0: i32) -> (i32, i32) {
    %c0_i32 = arith.constant 0 : i32
    %c0_i32_0 = arith.constant 0 : i32
    %c0_i32_1 = arith.constant 0 : i32
    return %c0_i32, %c0_i32_0 : i32, i32
  }
  func.func @transform_2(%arg0: i32) -> (i32, i32) {
    %c0_i32 = arith.constant 0 : i32
    %c0_i32_0 = arith.constant 0 : i32
    %c0_i32_1 = arith.constant 0 : i32
    return %c0_i32, %c0_i32_0 : i32, i32
  }
  func.func @transform_3(%arg0: i32) -> (i32, i32, i32) {
    %c0_i32 = arith.constant 0 : i32
    %c0_i32_0 = arith.constant 0 : i32
    %c0_i32_1 = arith.constant 0 : i32
    return %arg0, %c0_i32, %c0_i32_0 : i32, i32, i32
  }
}

module attributes {stable_mosaic.version = 11 : i64} {
  func.func @_conv_tanh_pool_kernel(%arg0: i32, %arg1: memref<2x4x32x450xbf16, #tpu.memory_space<vmem>>, %arg2: memref<450x128xbf16, #tpu.memory_space<vmem>>, %arg3: memref<1x128xf32, #tpu.memory_space<vmem>>, %arg4: memref<2x32x128xbf16, #tpu.memory_space<vmem>>) attributes {dimension_semantics = [#tpu.dimension_semantics<parallel>], iteration_bounds = array<i64: 1>, scalar_prefetch = 0 : i64, scratch_operands = 0 : i64, tpu.core_type = #tpu.core_type<tc>, window_params = [{transform_indices = @transform_0, window_bounds = array<i64: 2, 4, 32, 450>}, {pipeline_mode = #tpu.pipeline_mode<synchronous>, transform_indices = @transform_1, window_bounds = array<i64: 450, 128>}, {pipeline_mode = #tpu.pipeline_mode<synchronous>, transform_indices = @transform_2, window_bounds = array<i64: 1, 128>}, {transform_indices = @transform_3, window_bounds = array<i64: 2, 32, 128>}]} {
    %c0 = arith.constant 0 : index
    %c0_0 = arith.constant 0 : index
    %c0_1 = arith.constant 0 : index
    %c0_2 = arith.constant 0 : index
    %0 = vector.load %arg1[%c0, %c0_0, %c0_1, %c0_2] : memref<2x4x32x450xbf16, #tpu.memory_space<vmem>>, vector<2x4x32x450xbf16>
    %1 = vector.shape_cast %0 : vector<2x4x32x450xbf16> to vector<256x450xbf16>
    %c0_3 = arith.constant 0 : index
    %c0_4 = arith.constant 0 : index
    %2 = vector.load %arg2[%c0_3, %c0_4] : memref<450x128xbf16, #tpu.memory_space<vmem>>, vector<450x128xbf16>
    %cst = arith.constant dense<0.000000e+00> : vector<256x128xf32>
    %3 = tpu.matmul %1, %2, %cst {dimension_numbers = #tpu.dot_dimension_numbers<[1], [0], [0], [1], [0, 0, 1, 1], [], []>} : vector<256x450xbf16>, vector<450x128xbf16>, vector<256x128xf32> -> vector<256x128xf32>
    %4 = vector.shape_cast %3 : vector<256x128xf32> to vector<2x4x32x128xf32>
    %5 = vector.extract_strided_slice %4 {offsets = [0, 0, 0, 0], sizes = [2, 1, 32, 128], strides = [1, 1, 1, 1]} : vector<2x4x32x128xf32> to vector<2x1x32x128xf32>
    %6 = vector.shape_cast %5 : vector<2x1x32x128xf32> to vector<2x32x128xf32>
    %7 = vector.extract_strided_slice %4 {offsets = [0, 1, 0, 0], sizes = [2, 1, 32, 128], strides = [1, 1, 1, 1]} : vector<2x4x32x128xf32> to vector<2x1x32x128xf32>
    %8 = vector.shape_cast %7 : vector<2x1x32x128xf32> to vector<2x32x128xf32>
    %9 = arith.maximumf %6, %8 : vector<2x32x128xf32>
    %10 = vector.extract_strided_slice %4 {offsets = [0, 2, 0, 0], sizes = [2, 1, 32, 128], strides = [1, 1, 1, 1]} : vector<2x4x32x128xf32> to vector<2x1x32x128xf32>
    %11 = vector.shape_cast %10 : vector<2x1x32x128xf32> to vector<2x32x128xf32>
    %12 = vector.extract_strided_slice %4 {offsets = [0, 3, 0, 0], sizes = [2, 1, 32, 128], strides = [1, 1, 1, 1]} : vector<2x4x32x128xf32> to vector<2x1x32x128xf32>
    %13 = vector.shape_cast %12 : vector<2x1x32x128xf32> to vector<2x32x128xf32>
    %14 = arith.maximumf %11, %13 : vector<2x32x128xf32>
    %15 = arith.maximumf %9, %14 : vector<2x32x128xf32>
    %c0_5 = arith.constant 0 : index
    %c0_6 = arith.constant 0 : index
    %16 = vector.load %arg3[%c0_5, %c0_6] : memref<1x128xf32, #tpu.memory_space<vmem>>, vector<1x128xf32>
    %17 = vector.shape_cast %16 : vector<1x128xf32> to vector<1x1x128xf32>
    %18 = vector.broadcast %17 : vector<1x1x128xf32> to vector<2x32x128xf32>
    %19 = arith.addf %15, %18 : vector<2x32x128xf32>
    %20 = math.tanh %19 : vector<2x32x128xf32>
    %21 = arith.truncf %20 : vector<2x32x128xf32> to vector<2x32x128xbf16>
    %c0_7 = arith.constant 0 : index
    %c0_8 = arith.constant 0 : index
    %c0_9 = arith.constant 0 : index
    %22 = vector.load %arg4[%c0_7, %c0_8, %c0_9] : memref<2x32x128xbf16, #tpu.memory_space<vmem>>, vector<2x32x128xbf16>
    tpu.vector_store %arg4[%c0_7, %c0_8, %c0_9], %21 {strides = array<i32>} : memref<2x32x128xbf16, #tpu.memory_space<vmem>>, vector<2x32x128xbf16>,
    return
  }
  func.func @transform_0(%arg0: i32) -> (i32, i32, i32, i32) {
    %c0_i32 = arith.constant 0 : i32
    %c0_i32_0 = arith.constant 0 : i32
    %c0_i32_1 = arith.constant 0 : i32
    %c0_i32_2 = arith.constant 0 : i32
    return %arg0, %c0_i32, %c0_i32_0, %c0_i32_1 : i32, i32, i32, i32
  }
  func.func @transform_1(%arg0: i32) -> (i32, i32) {
    %c0_i32 = arith.constant 0 : i32
    %c0_i32_0 = arith.constant 0 : i32
    %c0_i32_1 = arith.constant 0 : i32
    return %c0_i32, %c0_i32_0 : i32, i32
  }
  func.func @transform_2(%arg0: i32) -> (i32, i32) {
    %c0_i32 = arith.constant 0 : i32
    %c0_i32_0 = arith.constant 0 : i32
    %c0_i32_1 = arith.constant 0 : i32
    return %c0_i32, %c0_i32_0 : i32, i32
  }
  func.func @transform_3(%arg0: i32) -> (i32, i32, i32) {
    %c0_i32 = arith.constant 0 : i32
    %c0_i32_0 = arith.constant 0 : i32
    %c0_i32_1 = arith.constant 0 : i32
    return %arg0, %c0_i32, %c0_i32_0 : i32, i32, i32
  }
}

module attributes {stable_mosaic.version = 11 : i64} {
  func.func @_mlp_kernel(%arg0: i32, %arg1: memref<8x1200xbf16, #tpu.memory_space<vmem>>, %arg2: memref<1200x384xbf16, #tpu.memory_space<vmem>>, %arg3: memref<1x384xf32, #tpu.memory_space<vmem>>, %arg4: memref<384x256xbf16, #tpu.memory_space<vmem>>, %arg5: memref<1x256xf32, #tpu.memory_space<vmem>>, %arg6: memref<256x128xbf16, #tpu.memory_space<vmem>>, %arg7: memref<1x128xf32, #tpu.memory_space<vmem>>, %arg8: memref<8x128xf32, #tpu.memory_space<vmem>>) attributes {dimension_semantics = [#tpu.dimension_semantics<parallel>], iteration_bounds = array<i64: 1>, scalar_prefetch = 0 : i64, scratch_operands = 0 : i64, tpu.core_type = #tpu.core_type<tc>, window_params = [{transform_indices = @transform_0, window_bounds = array<i64: 8, 1200>}, {pipeline_mode = #tpu.pipeline_mode<synchronous>, transform_indices = @transform_1, window_bounds = array<i64: 1200, 384>}, {pipeline_mode = #tpu.pipeline_mode<synchronous>, transform_indices = @transform_2, window_bounds = array<i64: 1, 384>}, {pipeline_mode = #tpu.pipeline_mode<synchronous>, transform_indices = @transform_3, window_bounds = array<i64: 384, 256>}, {pipeline_mode = #tpu.pipeline_mode<synchronous>, transform_indices = @transform_4, window_bounds = array<i64: 1, 256>}, {pipeline_mode = #tpu.pipeline_mode<synchronous>, transform_indices = @transform_5, window_bounds = array<i64: 256, 128>}, {pipeline_mode = #tpu.pipeline_mode<synchronous>, transform_indices = @transform_6, window_bounds = array<i64: 1, 128>}, {transform_indices = @transform_7, window_bounds = array<i64: 8, 128>}]} {
    %c0 = arith.constant 0 : index
    %c0_0 = arith.constant 0 : index
    %0 = vector.load %arg1[%c0, %c0_0] : memref<8x1200xbf16, #tpu.memory_space<vmem>>, vector<8x1200xbf16>
    %c0_1 = arith.constant 0 : index
    %c0_2 = arith.constant 0 : index
    %1 = vector.load %arg2[%c0_1, %c0_2] : memref<1200x384xbf16, #tpu.memory_space<vmem>>, vector<1200x384xbf16>
    %cst = arith.constant dense<0.000000e+00> : vector<8x384xf32>
    %2 = tpu.matmul %0, %1, %cst {dimension_numbers = #tpu.dot_dimension_numbers<[1], [0], [0], [1], [0, 0, 1, 1], [], []>} : vector<8x1200xbf16>, vector<1200x384xbf16>, vector<8x384xf32> -> vector<8x384xf32>
    %c0_3 = arith.constant 0 : index
    %c0_4 = arith.constant 0 : index
    %3 = vector.load %arg3[%c0_3, %c0_4] : memref<1x384xf32, #tpu.memory_space<vmem>>, vector<1x384xf32>
    %4 = vector.broadcast %3 : vector<1x384xf32> to vector<8x384xf32>
    %5 = arith.addf %2, %4 : vector<8x384xf32>
    %6 = math.tanh %5 : vector<8x384xf32>
    %7 = arith.truncf %6 : vector<8x384xf32> to vector<8x384xbf16>
    %c0_5 = arith.constant 0 : index
    %c0_6 = arith.constant 0 : index
    %8 = vector.load %arg4[%c0_5, %c0_6] : memref<384x256xbf16, #tpu.memory_space<vmem>>, vector<384x256xbf16>
    %cst_7 = arith.constant dense<0.000000e+00> : vector<8x256xf32>
    %9 = tpu.matmul %7, %8, %cst_7 {dimension_numbers = #tpu.dot_dimension_numbers<[1], [0], [0], [1], [0, 0, 1, 1], [], []>} : vector<8x384xbf16>, vector<384x256xbf16>, vector<8x256xf32> -> vector<8x256xf32>
    %c0_8 = arith.constant 0 : index
    %c0_9 = arith.constant 0 : index
    %10 = vector.load %arg5[%c0_8, %c0_9] : memref<1x256xf32, #tpu.memory_space<vmem>>, vector<1x256xf32>
    %11 = vector.broadcast %10 : vector<1x256xf32> to vector<8x256xf32>
    %12 = arith.addf %9, %11 : vector<8x256xf32>
    %13 = math.tanh %12 : vector<8x256xf32>
    %14 = arith.truncf %13 : vector<8x256xf32> to vector<8x256xbf16>
    %c0_10 = arith.constant 0 : index
    %c0_11 = arith.constant 0 : index
    %15 = vector.load %arg6[%c0_10, %c0_11] : memref<256x128xbf16, #tpu.memory_space<vmem>>, vector<256x128xbf16>
    %cst_12 = arith.constant dense<0.000000e+00> : vector<8x128xf32>
    %16 = tpu.matmul %14, %15, %cst_12 {dimension_numbers = #tpu.dot_dimension_numbers<[1], [0], [0], [1], [0, 0, 1, 1], [], []>} : vector<8x256xbf16>, vector<256x128xbf16>, vector<8x128xf32> -> vector<8x128xf32>
    %c0_13 = arith.constant 0 : index
    %c0_14 = arith.constant 0 : index
    %17 = vector.load %arg7[%c0_13, %c0_14] : memref<1x128xf32, #tpu.memory_space<vmem>>, vector<1x128xf32>
    %18 = vector.broadcast %17 : vector<1x128xf32> to vector<8x128xf32>
    %19 = arith.addf %16, %18 : vector<8x128xf32>
    %c0_15 = arith.constant 0 : index
    %c0_16 = arith.constant 0 : index
    %20 = vector.load %arg8[%c0_15, %c0_16] : memref<8x128xf32, #tpu.memory_space<vmem>>, vector<8x128xf32>
    tpu.vector_store %arg8[%c0_15, %c0_16], %19 {strides = array<i32>} : memref<8x128xf32, #tpu.memory_space<vmem>>, vector<8x128xf32>,
    return
  }
  func.func @transform_0(%arg0: i32) -> (i32, i32) {
    %c0_i32 = arith.constant 0 : i32
    %c0_i32_0 = arith.constant 0 : i32
    return %arg0, %c0_i32 : i32, i32
  }
  func.func @transform_1(%arg0: i32) -> (i32, i32) {
    %c0_i32 = arith.constant 0 : i32
    %c0_i32_0 = arith.constant 0 : i32
    %c0_i32_1 = arith.constant 0 : i32
    return %c0_i32, %c0_i32_0 : i32, i32
  }
  func.func @transform_2(%arg0: i32) -> (i32, i32) {
    %c0_i32 = arith.constant 0 : i32
    %c0_i32_0 = arith.constant 0 : i32
    %c0_i32_1 = arith.constant 0 : i32
    return %c0_i32, %c0_i32_0 : i32, i32
  }
  func.func @transform_3(%arg0: i32) -> (i32, i32) {
    %c0_i32 = arith.constant 0 : i32
    %c0_i32_0 = arith.constant 0 : i32
    %c0_i32_1 = arith.constant 0 : i32
    return %c0_i32, %c0_i32_0 : i32, i32
  }
  func.func @transform_4(%arg0: i32) -> (i32, i32) {
    %c0_i32 = arith.constant 0 : i32
    %c0_i32_0 = arith.constant 0 : i32
    %c0_i32_1 = arith.constant 0 : i32
    return %c0_i32, %c0_i32_0 : i32, i32
  }
  func.func @transform_5(%arg0: i32) -> (i32, i32) {
    %c0_i32 = arith.constant 0 : i32
    %c0_i32_0 = arith.constant 0 : i32
    %c0_i32_1 = arith.constant 0 : i32
    return %c0_i32, %c0_i32_0 : i32, i32
  }
  func.func @transform_6(%arg0: i32) -> (i32, i32) {
    %c0_i32 = arith.constant 0 : i32
    %c0_i32_0 = arith.constant 0 : i32
    %c0_i32_1 = arith.constant 0 : i32
    return %c0_i32, %c0_i32_0 : i32, i32
  }
  func.func @transform_7(%arg0: i32) -> (i32, i32) {
    %c0_i32 = arith.constant 0 : i32
    %c0_i32_0 = arith.constant 0 : i32
    return %arg0, %c0_i32 : i32, i32
  }
}

</mosaic_0001>

<llo_original>
// kernel: lenet5_forward.3
$region0: #{lenet5_forward.3}
  #allocation0 [shape = 'u32[]', space=smem, size = 0x4, offset = 0x4, fixed_abs, tag = 'smem constant byte address 0x4 - core index']
  #allocation1 [shape = 'u32[72,128]{1,0:T(1,128)}', space=vmem, size = 0x9000, scoped, tag = 'internal scratch']
  %s0 = inlined_call_operand.vmem [shape: bf16[2,4,208,75], index: 0, kind: input, shape index: {}]
  %s1 = inlined_call_operand.vmem [shape: bf16[75,128], index: 1, kind: input, shape index: {}]
  %s2 = inlined_call_operand.vmem [shape: f32[1,128], index: 2, kind: input, shape index: {}]
  %s3 = inlined_call_operand.vmem [shape: bf16[2,208,128], index: 3, kind: output, shape index: {}]
  %s4 = sld [smem:[#allocation0]]
  $region22: #{lenet5_forward.3} parent=0
    _
  %s6 = ssub.s32 1, %s4
  %s7 = scalar_select 0, %s6, %s4
  // Predicated region
  $region2: #{lenet5_forward.3} parent=0 // pred_check
    _
  $region3: #{lenet5_forward.3} parent=0 // pred_check_branch
    %9 = sbr.rel (0) target = $region5
  $region4: #{lenet5_forward.3} parent=0 // pred_region
    _
  $region5: #{lenet5_forward.3} parent=0 // pred_fallthru
    _
  // Predicated region
  $region6: #{lenet5_forward.3} parent=0 // pred_check
    _
  $region7: #{lenet5_forward.3} parent=0 // pred_check_branch
    %11 = sbr.rel (0) target = $region9
  $region8: #{lenet5_forward.3} parent=0 // pred_region
    _
  $region9: #{lenet5_forward.3} parent=0 // pred_fallthru
    _
  // Predicated region
  $region10: #{lenet5_forward.3} parent=0 // pred_check
    _
  $region11: #{lenet5_forward.3} parent=0 // pred_check_branch
    %13 = sbr.rel (0) target = $region13
  $region12: #{lenet5_forward.3} parent=0 // pred_region
    _
  $region13: #{lenet5_forward.3} parent=0 // pred_fallthru
    _
  %v15 = vld [vmem:[%s0] sm:$0xf]
  %v16 = vld [vmem:[%s0 + $0x4] sm:$0xf]
  %v17 = vld [vmem:[%s0 + $0x8] sm:$0xf]
  %v18 = vld [vmem:[%s0 + $0xc] sm:$0xf]
  %v19 = vld [vmem:[%s0 + $0x10] sm:$0xf]
  %v20 = vld [vmem:[%s0 + $0x14] sm:$0xf]
  %v21 = vld [vmem:[%s0 + $0x18] sm:$0xf]
  %v22 = vld [vmem:[%s0 + $0x1c] sm:$0xf]
  %v23 = vld [vmem:[%s0 + $0x20] sm:$0xf]
  %v24 = vld [vmem:[%s0 + $0x24] sm:$0xf]
  %v25 = vld [vmem:[%s0 + $0x28] sm:$0xf]
  %v26 = vld [vmem:[%s0 + $0x2c] sm:$0xf]
  %v27 = vld [vmem:[%s0 + $0x30] sm:$0xf]
  %v28 = vld [vmem:[%s0 + $0x34] sm:$0xf]
  %v29 = vld [vmem:[%s0 + $0x38] sm:$0xf]
  %v30 = vld [vmem:[%s0 + $0x3c] sm:$0xf]
  %v31 = vld [vmem:[%s0 + $0x40] sm:$0xf]
  %v32 = vld [vmem:[%s0 + $0x44] sm:$0xf]
  %v33 = vld [vmem:[%s0 + $0x48] sm:$0xf]
  %v34 = vld [vmem:[%s0 + $0x4c] sm:$0xf]
  %v35 = vld [vmem:[%s0 + $0x50] sm:$0xf]
  %v36 = vld [vmem:[%s0 + $0x54] sm:$0xf]
  %v37 = vld [vmem:[%s0 + $0x58] sm:$0xf]
  %v38 = vld [vmem:[%s0 + $0x5c] sm:$0xf]
  %v39 = vld [vmem:[%s0 + $0x60] sm:$0xf]
  %v40 = vld [vmem:[%s0 + $0x64] sm:$0xf]
  %v41 = vld [vmem:[%s0 + $0x68] sm:$0xf]
  %v42 = vld [vmem:[%s0 + $0x6c] sm:$0xf]
  %v43 = vld [vmem:[%s0 + $0x70] sm:$0xf]
  %v44 = vld [vmem:[%s0 + $0x74] sm:$0xf]
  %v45 = vld [vmem:[%s0 + $0x78] sm:$0xf]
  %v46 = vld [vmem:[%s0 + $0x7c] sm:$0xf]
  %v47 = vld [vmem:[%s0 + $0x80] sm:$0xf]
  %v48 = vld [vmem:[%s0 + $0x84] sm:$0xf]
  %v49 = vld [vmem:[%s0 + $0x88] sm:$0xf]
  %v50 = vld [vmem:[%s0 + $0x8c] sm:$0xf]
  %v51 = vld [vmem:[%s0 + $0x90] sm:$0xf]
  %v52 = vld [vmem:[%s0 + $0x94] sm:$0xf]
  %v53 = vld [vmem:[%s0 + $0x98] sm:$0xf]
  %v54 = vld [vmem:[%s0 + $0x9c] sm:$0xf]
  %v55 = vld [vmem:[%s0 + $0xa0] sm:$0xf]
  %v56 = vld [vmem:[%s0 + $0xa4] sm:$0xf]
  %v57 = vld [vmem:[%s0 + $0xa8] sm:$0xf]
  %v58 = vld [vmem:[%s0 + $0xac] sm:$0xf]
  %v59 = vld [vmem:[%s0 + $0xb0] sm:$0xf]
  %v60 = vld [vmem:[%s0 + $0xb4] sm:$0xf]
  %v61 = vld [vmem:[%s0 + $0xb8] sm:$0xf]
  %v62 = vld [vmem:[%s0 + $0xbc] sm:$0xf]
  %v63 = vld [vmem:[%s0 + $0xc0] sm:$0xf]
  %v64 = vld [vmem:[%s0 + $0xc4] sm:$0xf]
  %v65 = vld [vmem:[%s0 + $0xc8] sm:$0xf]
  %v66 = vld [vmem:[%s0 + $0xcc] sm:$0xf]
  %v67 = vld [vmem:[%s0 + $0xd0] sm:$0xf]
  %v68 = vld [vmem:[%s0 + $0xd4] sm:$0xf]
  %v69 = vld [vmem:[%s0 + $0xd8] sm:$0xf]
  %v70 = vld [vmem:[%s0 + $0xdc] sm:$0xf]
  %v71 = vld [vmem:[%s0 + $0xe0] sm:$0xf]
  %v72 = vld [vmem:[%s0 + $0xe4] sm:$0xf]
  %v73 = vld [vmem:[%s0 + $0xe8] sm:$0xf]
  %v74 = vld [vmem:[%s0 + $0xec] sm:$0xf]
  %v75 = vld [vmem:[%s0 + $0xf0] sm:$0xf]
  %v76 = vld [vmem:[%s0 + $0xf4] sm:$0xf]
  %v77 = vld [vmem:[%s0 + $0xf8] sm:$0xf]
  %v78 = vld [vmem:[%s0 + $0xfc] sm:$0xf]
  %v79 = vld [vmem:[%s0 + $0x100] sm:$0xf]
  %v80 = vld [vmem:[%s0 + $0x104] sm:$0xf]
  %v81 = vld [vmem:[%s0 + $0x108] sm:$0xf]
  %v82 = vld [vmem:[%s0 + $0x10c] sm:$0xf]
  %v83 = vld [vmem:[%s0 + $0x110] sm:$0xf]
  %v84 = vld [vmem:[%s0 + $0x114] sm:$0xf]
  %v85 = vld [vmem:[%s0 + $0x118] sm:$0xf]
  %v86 = vld [vmem:[%s0 + $0x11c] sm:$0xf]
  %v87 = vld [vmem:[%s0 + $0x120] sm:$0xf]
  %v88 = vld [vmem:[%s0 + $0x124] sm:$0xf]
  %v89 = vld [vmem:[%s0 + $0x128] sm:$0xf]
  %v90 = vld [vmem:[%s0 + $0x12c] sm:$0xf]
  %v91 = vld [vmem:[%s0 + $0x130] sm:$0xf]
  %v92 = vld [vmem:[%s0 + $0x134] sm:$0xf]
  %v93 = vld [vmem:[%s0 + $0x138] sm:$0xf]
  %v94 = vld [vmem:[%s0 + $0x13c] sm:$0xf]
  %v95 = vld [vmem:[%s0 + $0x140] sm:$0xf]
  %v96 = vld [vmem:[%s0 + $0x144] sm:$0xf]
  %v97 = vld [vmem:[%s0 + $0x148] sm:$0xf]
  %v98 = vld [vmem:[%s0 + $0x14c] sm:$0xf]
  %v99 = vld [vmem:[%s0 + $0x150] sm:$0xf]
  %v100 = vld [vmem:[%s0 + $0x154] sm:$0xf]
  %v101 = vld [vmem:[%s0 + $0x158] sm:$0xf]
  %v102 = vld [vmem:[%s0 + $0x15c] sm:$0xf]
  %v103 = vld [vmem:[%s0 + $0x160] sm:$0xf]
  %v104 = vld [vmem:[%s0 + $0x164] sm:$0xf]
  %v105 = vld [vmem:[%s0 + $0x168] sm:$0xf]
  %v106 = vld [vmem:[%s0 + $0x16c] sm:$0xf]
  %v107 = vld [vmem:[%s0 + $0x170] sm:$0xf]
  %v108 = vld [vmem:[%s0 + $0x174] sm:$0xf]
  %v109 = vld [vmem:[%s0 + $0x178] sm:$0xf]
  %v110 = vld [vmem:[%s0 + $0x17c] sm:$0xf]
  %v111 = vld [vmem:[%s0 + $0x180] sm:$0xf]
  %v112 = vld [vmem:[%s0 + $0x184] sm:$0xf]
  %v113 = vld [vmem:[%s0 + $0x188] sm:$0xf]
  %v114 = vld [vmem:[%s0 + $0x18c] sm:$0xf]
  %v115 = vld [vmem:[%s0 + $0x190] sm:$0xf]
  %v116 = vld [vmem:[%s0 + $0x194] sm:$0xf]
  %v117 = vld [vmem:[%s0 + $0x198] sm:$0xf]
  %v118 = vld [vmem:[%s0 + $0x19c] sm:$0xf]
  %v119 = vld [vmem:[%s0 + $0x1a0] sm:$0xf]
  %v120 = vld [vmem:[%s0 + $0x1a4] sm:$0xf]
  %v121 = vld [vmem:[%s0 + $0x1a8] sm:$0xf]
  %v122 = vld [vmem:[%s0 + $0x1ac] sm:$0xf]
  %v123 = vld [vmem:[%s0 + $0x1b0] sm:$0xf]
  %v124 = vld [vmem:[%s0 + $0x1b4] sm:$0xf]
  %v125 = vld [vmem:[%s0 + $0x1b8] sm:$0xf]
  %v126 = vld [vmem:[%s0 + $0x1bc] sm:$0xf]
  %v127 = vld [vmem:[%s0 + $0x1c0] sm:$0xf]
  %v128 = vld [vmem:[%s0 + $0x1c4] sm:$0xf]
  %v129 = vld [vmem:[%s0 + $0x1c8] sm:$0xf]
  %v130 = vld [vmem:[%s0 + $0x1cc] sm:$0xf]
  %v131 = vld [vmem:[%s0 + $0x1d0] sm:$0xf]
  %v132 = vld [vmem:[%s0 + $0x1d4] sm:$0xf]
  %v133 = vld [vmem:[%s0 + $0x1d8] sm:$0xf]
  %v134 = vld [vmem:[%s0 + $0x1dc] sm:$0xf]
  %v135 = vld [vmem:[%s0 + $0x1e0] sm:$0xf]
  %v136 = vld [vmem:[%s0 + $0x1e4] sm:$0xf]
  %v137 = vld [vmem:[%s0 + $0x1e8] sm:$0xf]
  %v138 = vld [vmem:[%s0 + $0x1ec] sm:$0xf]
  %v139 = vld [vmem:[%s0 + $0x1f0] sm:$0xf]
  %v140 = vld [vmem:[%s0 + $0x1f4] sm:$0xf]
  %v141 = vld [vmem:[%s0 + $0x1f8] sm:$0xf]
  %v142 = vld [vmem:[%s0 + $0x1fc] sm:$0xf]
  %v143 = vld [vmem:[%s0 + $0x200] sm:$0xf]
  %v144 = vld [vmem:[%s0 + $0x204] sm:$0xf]
  %v145 = vld [vmem:[%s0 + $0x208] sm:$0xf]
  %v146 = vld [vmem:[%s0 + $0x20c] sm:$0xf]
  %v147 = vld [vmem:[%s0 + $0x210] sm:$0xf]
  %v148 = vld [vmem:[%s0 + $0x214] sm:$0xf]
  %v149 = vld [vmem:[%s0 + $0x218] sm:$0xf]
  %v150 = vld [vmem:[%s0 + $0x21c] sm:$0xf]
  %v151 = vld [vmem:[%s0 + $0x220] sm:$0xf]
  %v152 = vld [vmem:[%s0 + $0x224] sm:$0xf]
  %v153 = vld [vmem:[%s0 + $0x228] sm:$0xf]
  %v154 = vld [vmem:[%s0 + $0x22c] sm:$0xf]
  %v155 = vld [vmem:[%s0 + $0x230] sm:$0xf]
  %v156 = vld [vmem:[%s0 + $0x234] sm:$0xf]
  %v157 = vld [vmem:[%s0 + $0x238] sm:$0xf]
  %v158 = vld [vmem:[%s0 + $0x23c] sm:$0xf]
  %v159 = vld [vmem:[%s0 + $0x240] sm:$0xf]
  %v160 = vld [vmem:[%s0 + $0x244] sm:$0xf]
  %v161 = vld [vmem:[%s0 + $0x248] sm:$0xf]
  %v162 = vld [vmem:[%s0 + $0x24c] sm:$0xf]
  %v163 = vld [vmem:[%s0 + $0x250] sm:$0xf]
  %v164 = vld [vmem:[%s0 + $0x254] sm:$0xf]
  %v165 = vld [vmem:[%s0 + $0x258] sm:$0xf]
  %v166 = vld [vmem:[%s0 + $0x25c] sm:$0xf]
  %v167 = vld [vmem:[%s0 + $0x260] sm:$0xf]
  %v168 = vld [vmem:[%s0 + $0x264] sm:$0xf]
  %v169 = vld [vmem:[%s0 + $0x268] sm:$0xf]
  %v170 = vld [vmem:[%s0 + $0x26c] sm:$0xf]
  %v171 = vld [vmem:[%s0 + $0x270] sm:$0xf]
  %v172 = vld [vmem:[%s0 + $0x274] sm:$0xf]
  %v173 = vld [vmem:[%s0 + $0x278] sm:$0xf]
  %v174 = vld [vmem:[%s0 + $0x27c] sm:$0xf]
  %v175 = vld [vmem:[%s0 + $0x280] sm:$0xf]
  %v176 = vld [vmem:[%s0 + $0x284] sm:$0xf]
  %v177 = vld [vmem:[%s0 + $0x288] sm:$0xf]
  %v178 = vld [vmem:[%s0 + $0x28c] sm:$0xf]
  %v179 = vld [vmem:[%s0 + $0x290] sm:$0xf]
  %v180 = vld [vmem:[%s0 + $0x294] sm:$0xf]
  %v181 = vld [vmem:[%s0 + $0x298] sm:$0xf]
  %v182 = vld [vmem:[%s0 + $0x29c] sm:$0xf]
  %v183 = vld [vmem:[%s0 + $0x2a0] sm:$0xf]
  %v184 = vld [vmem:[%s0 + $0x2a4] sm:$0xf]
  %v185 = vld [vmem:[%s0 + $0x2a8] sm:$0xf]
  %v186 = vld [vmem:[%s0 + $0x2ac] sm:$0xf]
  %v187 = vld [vmem:[%s0 + $0x2b0] sm:$0xf]
  %v188 = vld [vmem:[%s0 + $0x2b4] sm:$0xf]
  %v189 = vld [vmem:[%s0 + $0x2b8] sm:$0xf]
  %v190 = vld [vmem:[%s0 + $0x2bc] sm:$0xf]
  %v191 = vld [vmem:[%s0 + $0x2c0] sm:$0xf]
  %v192 = vld [vmem:[%s0 + $0x2c4] sm:$0xf]
  %v193 = vld [vmem:[%s0 + $0x2c8] sm:$0xf]
  %v194 = vld [vmem:[%s0 + $0x2cc] sm:$0xf]
  %v195 = vld [vmem:[%s0 + $0x2d0] sm:$0xf]
  %v196 = vld [vmem:[%s0 + $0x2d4] sm:$0xf]
  %v197 = vld [vmem:[%s0 + $0x2d8] sm:$0xf]
  %v198 = vld [vmem:[%s0 + $0x2dc] sm:$0xf]
  %v199 = vld [vmem:[%s0 + $0x2e0] sm:$0xf]
  %v200 = vld [vmem:[%s0 + $0x2e4] sm:$0xf]
  %v201 = vld [vmem:[%s0 + $0x2e8] sm:$0xf]
  %v202 = vld [vmem:[%s0 + $0x2ec] sm:$0xf]
  %v203 = vld [vmem:[%s0 + $0x2f0] sm:$0xf]
  %v204 = vld [vmem:[%s0 + $0x2f4] sm:$0xf]
  %v205 = vld [vmem:[%s0 + $0x2f8] sm:$0xf]
  %v206 = vld [vmem:[%s0 + $0x2fc] sm:$0xf]
  %v207 = vld [vmem:[%s0 + $0x300] sm:$0xf]
  %v208 = vld [vmem:[%s0 + $0x304] sm:$0xf]
  %v209 = vld [vmem:[%s0 + $0x308] sm:$0xf]
  %v210 = vld [vmem:[%s0 + $0x30c] sm:$0xf]
  %v211 = vld [vmem:[%s0 + $0x310] sm:$0xf]
  %v212 = vld [vmem:[%s0 + $0x314] sm:$0xf]
  %v213 = vld [vmem:[%s0 + $0x318] sm:$0xf]
  %v214 = vld [vmem:[%s0 + $0x31c] sm:$0xf]
  %v215 = vld [vmem:[%s0 + $0x320] sm:$0xf]
  %v216 = vld [vmem:[%s0 + $0x324] sm:$0xf]
  %v217 = vld [vmem:[%s0 + $0x328] sm:$0xf]
  %v218 = vld [vmem:[%s0 + $0x32c] sm:$0xf]
  %v219 = vld [vmem:[%s0 + $0x330] sm:$0xf]
  %v220 = vld [vmem:[%s0 + $0x334] sm:$0xf]
  %v221 = vld [vmem:[%s0 + $0x338] sm:$0xf]
  %v222 = vld [vmem:[%s0 + $0x33c] sm:$0xf]
  %v223 = vld [vmem:[%s1] sm:$0xf]
  %v224 = vld [vmem:[%s1 + $0x4] sm:$0xf]
  %v225 = vld [vmem:[%s1 + $0x8] sm:$0xf]
  %v226 = vld [vmem:[%s1 + $0xc] sm:$0xf]
  %v227 = vld [vmem:[%s1 + $0x10] sm:$0xf]
  %v228 = vld [vmem:[%s1 + $0x14] sm:$0xf]
  %v229 = vld [vmem:[%s1 + $0x18] sm:$0xf]
  %v230 = vld [vmem:[%s1 + $0x1c] sm:$0xf]
  %v231 = vld [vmem:[%s1 + $0x20] sm:$0xf]
  %v232 = vld [vmem:[%s1 + $0x24] sm:$0x3]
  %v441 = vunpack.c.l.b16 %v15
  %v442 = vunpack.c.l.b16 %v16
  %v443 = vunpack.c.l.b16 %v17
  %v444 = vunpack.c.l.b16 %v18
  %v445 = vunpack.c.l.b16 %v19
  %v446 = vunpack.c.l.b16 %v20
  %v447 = vunpack.c.l.b16 %v21
  %v448 = vunpack.c.l.b16 %v22
  %v449 = vunpack.c.l.b16 %v23
  %v450 = vunpack.c.l.b16 %v24
  %v451 = vunpack.c.l.b16 %v25
  %v452 = vunpack.c.l.b16 %v26
  %v453 = vunpack.c.l.b16 %v27
  %v454 = vunpack.c.l.b16 %v28
  %v455 = vunpack.c.l.b16 %v29
  %v456 = vunpack.c.l.b16 %v30
  %v457 = vunpack.c.l.b16 %v31
  %v458 = vunpack.c.l.b16 %v32
  %v459 = vunpack.c.l.b16 %v33
  %v460 = vunpack.c.l.b16 %v34
  %v461 = vunpack.c.l.b16 %v35
  %v462 = vunpack.c.l.b16 %v36
  %v463 = vunpack.c.l.b16 %v37
  %v464 = vunpack.c.l.b16 %v38
  %v465 = vunpack.c.l.b16 %v39
  %v466 = vunpack.c.l.b16 %v40
  %v467 = vunpack.c.l.b16 %v41
  %v468 = vunpack.c.l.b16 %v42
  %v469 = vunpack.c.l.b16 %v43
  %v470 = vunpack.c.l.b16 %v44
  %v471 = vunpack.c.l.b16 %v45
  %v472 = vunpack.c.l.b16 %v46
  %v473 = vunpack.c.l.b16 %v47
  %v474 = vunpack.c.l.b16 %v48
  %v475 = vunpack.c.l.b16 %v49
  %v476 = vunpack.c.l.b16 %v50
  %v477 = vunpack.c.l.b16 %v51
  %v478 = vunpack.c.l.b16 %v52
  %v479 = vunpack.c.l.b16 %v53
  %v480 = vunpack.c.l.b16 %v54
  %v481 = vunpack.c.l.b16 %v55
  %v482 = vunpack.c.l.b16 %v56
  %v483 = vunpack.c.l.b16 %v57
  %v484 = vunpack.c.l.b16 %v58
  %v485 = vunpack.c.l.b16 %v59
  %v486 = vunpack.c.l.b16 %v60
  %v487 = vunpack.c.l.b16 %v61
  %v488 = vunpack.c.l.b16 %v62
  %v489 = vunpack.c.l.b16 %v63
  %v490 = vunpack.c.l.b16 %v64
  %v491 = vunpack.c.l.b16 %v65
  %v492 = vunpack.c.l.b16 %v66
  %v493 = vunpack.c.l.b16 %v67
  %v494 = vunpack.c.l.b16 %v68
  %v495 = vunpack.c.l.b16 %v69
  %v496 = vunpack.c.l.b16 %v70
  %v497 = vunpack.c.l.b16 %v71
  %v498 = vunpack.c.l.b16 %v72
  %v499 = vunpack.c.l.b16 %v73
  %v500 = vunpack.c.l.b16 %v74
  %v501 = vunpack.c.l.b16 %v75
  %v502 = vunpack.c.l.b16 %v76
  %v503 = vunpack.c.l.b16 %v77
  %v504 = vunpack.c.l.b16 %v78
  %v505 = vunpack.c.l.b16 %v79
  %v506 = vunpack.c.l.b16 %v80
  %v507 = vunpack.c.l.b16 %v81
  %v508 = vunpack.c.l.b16 %v82
  %v509 = vunpack.c.l.b16 %v83
  %v510 = vunpack.c.l.b16 %v84
  %v511 = vunpack.c.l.b16 %v85
  %v512 = vunpack.c.l.b16 %v86
  %v513 = vunpack.c.l.b16 %v87
  %v514 = vunpack.c.l.b16 %v88
  %v515 = vunpack.c.l.b16 %v89
  %v516 = vunpack.c.l.b16 %v90
  %v517 = vunpack.c.l.b16 %v91
  %v518 = vunpack.c.l.b16 %v92
  %v519 = vunpack.c.l.b16 %v93
  %v520 = vunpack.c.l.b16 %v94
  %v521 = vunpack.c.l.b16 %v95
  %v522 = vunpack.c.l.b16 %v96
  %v523 = vunpack.c.l.b16 %v97
  %v524 = vunpack.c.l.b16 %v98
  %v525 = vunpack.c.l.b16 %v99
  %v526 = vunpack.c.l.b16 %v100
  %v527 = vunpack.c.l.b16 %v101
  %v528 = vunpack.c.l.b16 %v102
  %v529 = vunpack.c.l.b16 %v103
  %v530 = vunpack.c.l.b16 %v104
  %v531 = vunpack.c.l.b16 %v105
  %v532 = vunpack.c.l.b16 %v106
  %v533 = vunpack.c.l.b16 %v107
  %v534 = vunpack.c.l.b16 %v108
  %v535 = vunpack.c.l.b16 %v109
  %v536 = vunpack.c.l.b16 %v110
  %v537 = vunpack.c.l.b16 %v111
  %v538 = vunpack.c.l.b16 %v112
  %v539 = vunpack.c.l.b16 %v113
  %v540 = vunpack.c.l.b16 %v114
  %v541 = vunpack.c.l.b16 %v115
  %v542 = vunpack.c.l.b16 %v116
  %v543 = vunpack.c.l.b16 %v117
  %v544 = vunpack.c.l.b16 %v118
  %v545 = vunpack.c.l.b16 %v119
  %v546 = vunpack.c.l.b16 %v120
  %v547 = vunpack.c.l.b16 %v121
  %v548 = vunpack.c.l.b16 %v122
  %v549 = vunpack.c.l.b16 %v123
  %v550 = vunpack.c.l.b16 %v124
  %v551 = vunpack.c.l.b16 %v125
  %v552 = vunpack.c.l.b16 %v126
  %v553 = vunpack.c.l.b16 %v127
  %v554 = vunpack.c.l.b16 %v128
  %v555 = vunpack.c.l.b16 %v129
  %v556 = vunpack.c.l.b16 %v130
  %v557 = vunpack.c.l.b16 %v131
  %v558 = vunpack.c.l.b16 %v132
  %v559 = vunpack.c.l.b16 %v133
  %v560 = vunpack.c.l.b16 %v134
  %v561 = vunpack.c.l.b16 %v135
  %v562 = vunpack.c.l.b16 %v136
  %v563 = vunpack.c.l.b16 %v137
  %v564 = vunpack.c.l.b16 %v138
  %v565 = vunpack.c.l.b16 %v139
  %v566 = vunpack.c.l.b16 %v140
  %v567 = vunpack.c.l.b16 %v141
  %v568 = vunpack.c.l.b16 %v142
  %v569 = vunpack.c.l.b16 %v143
  %v570 = vunpack.c.l.b16 %v144
  %v571 = vunpack.c.l.b16 %v145
  %v572 = vunpack.c.l.b16 %v146
  %v573 = vunpack.c.l.b16 %v147
  %v574 = vunpack.c.l.b16 %v148
  %v575 = vunpack.c.l.b16 %v149
  %v576 = vunpack.c.l.b16 %v150
  %v577 = vunpack.c.l.b16 %v151
  %v578 = vunpack.c.l.b16 %v152
  %v579 = vunpack.c.l.b16 %v153
  %v580 = vunpack.c.l.b16 %v154
  %v581 = vunpack.c.l.b16 %v155
  %v582 = vunpack.c.l.b16 %v156
  %v583 = vunpack.c.l.b16 %v157
  %v584 = vunpack.c.l.b16 %v158
  %v585 = vunpack.c.l.b16 %v159
  %v586 = vunpack.c.l.b16 %v160
  %v587 = vunpack.c.l.b16 %v161
  %v588 = vunpack.c.l.b16 %v162
  %v589 = vunpack.c.l.b16 %v163
  %v590 = vunpack.c.l.b16 %v164
  %v591 = vunpack.c.l.b16 %v165
  %v592 = vunpack.c.l.b16 %v166
  %v593 = vunpack.c.l.b16 %v167
  %v594 = vunpack.c.l.b16 %v168
  %v595 = vunpack.c.l.b16 %v169
  %v596 = vunpack.c.l.b16 %v170
  %v597 = vunpack.c.l.b16 %v171
  %v598 = vunpack.c.l.b16 %v172
  %v599 = vunpack.c.l.b16 %v173
  %v600 = vunpack.c.l.b16 %v174
  %v601 = vunpack.c.l.b16 %v175
  %v602 = vunpack.c.l.b16 %v176
  %v603 = vunpack.c.l.b16 %v177
  %v604 = vunpack.c.l.b16 %v178
  %v605 = vunpack.c.l.b16 %v179
  %v606 = vunpack.c.l.b16 %v180
  %v607 = vunpack.c.l.b16 %v181
  %v608 = vunpack.c.l.b16 %v182
  %v609 = vunpack.c.l.b16 %v183
  %v610 = vunpack.c.l.b16 %v184
  %v611 = vunpack.c.l.b16 %v185
  %v612 = vunpack.c.l.b16 %v186
  %v613 = vunpack.c.l.b16 %v187
  %v614 = vunpack.c.l.b16 %v188
  %v615 = vunpack.c.l.b16 %v189
  %v616 = vunpack.c.l.b16 %v190
  %v617 = vunpack.c.l.b16 %v191
  %v618 = vunpack.c.l.b16 %v192
  %v619 = vunpack.c.l.b16 %v193
  %v620 = vunpack.c.l.b16 %v194
  %v621 = vunpack.c.l.b16 %v195
  %v622 = vunpack.c.l.b16 %v196
  %v623 = vunpack.c.l.b16 %v197
  %v624 = vunpack.c.l.b16 %v198
  %v625 = vunpack.c.l.b16 %v199
  %v626 = vunpack.c.l.b16 %v200
  %v627 = vunpack.c.l.b16 %v201
  %v628 = vunpack.c.l.b16 %v202
  %v629 = vunpack.c.l.b16 %v203
  %v630 = vunpack.c.l.b16 %v204
  %v631 = vunpack.c.l.b16 %v205
  %v632 = vunpack.c.l.b16 %v206
  %v633 = vunpack.c.l.b16 %v207
  %v634 = vunpack.c.l.b16 %v208
  %v635 = vunpack.c.l.b16 %v209
  %v636 = vunpack.c.l.b16 %v210
  %v637 = vunpack.c.l.b16 %v211
  %v638 = vunpack.c.l.b16 %v212
  %v639 = vunpack.c.l.b16 %v213
  %v640 = vunpack.c.l.b16 %v214
  %v641 = vunpack.c.l.b16 %v215
  %v642 = vunpack.c.l.b16 %v216
  %v643 = vunpack.c.l.b16 %v217
  %v644 = vunpack.c.l.b16 %v218
  %v645 = vunpack.c.l.b16 %v219
  %v646 = vunpack.c.l.b16 %v220
  %v647 = vunpack.c.l.b16 %v221
  %v648 = vunpack.c.l.b16 %v222
  %v649 = vpack.c.b16 %v442, %v441
  %v650 = vpack.c.b16 %v444, %v443
  %v651 = vpack.c.b16 %v446, %v445
  %v652 = vpack.c.b16 %v448, %v447
  %v653 = vpack.c.b16 %v450, %v449
  %v654 = vpack.c.b16 %v452, %v451
  %v655 = vpack.c.b16 %v454, %v453
  %v656 = vpack.c.b16 %v456, %v455
  %v657 = vpack.c.b16 %v458, %v457
  %v658 = vpack.c.b16 %v460, %v459
  %v659 = vpack.c.b16 %v462, %v461
  %v660 = vpack.c.b16 %v464, %v463
  %v661 = vpack.c.b16 %v466, %v465
  %v662 = vpack.c.b16 %v468, %v467
  %v663 = vpack.c.b16 %v470, %v469
  %v664 = vpack.c.b16 %v472, %v471
  %v665 = vpack.c.b16 %v474, %v473
  %v666 = vpack.c.b16 %v476, %v475
  %v667 = vpack.c.b16 %v478, %v477
  %v668 = vpack.c.b16 %v480, %v479
  %v669 = vpack.c.b16 %v482, %v481
  %v670 = vpack.c.b16 %v484, %v483
  %v671 = vpack.c.b16 %v486, %v485
  %v672 = vpack.c.b16 %v488, %v487
  %v673 = vpack.c.b16 %v490, %v489
  %v674 = vpack.c.b16 %v492, %v491
  %v675 = vpack.c.b16 %v494, %v493
  %v676 = vpack.c.b16 %v496, %v495
  %v677 = vpack.c.b16 %v498, %v497
  %v678 = vpack.c.b16 %v500, %v499
  %v679 = vpack.c.b16 %v502, %v501
  %v680 = vpack.c.b16 %v504, %v503
  %v681 = vpack.c.b16 %v506, %v505
  %v682 = vpack.c.b16 %v508, %v507
  %v683 = vpack.c.b16 %v510, %v509
  %v684 = vpack.c.b16 %v512, %v511
  %v685 = vpack.c.b16 %v514, %v513
  %v686 = vpack.c.b16 %v516, %v515
  %v687 = vpack.c.b16 %v518, %v517
  %v688 = vpack.c.b16 %v520, %v519
  %v689 = vpack.c.b16 %v522, %v521
  %v690 = vpack.c.b16 %v524, %v523
  %v691 = vpack.c.b16 %v526, %v525
  %v692 = vpack.c.b16 %v528, %v527
  %v693 = vpack.c.b16 %v530, %v529
  %v694 = vpack.c.b16 %v532, %v531
  %v695 = vpack.c.b16 %v534, %v533
  %v696 = vpack.c.b16 %v536, %v535
  %v697 = vpack.c.b16 %v538, %v537
  %v698 = vpack.c.b16 %v540, %v539
  %v699 = vpack.c.b16 %v542, %v541
  %v700 = vpack.c.b16 %v544, %v543
  %v701 = vpack.c.b16 %v546, %v545
  %v702 = vpack.c.b16 %v548, %v547
  %v703 = vpack.c.b16 %v550, %v549
  %v704 = vpack.c.b16 %v552, %v551
  %v705 = vpack.c.b16 %v554, %v553
  %v706 = vpack.c.b16 %v556, %v555
  %v707 = vpack.c.b16 %v558, %v557
  %v708 = vpack.c.b16 %v560, %v559
  %v709 = vpack.c.b16 %v562, %v561
  %v710 = vpack.c.b16 %v564, %v563
  %v711 = vpack.c.b16 %v566, %v565
  %v712 = vpack.c.b16 %v568, %v567
  %v713 = vpack.c.b16 %v570, %v569
  %v714 = vpack.c.b16 %v572, %v571
  %v715 = vpack.c.b16 %v574, %v573
  %v716 = vpack.c.b16 %v576, %v575
  %v717 = vpack.c.b16 %v578, %v577
  %v718 = vpack.c.b16 %v580, %v579
  %v719 = vpack.c.b16 %v582, %v581
  %v720 = vpack.c.b16 %v584, %v583
  %v721 = vpack.c.b16 %v586, %v585
  %v722 = vpack.c.b16 %v588, %v587
  %v723 = vpack.c.b16 %v590, %v589
  %v724 = vpack.c.b16 %v592, %v591
  %v725 = vpack.c.b16 %v594, %v593
  %v726 = vpack.c.b16 %v596, %v595
  %v727 = vpack.c.b16 %v598, %v597
  %v728 = vpack.c.b16 %v600, %v599
  %v729 = vpack.c.b16 %v602, %v601
  %v730 = vpack.c.b16 %v604, %v603
  %v731 = vpack.c.b16 %v606, %v605
  %v732 = vpack.c.b16 %v608, %v607
  %v733 = vpack.c.b16 %v610, %v609
  %v734 = vpack.c.b16 %v612, %v611
  %v735 = vpack.c.b16 %v614, %v613
  %v736 = vpack.c.b16 %v616, %v615
  %v737 = vpack.c.b16 %v618, %v617
  %v738 = vpack.c.b16 %v620, %v619
  %v739 = vpack.c.b16 %v622, %v621
  %v740 = vpack.c.b16 %v624, %v623
  %v741 = vpack.c.b16 %v626, %v625
  %v742 = vpack.c.b16 %v628, %v627
  %v743 = vpack.c.b16 %v630, %v629
  %v744 = vpack.c.b16 %v632, %v631
  %v745 = vpack.c.b16 %v634, %v633
  %v746 = vpack.c.b16 %v636, %v635
  %v747 = vpack.c.b16 %v638, %v637
  %v748 = vpack.c.b16 %v640, %v639
  %v749 = vpack.c.b16 %v642, %v641
  %v750 = vpack.c.b16 %v644, %v643
  %v751 = vpack.c.b16 %v646, %v645
  %v752 = vpack.c.b16 %v648, %v647
  %v763 = vunpack.c.l.b16 %v223
  %v764 = vunpack.c.l.b16 %v224
  %v765 = vunpack.c.l.b16 %v225
  %v766 = vunpack.c.l.b16 %v226
  %v767 = vunpack.c.l.b16 %v227
  %v768 = vunpack.c.l.b16 %v228
  %v769 = vunpack.c.l.b16 %v229
  %v770 = vunpack.c.l.b16 %v230
  %v771 = vunpack.c.l.b16 %v231
  %v772 = vunpack.c.l.b16 %v232
  %v773 = vpack.c.b16 %v764, %v763
  %v774 = vpack.c.b16 %v766, %v765
  %v775 = vpack.c.b16 %v768, %v767
  %v776 = vpack.c.b16 %v770, %v769
  %v777 = vpack.c.b16 %v772, %v771
  %vm782 = vcmask 613376
  %v784 = vsel %vm782, %v649, 0
  %v787 = vsel %vm782, %v650, 0
  %v790 = vsel %vm782, %v651, 0
  %v793 = vsel %vm782, %v652, 0
  %v796 = vsel %vm782, %v653, 0
  %v799 = vsel %vm782, %v654, 0
  %v802 = vsel %vm782, %v655, 0
  %v805 = vsel %vm782, %v656, 0
  %v808 = vsel %vm782, %v657, 0
  %v811 = vsel %vm782, %v658, 0
  %v814 = vsel %vm782, %v659, 0
  %v817 = vsel %vm782, %v660, 0
  %v820 = vsel %vm782, %v661, 0
  %v823 = vsel %vm782, %v662, 0
  %v826 = vsel %vm782, %v663, 0
  %v829 = vsel %vm782, %v664, 0
  %v832 = vsel %vm782, %v665, 0
  %v835 = vsel %vm782, %v666, 0
  %v838 = vsel %vm782, %v667, 0
  %v841 = vsel %vm782, %v668, 0
  %v844 = vsel %vm782, %v669, 0
  %v847 = vsel %vm782, %v670, 0
  %v850 = vsel %vm782, %v671, 0
  %v853 = vsel %vm782, %v672, 0
  %v856 = vsel %vm782, %v673, 0
  %v859 = vsel %vm782, %v674, 0
  %v862 = vsel %vm782, %v675, 0
  %v865 = vsel %vm782, %v676, 0
  %v868 = vsel %vm782, %v677, 0
  %v871 = vsel %vm782, %v678, 0
  %v874 = vsel %vm782, %v679, 0
  %v877 = vsel %vm782, %v680, 0
  %v880 = vsel %vm782, %v681, 0
  %v883 = vsel %vm782, %v682, 0
  %v886 = vsel %vm782, %v683, 0
  %v889 = vsel %vm782, %v684, 0
  %v892 = vsel %vm782, %v685, 0
  %v895 = vsel %vm782, %v686, 0
  %v898 = vsel %vm782, %v687, 0
  %v901 = vsel %vm782, %v688, 0
  %v904 = vsel %vm782, %v689, 0
  %v907 = vsel %vm782, %v690, 0
  %v910 = vsel %vm782, %v691, 0
  %v913 = vsel %vm782, %v692, 0
  %v916 = vsel %vm782, %v693, 0
  %v919 = vsel %vm782, %v694, 0
  %v922 = vsel %vm782, %v695, 0
  %v925 = vsel %vm782, %v696, 0
  %v928 = vsel %vm782, %v697, 0
  %v931 = vsel %vm782, %v698, 0
  %v934 = vsel %vm782, %v699, 0
  %v937 = vsel %vm782, %v700, 0
  %v940 = vsel %vm782, %v701, 0
  %v943 = vsel %vm782, %v702, 0
  %v946 = vsel %vm782, %v703, 0
  %v949 = vsel %vm782, %v704, 0
  %v952 = vsel %vm782, %v705, 0
  %v955 = vsel %vm782, %v706, 0
  %v958 = vsel %vm782, %v707, 0
  %v961 = vsel %vm782, %v708, 0
  %v964 = vsel %vm782, %v709, 0
  %v967 = vsel %vm782, %v710, 0
  %v970 = vsel %vm782, %v711, 0
  %v973 = vsel %vm782, %v712, 0
  %v976 = vsel %vm782, %v713, 0
  %v979 = vsel %vm782, %v714, 0
  %v982 = vsel %vm782, %v715, 0
  %v985 = vsel %vm782, %v716, 0
  %v988 = vsel %vm782, %v717, 0
  %v991 = vsel %vm782, %v718, 0
  %v994 = vsel %vm782, %v719, 0
  %v997 = vsel %vm782, %v720, 0
  %v1000 = vsel %vm782, %v721, 0
  %v1003 = vsel %vm782, %v722, 0
  %v1006 = vsel %vm782, %v723, 0
  %v1009 = vsel %vm782, %v724, 0
  %v1012 = vsel %vm782, %v725, 0
  %v1015 = vsel %vm782, %v726, 0
  %v1018 = vsel %vm782, %v727, 0
  %v1021 = vsel %vm782, %v728, 0
  %v1024 = vsel %vm782, %v729, 0
  %v1027 = vsel %vm782, %v730, 0
  %v1030 = vsel %vm782, %v731, 0
  %v1033 = vsel %vm782, %v732, 0
  %v1036 = vsel %vm782, %v733, 0
  %v1039 = vsel %vm782, %v734, 0
  %v1042 = vsel %vm782, %v735, 0
  %v1045 = vsel %vm782, %v736, 0
  %v1048 = vsel %vm782, %v737, 0
  %v1051 = vsel %vm782, %v738, 0
  %v1054 = vsel %vm782, %v739, 0
  %v1057 = vsel %vm782, %v740, 0
  %v1060 = vsel %vm782, %v741, 0
  %v1063 = vsel %vm782, %v742, 0
  %v1066 = vsel %vm782, %v743, 0
  %v1069 = vsel %vm782, %v744, 0
  %v1072 = vsel %vm782, %v745, 0
  %v1075 = vsel %vm782, %v746, 0
  %v1078 = vsel %vm782, %v747, 0
  %v1081 = vsel %vm782, %v748, 0
  %v1084 = vsel %vm782, %v749, 0
  %v1087 = vsel %vm782, %v750, 0
  %v1090 = vsel %vm782, %v751, 0
  %v1093 = vsel %vm782, %v752, 0
  %vm1095 = vcmask 1044480
  %vm1096 = vcmask 1045504
  %v1097 = vsel %vm1095, 4294967295, 65535
  %v1098 = vsel %vm1096, %v1097, 0
  %v1100 = vand.u32 %v777, %v1098
  %1102 = vmatpush.bf16.msra.mxu0 0
  %1103 = vmatpush.bf16.msra.mxu0 0
  %1104 = vmatpush.bf16.msra.mxu0 0
  %1105 = vmatpush.bf16.msra.mxu0 %v1100
  %1106 = vmatpush.bf16.msra.mxu0 %v776
  %1107 = vmatpush.bf16.msra.mxu0 %v775
  %1108 = vmatpush.bf16.msra.mxu0 %v774
  %1109 = vmatpush.bf16.msra.mxu0 %v773
  %1110 = vmatmul.bf16.gmra.mxu0 %v784
  %v1111 = vpop.f32.mrf.mxu0
  %v1112 = vadd.f32 0.0, %v1111
  %v1113 = vpop.f32.mrf.mxu0
  %v1114 = vadd.f32 0.0, %v1113
  %1115 = vmatmul.bf16.gmra.mxu0 %v787
  %v1116 = vpop.f32.mrf.mxu0
  %v1117 = vadd.f32 0.0, %v1116
  %v1118 = vpop.f32.mrf.mxu0
  %v1119 = vadd.f32 0.0, %v1118
  %1120 = vmatmul.bf16.gmra.mxu0 %v790
  %v1121 = vpop.f32.mrf.mxu0
  %v1122 = vadd.f32 0.0, %v1121
  %v1123 = vpop.f32.mrf.mxu0
  %v1124 = vadd.f32 0.0, %v1123
  %1125 = vmatmul.bf16.gmra.mxu0 %v793
  %v1126 = vpop.f32.mrf.mxu0
  %v1127 = vadd.f32 0.0, %v1126
  %v1128 = vpop.f32.mrf.mxu0
  %v1129 = vadd.f32 0.0, %v1128
  %1130 = vmatmul.bf16.gmra.mxu0 %v796
  %v1131 = vpop.f32.mrf.mxu0
  %v1132 = vadd.f32 0.0, %v1131
  %v1133 = vpop.f32.mrf.mxu0
  %v1134 = vadd.f32 0.0, %v1133
  %1135 = vmatmul.bf16.gmra.mxu0 %v799
  %v1136 = vpop.f32.mrf.mxu0
  %v1137 = vadd.f32 0.0, %v1136
  %v1138 = vpop.f32.mrf.mxu0
  %v1139 = vadd.f32 0.0, %v1138
  %1140 = vmatmul.bf16.gmra.mxu0 %v802
  %v1141 = vpop.f32.mrf.mxu0
  %v1142 = vadd.f32 0.0, %v1141
  %v1143 = vpop.f32.mrf.mxu0
  %v1144 = vadd.f32 0.0, %v1143
  %1145 = vmatmul.bf16.gmra.mxu0 %v805
  %v1146 = vpop.f32.mrf.mxu0
  %v1147 = vadd.f32 0.0, %v1146
  %v1148 = vpop.f32.mrf.mxu0
  %v1149 = vadd.f32 0.0, %v1148
  %1150 = vmatmul.bf16.gmra.mxu0 %v808
  %v1151 = vpop.f32.mrf.mxu0
  %v1152 = vadd.f32 0.0, %v1151
  %v1153 = vpop.f32.mrf.mxu0
  %v1154 = vadd.f32 0.0, %v1153
  %1155 = vmatmul.bf16.gmra.mxu0 %v811
  %v1156 = vpop.f32.mrf.mxu0
  %v1157 = vadd.f32 0.0, %v1156
  %v1158 = vpop.f32.mrf.mxu0
  %v1159 = vadd.f32 0.0, %v1158
  %1160 = vmatmul.bf16.gmra.mxu0 %v814
  %v1161 = vpop.f32.mrf.mxu0
  %v1162 = vadd.f32 0.0, %v1161
  %v1163 = vpop.f32.mrf.mxu0
  %v1164 = vadd.f32 0.0, %v1163
  %1165 = vmatmul.bf16.gmra.mxu0 %v817
  %v1166 = vpop.f32.mrf.mxu0
  %v1167 = vadd.f32 0.0, %v1166
  %v1168 = vpop.f32.mrf.mxu0
  %v1169 = vadd.f32 0.0, %v1168
  %1170 = vmatmul.bf16.gmra.mxu0 %v820
  %v1171 = vpop.f32.mrf.mxu0
  %v1172 = vadd.f32 0.0, %v1171
  %v1173 = vpop.f32.mrf.mxu0
  %v1174 = vadd.f32 0.0, %v1173
  %1175 = vmatmul.bf16.gmra.mxu0 %v823
  %v1176 = vpop.f32.mrf.mxu0
  %v1177 = vadd.f32 0.0, %v1176
  %v1178 = vpop.f32.mrf.mxu0
  %v1179 = vadd.f32 0.0, %v1178
  %1180 = vmatmul.bf16.gmra.mxu0 %v826
  %v1181 = vpop.f32.mrf.mxu0
  %v1182 = vadd.f32 0.0, %v1181
  %v1183 = vpop.f32.mrf.mxu0
  %v1184 = vadd.f32 0.0, %v1183
  %1185 = vmatmul.bf16.gmra.mxu0 %v829
  %v1186 = vpop.f32.mrf.mxu0
  %v1187 = vadd.f32 0.0, %v1186
  %v1188 = vpop.f32.mrf.mxu0
  %v1189 = vadd.f32 0.0, %v1188
  %1190 = vmatmul.bf16.gmra.mxu0 %v832
  %v1191 = vpop.f32.mrf.mxu0
  %v1192 = vadd.f32 0.0, %v1191
  %v1193 = vpop.f32.mrf.mxu0
  %v1194 = vadd.f32 0.0, %v1193
  %1195 = vmatmul.bf16.gmra.mxu0 %v835
  %v1196 = vpop.f32.mrf.mxu0
  %v1197 = vadd.f32 0.0, %v1196
  %v1198 = vpop.f32.mrf.mxu0
  %v1199 = vadd.f32 0.0, %v1198
  %1200 = vmatmul.bf16.gmra.mxu0 %v838
  %v1201 = vpop.f32.mrf.mxu0
  %v1202 = vadd.f32 0.0, %v1201
  %v1203 = vpop.f32.mrf.mxu0
  %v1204 = vadd.f32 0.0, %v1203
  %1205 = vmatmul.bf16.gmra.mxu0 %v841
  %v1206 = vpop.f32.mrf.mxu0
  %v1207 = vadd.f32 0.0, %v1206
  %v1208 = vpop.f32.mrf.mxu0
  %v1209 = vadd.f32 0.0, %v1208
  %1210 = vmatmul.bf16.gmra.mxu0 %v844
  %v1211 = vpop.f32.mrf.mxu0
  %v1212 = vadd.f32 0.0, %v1211
  %v1213 = vpop.f32.mrf.mxu0
  %v1214 = vadd.f32 0.0, %v1213
  %1215 = vmatmul.bf16.gmra.mxu0 %v847
  %v1216 = vpop.f32.mrf.mxu0
  %v1217 = vadd.f32 0.0, %v1216
  %v1218 = vpop.f32.mrf.mxu0
  %v1219 = vadd.f32 0.0, %v1218
  %1220 = vmatmul.bf16.gmra.mxu0 %v850
  %v1221 = vpop.f32.mrf.mxu0
  %v1222 = vadd.f32 0.0, %v1221
  %v1223 = vpop.f32.mrf.mxu0
  %v1224 = vadd.f32 0.0, %v1223
  %1225 = vmatmul.bf16.gmra.mxu0 %v853
  %v1226 = vpop.f32.mrf.mxu0
  %v1227 = vadd.f32 0.0, %v1226
  %v1228 = vpop.f32.mrf.mxu0
  %v1229 = vadd.f32 0.0, %v1228
  %1230 = vmatmul.bf16.gmra.mxu0 %v856
  %v1231 = vpop.f32.mrf.mxu0
  %v1232 = vadd.f32 0.0, %v1231
  %v1233 = vpop.f32.mrf.mxu0
  %v1234 = vadd.f32 0.0, %v1233
  %1235 = vmatmul.bf16.gmra.mxu0 %v859
  %v1236 = vpop.f32.mrf.mxu0
  %v1237 = vadd.f32 0.0, %v1236
  %v1238 = vpop.f32.mrf.mxu0
  %v1239 = vadd.f32 0.0, %v1238
  %1240 = vmatmul.bf16.gmra.mxu0 %v862
  %v1241 = vpop.f32.mrf.mxu0
  %v1242 = vadd.f32 0.0, %v1241
  %v1243 = vpop.f32.mrf.mxu0
  %v1244 = vadd.f32 0.0, %v1243
  %1245 = vmatmul.bf16.gmra.mxu0 %v865
  %v1246 = vpop.f32.mrf.mxu0
  %v1247 = vadd.f32 0.0, %v1246
  %v1248 = vpop.f32.mrf.mxu0
  %v1249 = vadd.f32 0.0, %v1248
  %1250 = vmatmul.bf16.gmra.mxu0 %v868
  %v1251 = vpop.f32.mrf.mxu0
  %v1252 = vadd.f32 0.0, %v1251
  %v1253 = vpop.f32.mrf.mxu0
  %v1254 = vadd.f32 0.0, %v1253
  %1255 = vmatmul.bf16.gmra.mxu0 %v871
  %v1256 = vpop.f32.mrf.mxu0
  %v1257 = vadd.f32 0.0, %v1256
  %v1258 = vpop.f32.mrf.mxu0
  %v1259 = vadd.f32 0.0, %v1258
  %1260 = vmatmul.bf16.gmra.mxu0 %v874
  %v1261 = vpop.f32.mrf.mxu0
  %v1262 = vadd.f32 0.0, %v1261
  %v1263 = vpop.f32.mrf.mxu0
  %v1264 = vadd.f32 0.0, %v1263
  %1265 = vmatmul.bf16.gmra.mxu0 %v877
  %v1266 = vpop.f32.mrf.mxu0
  %v1267 = vadd.f32 0.0, %v1266
  %v1268 = vpop.f32.mrf.mxu0
  %v1269 = vadd.f32 0.0, %v1268
  %1270 = vmatmul.bf16.gmra.mxu0 %v880
  %v1271 = vpop.f32.mrf.mxu0
  %v1272 = vadd.f32 0.0, %v1271
  %v1273 = vpop.f32.mrf.mxu0
  %v1274 = vadd.f32 0.0, %v1273
  %1275 = vmatmul.bf16.gmra.mxu0 %v883
  %v1276 = vpop.f32.mrf.mxu0
  %v1277 = vadd.f32 0.0, %v1276
  %v1278 = vpop.f32.mrf.mxu0
  %v1279 = vadd.f32 0.0, %v1278
  %1280 = vmatmul.bf16.gmra.mxu0 %v886
  %v1281 = vpop.f32.mrf.mxu0
  %v1282 = vadd.f32 0.0, %v1281
  %v1283 = vpop.f32.mrf.mxu0
  %v1284 = vadd.f32 0.0, %v1283
  %1285 = vmatmul.bf16.gmra.mxu0 %v889
  %v1286 = vpop.f32.mrf.mxu0
  %v1287 = vadd.f32 0.0, %v1286
  %v1288 = vpop.f32.mrf.mxu0
  %v1289 = vadd.f32 0.0, %v1288
  %1290 = vmatmul.bf16.gmra.mxu0 %v892
  %v1291 = vpop.f32.mrf.mxu0
  %v1292 = vadd.f32 0.0, %v1291
  %v1293 = vpop.f32.mrf.mxu0
  %v1294 = vadd.f32 0.0, %v1293
  %1295 = vmatmul.bf16.gmra.mxu0 %v895
  %v1296 = vpop.f32.mrf.mxu0
  %v1297 = vadd.f32 0.0, %v1296
  %v1298 = vpop.f32.mrf.mxu0
  %v1299 = vadd.f32 0.0, %v1298
  %1300 = vmatmul.bf16.gmra.mxu0 %v898
  %v1301 = vpop.f32.mrf.mxu0
  %v1302 = vadd.f32 0.0, %v1301
  %v1303 = vpop.f32.mrf.mxu0
  %v1304 = vadd.f32 0.0, %v1303
  %1305 = vmatmul.bf16.gmra.mxu0 %v901
  %v1306 = vpop.f32.mrf.mxu0
  %v1307 = vadd.f32 0.0, %v1306
  %v1308 = vpop.f32.mrf.mxu0
  %v1309 = vadd.f32 0.0, %v1308
  %1310 = vmatmul.bf16.gmra.mxu0 %v904
  %v1311 = vpop.f32.mrf.mxu0
  %v1312 = vadd.f32 0.0, %v1311
  %v1313 = vpop.f32.mrf.mxu0
  %v1314 = vadd.f32 0.0, %v1313
  %1315 = vmatmul.bf16.gmra.mxu0 %v907
  %v1316 = vpop.f32.mrf.mxu0
  %v1317 = vadd.f32 0.0, %v1316
  %v1318 = vpop.f32.mrf.mxu0
  %v1319 = vadd.f32 0.0, %v1318
  %1320 = vmatmul.bf16.gmra.mxu0 %v910
  %v1321 = vpop.f32.mrf.mxu0
  %v1322 = vadd.f32 0.0, %v1321
  %v1323 = vpop.f32.mrf.mxu0
  %v1324 = vadd.f32 0.0, %v1323
  %1325 = vmatmul.bf16.gmra.mxu0 %v913
  %v1326 = vpop.f32.mrf.mxu0
  %v1327 = vadd.f32 0.0, %v1326
  %v1328 = vpop.f32.mrf.mxu0
  %v1329 = vadd.f32 0.0, %v1328
  %1330 = vmatmul.bf16.gmra.mxu0 %v916
  %v1331 = vpop.f32.mrf.mxu0
  %v1332 = vadd.f32 0.0, %v1331
  %v1333 = vpop.f32.mrf.mxu0
  %v1334 = vadd.f32 0.0, %v1333
  %1335 = vmatmul.bf16.gmra.mxu0 %v919
  %v1336 = vpop.f32.mrf.mxu0
  %v1337 = vadd.f32 0.0, %v1336
  %v1338 = vpop.f32.mrf.mxu0
  %v1339 = vadd.f32 0.0, %v1338
  %1340 = vmatmul.bf16.gmra.mxu0 %v922
  %v1341 = vpop.f32.mrf.mxu0
  %v1342 = vadd.f32 0.0, %v1341
  %v1343 = vpop.f32.mrf.mxu0
  %v1344 = vadd.f32 0.0, %v1343
  %1345 = vmatmul.bf16.gmra.mxu0 %v925
  %v1346 = vpop.f32.mrf.mxu0
  %v1347 = vadd.f32 0.0, %v1346
  %v1348 = vpop.f32.mrf.mxu0
  %v1349 = vadd.f32 0.0, %v1348
  %1350 = vmatmul.bf16.gmra.mxu0 %v928
  %v1351 = vpop.f32.mrf.mxu0
  %v1352 = vadd.f32 0.0, %v1351
  %v1353 = vpop.f32.mrf.mxu0
  %v1354 = vadd.f32 0.0, %v1353
  %1355 = vmatmul.bf16.gmra.mxu0 %v931
  %v1356 = vpop.f32.mrf.mxu0
  %v1357 = vadd.f32 0.0, %v1356
  %v1358 = vpop.f32.mrf.mxu0
  %v1359 = vadd.f32 0.0, %v1358
  %1360 = vmatmul.bf16.gmra.mxu0 %v934
  %v1361 = vpop.f32.mrf.mxu0
  %v1362 = vadd.f32 0.0, %v1361
  %v1363 = vpop.f32.mrf.mxu0
  %v1364 = vadd.f32 0.0, %v1363
  %1365 = vmatmul.bf16.gmra.mxu0 %v937
  %v1366 = vpop.f32.mrf.mxu0
  %v1367 = vadd.f32 0.0, %v1366
  %v1368 = vpop.f32.mrf.mxu0
  %v1369 = vadd.f32 0.0, %v1368
  %1370 = vmatmul.bf16.gmra.mxu0 %v940
  %v1371 = vpop.f32.mrf.mxu0
  %v1372 = vadd.f32 0.0, %v1371
  %v1373 = vpop.f32.mrf.mxu0
  %v1374 = vadd.f32 0.0, %v1373
  %1375 = vmatmul.bf16.gmra.mxu0 %v943
  %v1376 = vpop.f32.mrf.mxu0
  %v1377 = vadd.f32 0.0, %v1376
  %v1378 = vpop.f32.mrf.mxu0
  %v1379 = vadd.f32 0.0, %v1378
  %1380 = vmatmul.bf16.gmra.mxu0 %v946
  %v1381 = vpop.f32.mrf.mxu0
  %v1382 = vadd.f32 0.0, %v1381
  %v1383 = vpop.f32.mrf.mxu0
  %v1384 = vadd.f32 0.0, %v1383
  %1385 = vmatmul.bf16.gmra.mxu0 %v949
  %v1386 = vpop.f32.mrf.mxu0
  %v1387 = vadd.f32 0.0, %v1386
  %v1388 = vpop.f32.mrf.mxu0
  %v1389 = vadd.f32 0.0, %v1388
  %1390 = vmatmul.bf16.gmra.mxu0 %v952
  %v1391 = vpop.f32.mrf.mxu0
  %v1392 = vadd.f32 0.0, %v1391
  %v1393 = vpop.f32.mrf.mxu0
  %v1394 = vadd.f32 0.0, %v1393
  %1395 = vmatmul.bf16.gmra.mxu0 %v955
  %v1396 = vpop.f32.mrf.mxu0
  %v1397 = vadd.f32 0.0, %v1396
  %v1398 = vpop.f32.mrf.mxu0
  %v1399 = vadd.f32 0.0, %v1398
  %1400 = vmatmul.bf16.gmra.mxu0 %v958
  %v1401 = vpop.f32.mrf.mxu0
  %v1402 = vadd.f32 0.0, %v1401
  %v1403 = vpop.f32.mrf.mxu0
  %v1404 = vadd.f32 0.0, %v1403
  %1405 = vmatmul.bf16.gmra.mxu0 %v961
  %v1406 = vpop.f32.mrf.mxu0
  %v1407 = vadd.f32 0.0, %v1406
  %v1408 = vpop.f32.mrf.mxu0
  %v1409 = vadd.f32 0.0, %v1408
  %1410 = vmatmul.bf16.gmra.mxu0 %v964
  %v1411 = vpop.f32.mrf.mxu0
  %v1412 = vadd.f32 0.0, %v1411
  %v1413 = vpop.f32.mrf.mxu0
  %v1414 = vadd.f32 0.0, %v1413
  %1415 = vmatmul.bf16.gmra.mxu0 %v967
  %v1416 = vpop.f32.mrf.mxu0
  %v1417 = vadd.f32 0.0, %v1416
  %v1418 = vpop.f32.mrf.mxu0
  %v1419 = vadd.f32 0.0, %v1418
  %1420 = vmatmul.bf16.gmra.mxu0 %v970
  %v1421 = vpop.f32.mrf.mxu0
  %v1422 = vadd.f32 0.0, %v1421
  %v1423 = vpop.f32.mrf.mxu0
  %v1424 = vadd.f32 0.0, %v1423
  %1425 = vmatmul.bf16.gmra.mxu0 %v973
  %v1426 = vpop.f32.mrf.mxu0
  %v1427 = vadd.f32 0.0, %v1426
  %v1428 = vpop.f32.mrf.mxu0
  %v1429 = vadd.f32 0.0, %v1428
  %1430 = vmatmul.bf16.gmra.mxu0 %v976
  %v1431 = vpop.f32.mrf.mxu0
  %v1432 = vadd.f32 0.0, %v1431
  %v1433 = vpop.f32.mrf.mxu0
  %v1434 = vadd.f32 0.0, %v1433
  %1435 = vmatmul.bf16.gmra.mxu0 %v979
  %v1436 = vpop.f32.mrf.mxu0
  %v1437 = vadd.f32 0.0, %v1436
  %v1438 = vpop.f32.mrf.mxu0
  %v1439 = vadd.f32 0.0, %v1438
  %1440 = vmatmul.bf16.gmra.mxu0 %v982
  %v1441 = vpop.f32.mrf.mxu0
  %v1442 = vadd.f32 0.0, %v1441
  %v1443 = vpop.f32.mrf.mxu0
  %v1444 = vadd.f32 0.0, %v1443
  %1445 = vmatmul.bf16.gmra.mxu0 %v985
  %v1446 = vpop.f32.mrf.mxu0
  %v1447 = vadd.f32 0.0, %v1446
  %v1448 = vpop.f32.mrf.mxu0
  %v1449 = vadd.f32 0.0, %v1448
  %1450 = vmatmul.bf16.gmra.mxu0 %v988
  %v1451 = vpop.f32.mrf.mxu0
  %v1452 = vadd.f32 0.0, %v1451
  %v1453 = vpop.f32.mrf.mxu0
  %v1454 = vadd.f32 0.0, %v1453
  %1455 = vmatmul.bf16.gmra.mxu0 %v991
  %v1456 = vpop.f32.mrf.mxu0
  %v1457 = vadd.f32 0.0, %v1456
  %v1458 = vpop.f32.mrf.mxu0
  %v1459 = vadd.f32 0.0, %v1458
  %1460 = vmatmul.bf16.gmra.mxu0 %v994
  %v1461 = vpop.f32.mrf.mxu0
  %v1462 = vadd.f32 0.0, %v1461
  %v1463 = vpop.f32.mrf.mxu0
  %v1464 = vadd.f32 0.0, %v1463
  %1465 = vmatmul.bf16.gmra.mxu0 %v997
  %v1466 = vpop.f32.mrf.mxu0
  %v1467 = vadd.f32 0.0, %v1466
  %v1468 = vpop.f32.mrf.mxu0
  %v1469 = vadd.f32 0.0, %v1468
  %1470 = vmatmul.bf16.gmra.mxu0 %v1000
  %v1471 = vpop.f32.mrf.mxu0
  %v1472 = vadd.f32 0.0, %v1471
  %v1473 = vpop.f32.mrf.mxu0
  %v1474 = vadd.f32 0.0, %v1473
  %1475 = vmatmul.bf16.gmra.mxu0 %v1003
  %v1476 = vpop.f32.mrf.mxu0
  %v1477 = vadd.f32 0.0, %v1476
  %v1478 = vpop.f32.mrf.mxu0
  %v1479 = vadd.f32 0.0, %v1478
  %1480 = vmatmul.bf16.gmra.mxu0 %v1006
  %v1481 = vpop.f32.mrf.mxu0
  %v1482 = vadd.f32 0.0, %v1481
  %v1483 = vpop.f32.mrf.mxu0
  %v1484 = vadd.f32 0.0, %v1483
  %1485 = vmatmul.bf16.gmra.mxu0 %v1009
  %v1486 = vpop.f32.mrf.mxu0
  %v1487 = vadd.f32 0.0, %v1486
  %v1488 = vpop.f32.mrf.mxu0
  %v1489 = vadd.f32 0.0, %v1488
  %1490 = vmatmul.bf16.gmra.mxu0 %v1012
  %v1491 = vpop.f32.mrf.mxu0
  %v1492 = vadd.f32 0.0, %v1491
  %v1493 = vpop.f32.mrf.mxu0
  %v1494 = vadd.f32 0.0, %v1493
  %1495 = vmatmul.bf16.gmra.mxu0 %v1015
  %v1496 = vpop.f32.mrf.mxu0
  %v1497 = vadd.f32 0.0, %v1496
  %v1498 = vpop.f32.mrf.mxu0
  %v1499 = vadd.f32 0.0, %v1498
  %1500 = vmatmul.bf16.gmra.mxu0 %v1018
  %v1501 = vpop.f32.mrf.mxu0
  %v1502 = vadd.f32 0.0, %v1501
  %v1503 = vpop.f32.mrf.mxu0
  %v1504 = vadd.f32 0.0, %v1503
  %1505 = vmatmul.bf16.gmra.mxu0 %v1021
  %v1506 = vpop.f32.mrf.mxu0
  %v1507 = vadd.f32 0.0, %v1506
  %v1508 = vpop.f32.mrf.mxu0
  %v1509 = vadd.f32 0.0, %v1508
  %1510 = vmatmul.bf16.gmra.mxu0 %v1024
  %v1511 = vpop.f32.mrf.mxu0
  %v1512 = vadd.f32 0.0, %v1511
  %v1513 = vpop.f32.mrf.mxu0
  %v1514 = vadd.f32 0.0, %v1513
  %1515 = vmatmul.bf16.gmra.mxu0 %v1027
  %v1516 = vpop.f32.mrf.mxu0
  %v1517 = vadd.f32 0.0, %v1516
  %v1518 = vpop.f32.mrf.mxu0
  %v1519 = vadd.f32 0.0, %v1518
  %1520 = vmatmul.bf16.gmra.mxu0 %v1030
  %v1521 = vpop.f32.mrf.mxu0
  %v1522 = vadd.f32 0.0, %v1521
  %v1523 = vpop.f32.mrf.mxu0
  %v1524 = vadd.f32 0.0, %v1523
  %1525 = vmatmul.bf16.gmra.mxu0 %v1033
  %v1526 = vpop.f32.mrf.mxu0
  %v1527 = vadd.f32 0.0, %v1526
  %v1528 = vpop.f32.mrf.mxu0
  %v1529 = vadd.f32 0.0, %v1528
  %1530 = vmatmul.bf16.gmra.mxu0 %v1036
  %v1531 = vpop.f32.mrf.mxu0
  %v1532 = vadd.f32 0.0, %v1531
  %v1533 = vpop.f32.mrf.mxu0
  %v1534 = vadd.f32 0.0, %v1533
  %1535 = vmatmul.bf16.gmra.mxu0 %v1039
  %v1536 = vpop.f32.mrf.mxu0
  %v1537 = vadd.f32 0.0, %v1536
  %v1538 = vpop.f32.mrf.mxu0
  %v1539 = vadd.f32 0.0, %v1538
  %1540 = vmatmul.bf16.gmra.mxu0 %v1042
  %v1541 = vpop.f32.mrf.mxu0
  %v1542 = vadd.f32 0.0, %v1541
  %v1543 = vpop.f32.mrf.mxu0
  %v1544 = vadd.f32 0.0, %v1543
  %1545 = vmatmul.bf16.gmra.mxu0 %v1045
  %v1546 = vpop.f32.mrf.mxu0
  %v1547 = vadd.f32 0.0, %v1546
  %v1548 = vpop.f32.mrf.mxu0
  %v1549 = vadd.f32 0.0, %v1548
  %1550 = vmatmul.bf16.gmra.mxu0 %v1048
  %v1551 = vpop.f32.mrf.mxu0
  %v1552 = vadd.f32 0.0, %v1551
  %v1553 = vpop.f32.mrf.mxu0
  %v1554 = vadd.f32 0.0, %v1553
  %1555 = vmatmul.bf16.gmra.mxu0 %v1051
  %v1556 = vpop.f32.mrf.mxu0
  %v1557 = vadd.f32 0.0, %v1556
  %v1558 = vpop.f32.mrf.mxu0
  %v1559 = vadd.f32 0.0, %v1558
  %1560 = vmatmul.bf16.gmra.mxu0 %v1054
  %v1561 = vpop.f32.mrf.mxu0
  %v1562 = vadd.f32 0.0, %v1561
  %v1563 = vpop.f32.mrf.mxu0
  %v1564 = vadd.f32 0.0, %v1563
  %1565 = vmatmul.bf16.gmra.mxu0 %v1057
  %v1566 = vpop.f32.mrf.mxu0
  %v1567 = vadd.f32 0.0, %v1566
  %v1568 = vpop.f32.mrf.mxu0
  %v1569 = vadd.f32 0.0, %v1568
  %1570 = vmatmul.bf16.gmra.mxu0 %v1060
  %v1571 = vpop.f32.mrf.mxu0
  %v1572 = vadd.f32 0.0, %v1571
  %v1573 = vpop.f32.mrf.mxu0
  %v1574 = vadd.f32 0.0, %v1573
  %1575 = vmatmul.bf16.gmra.mxu0 %v1063
  %v1576 = vpop.f32.mrf.mxu0
  %v1577 = vadd.f32 0.0, %v1576
  %v1578 = vpop.f32.mrf.mxu0
  %v1579 = vadd.f32 0.0, %v1578
  %1580 = vmatmul.bf16.gmra.mxu0 %v1066
  %v1581 = vpop.f32.mrf.mxu0
  %v1582 = vadd.f32 0.0, %v1581
  %v1583 = vpop.f32.mrf.mxu0
  %v1584 = vadd.f32 0.0, %v1583
  %1585 = vmatmul.bf16.gmra.mxu0 %v1069
  %v1586 = vpop.f32.mrf.mxu0
  %v1587 = vadd.f32 0.0, %v1586
  %v1588 = vpop.f32.mrf.mxu0
  %v1589 = vadd.f32 0.0, %v1588
  %1590 = vmatmul.bf16.gmra.mxu0 %v1072
  %v1591 = vpop.f32.mrf.mxu0
  %v1592 = vadd.f32 0.0, %v1591
  %v1593 = vpop.f32.mrf.mxu0
  %v1594 = vadd.f32 0.0, %v1593
  %1595 = vmatmul.bf16.gmra.mxu0 %v1075
  %v1596 = vpop.f32.mrf.mxu0
  %v1597 = vadd.f32 0.0, %v1596
  %v1598 = vpop.f32.mrf.mxu0
  %v1599 = vadd.f32 0.0, %v1598
  %1600 = vmatmul.bf16.gmra.mxu0 %v1078
  %v1601 = vpop.f32.mrf.mxu0
  %v1602 = vadd.f32 0.0, %v1601
  %v1603 = vpop.f32.mrf.mxu0
  %v1604 = vadd.f32 0.0, %v1603
  %1605 = vmatmul.bf16.gmra.mxu0 %v1081
  %v1606 = vpop.f32.mrf.mxu0
  %v1607 = vadd.f32 0.0, %v1606
  %v1608 = vpop.f32.mrf.mxu0
  %v1609 = vadd.f32 0.0, %v1608
  %1610 = vmatmul.bf16.gmra.mxu0 %v1084
  %v1611 = vpop.f32.mrf.mxu0
  %v1612 = vadd.f32 0.0, %v1611
  %v1613 = vpop.f32.mrf.mxu0
  %v1614 = vadd.f32 0.0, %v1613
  %1615 = vmatmul.bf16.gmra.mxu0 %v1087
  %v1616 = vpop.f32.mrf.mxu0
  %v1617 = vadd.f32 0.0, %v1616
  %v1618 = vpop.f32.mrf.mxu0
  %v1619 = vadd.f32 0.0, %v1618
  %1620 = vmatmul.bf16.gmra.mxu0 %v1090
  %v1621 = vpop.f32.mrf.mxu0
  %v1622 = vadd.f32 0.0, %v1621
  %v1623 = vpop.f32.mrf.mxu0
  %v1624 = vadd.f32 0.0, %v1623
  %1625 = vmatmul.bf16.gmra.mxu0 %v1093
  %v1626 = vpop.f32.mrf.mxu0
  %v1627 = vadd.f32 0.0, %v1626
  %v1628 = vpop.f32.mrf.mxu0
  %v1629 = vadd.f32 0.0, %v1628
  %1630 = vdwg.mxu0
  %v1631 = vmax.f32 %v1112, %v1177
  %v1632 = vmax.f32 %v1114, %v1179
  %v1633 = vmax.f32 %v1117, %v1182
  %v1634 = vmax.f32 %v1119, %v1184
  %v1635 = vmax.f32 %v1122, %v1187
  %v1636 = vmax.f32 %v1124, %v1189
  %v1637 = vmax.f32 %v1127, %v1192
  %v1638 = vmax.f32 %v1129, %v1194
  %v1639 = vmax.f32 %v1132, %v1197
  %v1640 = vmax.f32 %v1134, %v1199
  %v1641 = vmax.f32 %v1137, %v1202
  %v1642 = vmax.f32 %v1139, %v1204
  %v1643 = vmax.f32 %v1142, %v1207
  %v1644 = vmax.f32 %v1144, %v1209
  %v1645 = vmax.f32 %v1147, %v1212
  %v1646 = vmax.f32 %v1149, %v1214
  %v1647 = vmax.f32 %v1152, %v1217
  %v1648 = vmax.f32 %v1154, %v1219
  %v1649 = vmax.f32 %v1157, %v1222
  %v1650 = vmax.f32 %v1159, %v1224
  %v1651 = vmax.f32 %v1162, %v1227
  %v1652 = vmax.f32 %v1164, %v1229
  %v1653 = vmax.f32 %v1167, %v1232
  %v1654 = vmax.f32 %v1169, %v1234
  %v1655 = vmax.f32 %v1172, %v1237
  %v1656 = vmax.f32 %v1174, %v1239
  %v1657 = vmax.f32 %v1372, %v1437
  %v1658 = vmax.f32 %v1374, %v1439
  %v1659 = vmax.f32 %v1377, %v1442
  %v1660 = vmax.f32 %v1379, %v1444
  %v1661 = vmax.f32 %v1382, %v1447
  %v1662 = vmax.f32 %v1384, %v1449
  %v1663 = vmax.f32 %v1387, %v1452
  %v1664 = vmax.f32 %v1389, %v1454
  %v1665 = vmax.f32 %v1392, %v1457
  %v1666 = vmax.f32 %v1394, %v1459
  %v1667 = vmax.f32 %v1397, %v1462
  %v1668 = vmax.f32 %v1399, %v1464
  %v1669 = vmax.f32 %v1402, %v1467
  %v1670 = vmax.f32 %v1404, %v1469
  %v1671 = vmax.f32 %v1407, %v1472
  %v1672 = vmax.f32 %v1409, %v1474
  %v1673 = vmax.f32 %v1412, %v1477
  %v1674 = vmax.f32 %v1414, %v1479
  %v1675 = vmax.f32 %v1417, %v1482
  %v1676 = vmax.f32 %v1419, %v1484
  %v1677 = vmax.f32 %v1422, %v1487
  %v1678 = vmax.f32 %v1424, %v1489
  %v1679 = vmax.f32 %v1427, %v1492
  %v1680 = vmax.f32 %v1429, %v1494
  %v1681 = vmax.f32 %v1432, %v1497
  %v1682 = vmax.f32 %v1434, %v1499
  %v1683 = vmax.f32 %v1242, %v1307
  %v1684 = vmax.f32 %v1244, %v1309
  %v1685 = vmax.f32 %v1247, %v1312
  %v1686 = vmax.f32 %v1249, %v1314
  %v1687 = vmax.f32 %v1252, %v1317
  %v1688 = vmax.f32 %v1254, %v1319
  %v1689 = vmax.f32 %v1257, %v1322
  %v1690 = vmax.f32 %v1259, %v1324
  %v1691 = vmax.f32 %v1262, %v1327
  %v1692 = vmax.f32 %v1264, %v1329
  %v1693 = vmax.f32 %v1267, %v1332
  %v1694 = vmax.f32 %v1269, %v1334
  %v1695 = vmax.f32 %v1272, %v1337
  %v1696 = vmax.f32 %v1274, %v1339
  %v1697 = vmax.f32 %v1277, %v1342
  %v1698 = vmax.f32 %v1279, %v1344
  %v1699 = vmax.f32 %v1282, %v1347
  %v1700 = vmax.f32 %v1284, %v1349
  %v1701 = vmax.f32 %v1287, %v1352
  %v1702 = vmax.f32 %v1289, %v1354
  %v1703 = vmax.f32 %v1292, %v1357
  %v1704 = vmax.f32 %v1294, %v1359
  %v1705 = vmax.f32 %v1297, %v1362
  %v1706 = vmax.f32 %v1299, %v1364
  %v1707 = vmax.f32 %v1302, %v1367
  %v1708 = vmax.f32 %v1304, %v1369
  %v1709 = vmax.f32 %v1502, %v1567
  %v1710 = vmax.f32 %v1504, %v1569
  %v1711 = vmax.f32 %v1507, %v1572
  %v1712 = vmax.f32 %v1509, %v1574
  %v1713 = vmax.f32 %v1512, %v1577
  %v1714 = vmax.f32 %v1514, %v1579
  %v1715 = vmax.f32 %v1517, %v1582
  %v1716 = vmax.f32 %v1519, %v1584
  %v1717 = vmax.f32 %v1522, %v1587
  %v1718 = vmax.f32 %v1524, %v1589
  %v1719 = vmax.f32 %v1527, %v1592
  %v1720 = vmax.f32 %v1529, %v1594
  %v1721 = vmax.f32 %v1532, %v1597
  %v1722 = vmax.f32 %v1534, %v1599
  %v1723 = vmax.f32 %v1537, %v1602
  %v1724 = vmax.f32 %v1539, %v1604
  %v1725 = vmax.f32 %v1542, %v1607
  %v1726 = vmax.f32 %v1544, %v1609
  %v1727 = vmax.f32 %v1547, %v1612
  %v1728 = vmax.f32 %v1549, %v1614
  %v1729 = vmax.f32 %v1552, %v1617
  %v1730 = vmax.f32 %v1554, %v1619
  %v1731 = vmax.f32 %v1557, %v1622
  %v1732 = vmax.f32 %v1559, %v1624
  %v1733 = vmax.f32 %v1562, %v1627
  %v1734 = vmax.f32 %v1564, %v1629
  %v1735 = vmax.f32 %v1631, %v1683
  %v1736 = vmax.f32 %v1632, %v1684
  %v1737 = vmax.f32 %v1633, %v1685
  %v1738 = vmax.f32 %v1634, %v1686
  %v1739 = vmax.f32 %v1635, %v1687
  %v1740 = vmax.f32 %v1636, %v1688
  %v1741 = vmax.f32 %v1637, %v1689
  %v1742 = vmax.f32 %v1638, %v1690
  %v1743 = vmax.f32 %v1639, %v1691
  %v1744 = vmax.f32 %v1640, %v1692
  %v1745 = vmax.f32 %v1641, %v1693
  %v1746 = vmax.f32 %v1642, %v1694
  %v1747 = vmax.f32 %v1643, %v1695
  %v1748 = vmax.f32 %v1644, %v1696
  %v1749 = vmax.f32 %v1645, %v1697
  %v1750 = vmax.f32 %v1646, %v1698
  %v1751 = vmax.f32 %v1647, %v1699
  %v1752 = vmax.f32 %v1648, %v1700
  %v1753 = vmax.f32 %v1649, %v1701
  %v1754 = vmax.f32 %v1650, %v1702
  %v1755 = vmax.f32 %v1651, %v1703
  %v1756 = vmax.f32 %v1652, %v1704
  %v1757 = vmax.f32 %v1653, %v1705
  %v1758 = vmax.f32 %v1654, %v1706
  %v1759 = vmax.f32 %v1655, %v1707
  %v1760 = vmax.f32 %v1656, %v1708
  %v1761 = vmax.f32 %v1657, %v1709
  %v1762 = vmax.f32 %v1658, %v1710
  %v1763 = vmax.f32 %v1659, %v1711
  %v1764 = vmax.f32 %v1660, %v1712
  %v1765 = vmax.f32 %v1661, %v1713
  %v1766 = vmax.f32 %v1662, %v1714
  %v1767 = vmax.f32 %v1663, %v1715
  %v1768 = vmax.f32 %v1664, %v1716
  %v1769 = vmax.f32 %v1665, %v1717
  %v1770 = vmax.f32 %v1666, %v1718
  %v1771 = vmax.f32 %v1667, %v1719
  %v1772 = vmax.f32 %v1668, %v1720
  %v1773 = vmax.f32 %v1669, %v1721
  %v1774 = vmax.f32 %v1670, %v1722
  %v1775 = vmax.f32 %v1671, %v1723
  %v1776 = vmax.f32 %v1672, %v1724
  %v1777 = vmax.f32 %v1673, %v1725
  %v1778 = vmax.f32 %v1674, %v1726
  %v1779 = vmax.f32 %v1675, %v1727
  %v1780 = vmax.f32 %v1676, %v1728
  %v1781 = vmax.f32 %v1677, %v1729
  %v1782 = vmax.f32 %v1678, %v1730
  %v1783 = vmax.f32 %v1679, %v1731
  %v1784 = vmax.f32 %v1680, %v1732
  %v1785 = vmax.f32 %v1681, %v1733
  %v1786 = vmax.f32 %v1682, %v1734
  %v1787 = vld [vmem:[%s2] sm:$0x1]
  %v1789 = vperm.slane %v1787, 0
  %v1791 = vadd.f32 %v1735, %v1789
  %v1792 = vadd.f32 %v1736, %v1789
  %v1793 = vadd.f32 %v1737, %v1789
  %v1794 = vadd.f32 %v1738, %v1789
  %v1795 = vadd.f32 %v1739, %v1789
  %v1796 = vadd.f32 %v1740, %v1789
  %v1797 = vadd.f32 %v1741, %v1789
  %v1798 = vadd.f32 %v1742, %v1789
  %v1799 = vadd.f32 %v1743, %v1789
  %v1800 = vadd.f32 %v1744, %v1789
  %v1801 = vadd.f32 %v1745, %v1789
  %v1802 = vadd.f32 %v1746, %v1789
  %v1803 = vadd.f32 %v1747, %v1789
  %v1804 = vadd.f32 %v1748, %v1789
  %v1805 = vadd.f32 %v1749, %v1789
  %v1806 = vadd.f32 %v1750, %v1789
  %v1807 = vadd.f32 %v1751, %v1789
  %v1808 = vadd.f32 %v1752, %v1789
  %v1809 = vadd.f32 %v1753, %v1789
  %v1810 = vadd.f32 %v1754, %v1789
  %v1811 = vadd.f32 %v1755, %v1789
  %v1812 = vadd.f32 %v1756, %v1789
  %v1813 = vadd.f32 %v1757, %v1789
  %v1814 = vadd.f32 %v1758, %v1789
  %v1815 = vadd.f32 %v1759, %v1789
  %v1816 = vadd.f32 %v1760, %v1789
  %v1817 = vadd.f32 %v1761, %v1789
  %v1818 = vadd.f32 %v1762, %v1789
  %v1819 = vadd.f32 %v1763, %v1789
  %v1820 = vadd.f32 %v1764, %v1789
  %v1821 = vadd.f32 %v1765, %v1789
  %v1822 = vadd.f32 %v1766, %v1789
  %v1823 = vadd.f32 %v1767, %v1789
  %v1824 = vadd.f32 %v1768, %v1789
  %v1825 = vadd.f32 %v1769, %v1789
  %v1826 = vadd.f32 %v1770, %v1789
  %v1827 = vadd.f32 %v1771, %v1789
  %v1828 = vadd.f32 %v1772, %v1789
  %v1829 = vadd.f32 %v1773, %v1789
  %v1830 = vadd.f32 %v1774, %v1789
  %v1831 = vadd.f32 %v1775, %v1789
  %v1832 = vadd.f32 %v1776, %v1789
  %v1833 = vadd.f32 %v1777, %v1789
  %v1834 = vadd.f32 %v1778, %v1789
  %v1835 = vadd.f32 %v1779, %v1789
  %v1836 = vadd.f32 %v1780, %v1789
  %v1837 = vadd.f32 %v1781, %v1789
  %v1838 = vadd.f32 %v1782, %v1789
  %v1839 = vadd.f32 %v1783, %v1789
  %v1840 = vadd.f32 %v1784, %v1789
  %v1841 = vadd.f32 %v1785, %v1789
  %v1842 = vadd.f32 %v1786, %v1789
  %v1843 = vtanh.pop %v1791
  %v1844 = vtanh.pop %v1792
  %v1845 = vtanh.pop %v1793
  %v1846 = vtanh.pop %v1794
  %v1847 = vtanh.pop %v1795
  %v1848 = vtanh.pop %v1796
  %v1849 = vtanh.pop %v1797
  %v1850 = vtanh.pop %v1798
  %v1851 = vtanh.pop %v1799
  %v1852 = vtanh.pop %v1800
  %v1853 = vtanh.pop %v1801
  %v1854 = vtanh.pop %v1802
  %v1855 = vtanh.pop %v1803
  %v1856 = vtanh.pop %v1804
  %v1857 = vtanh.pop %v1805
  %v1858 = vtanh.pop %v1806
  %v1859 = vtanh.pop %v1807
  %v1860 = vtanh.pop %v1808
  %v1861 = vtanh.pop %v1809
  %v1862 = vtanh.pop %v1810
  %v1863 = vtanh.pop %v1811
  %v1864 = vtanh.pop %v1812
  %v1865 = vtanh.pop %v1813
  %v1866 = vtanh.pop %v1814
  %v1867 = vtanh.pop %v1815
  %v1868 = vtanh.pop %v1816
  %v1869 = vtanh.pop %v1817
  %v1870 = vtanh.pop %v1818
  %v1871 = vtanh.pop %v1819
  %v1872 = vtanh.pop %v1820
  %v1873 = vtanh.pop %v1821
  %v1874 = vtanh.pop %v1822
  %v1875 = vtanh.pop %v1823
  %v1876 = vtanh.pop %v1824
  %v1877 = vtanh.pop %v1825
  %v1878 = vtanh.pop %v1826
  %v1879 = vtanh.pop %v1827
  %v1880 = vtanh.pop %v1828
  %v1881 = vtanh.pop %v1829
  %v1882 = vtanh.pop %v1830
  %v1883 = vtanh.pop %v1831
  %v1884 = vtanh.pop %v1832
  %v1885 = vtanh.pop %v1833
  %v1886 = vtanh.pop %v1834
  %v1887 = vtanh.pop %v1835
  %v1888 = vtanh.pop %v1836
  %v1889 = vtanh.pop %v1837
  %v1890 = vtanh.pop %v1838
  %v1891 = vtanh.pop %v1839
  %v1892 = vtanh.pop %v1840
  %v1893 = vtanh.pop %v1841
  %v1894 = vtanh.pop %v1842
  %v1895 = vpack.c.bf16 %v1843, %v1843
  %v1896 = vpack.c.bf16 %v1844, %v1844
  %v1897 = vpack.c.bf16 %v1845, %v1845
  %v1898 = vpack.c.bf16 %v1846, %v1846
  %v1899 = vpack.c.bf16 %v1847, %v1847
  %v1900 = vpack.c.bf16 %v1848, %v1848
  %v1901 = vpack.c.bf16 %v1849, %v1849
  %v1902 = vpack.c.bf16 %v1850, %v1850
  %v1903 = vpack.c.bf16 %v1851, %v1851
  %v1904 = vpack.c.bf16 %v1852, %v1852
  %v1905 = vpack.c.bf16 %v1853, %v1853
  %v1906 = vpack.c.bf16 %v1854, %v1854
  %v1907 = vpack.c.bf16 %v1855, %v1855
  %v1908 = vpack.c.bf16 %v1856, %v1856
  %v1909 = vpack.c.bf16 %v1857, %v1857
  %v1910 = vpack.c.bf16 %v1858, %v1858
  %v1911 = vpack.c.bf16 %v1859, %v1859
  %v1912 = vpack.c.bf16 %v1860, %v1860
  %v1913 = vpack.c.bf16 %v1861, %v1861
  %v1914 = vpack.c.bf16 %v1862, %v1862
  %v1915 = vpack.c.bf16 %v1863, %v1863
  %v1916 = vpack.c.bf16 %v1864, %v1864
  %v1917 = vpack.c.bf16 %v1865, %v1865
  %v1918 = vpack.c.bf16 %v1866, %v1866
  %v1919 = vpack.c.bf16 %v1867, %v1867
  %v1920 = vpack.c.bf16 %v1868, %v1868
  %v1921 = vpack.c.bf16 %v1869, %v1869
  %v1922 = vpack.c.bf16 %v1870, %v1870
  %v1923 = vpack.c.bf16 %v1871, %v1871
  %v1924 = vpack.c.bf16 %v1872, %v1872
  %v1925 = vpack.c.bf16 %v1873, %v1873
  %v1926 = vpack.c.bf16 %v1874, %v1874
  %v1927 = vpack.c.bf16 %v1875, %v1875
  %v1928 = vpack.c.bf16 %v1876, %v1876
  %v1929 = vpack.c.bf16 %v1877, %v1877
  %v1930 = vpack.c.bf16 %v1878, %v1878
  %v1931 = vpack.c.bf16 %v1879, %v1879
  %v1932 = vpack.c.bf16 %v1880, %v1880
  %v1933 = vpack.c.bf16 %v1881, %v1881
  %v1934 = vpack.c.bf16 %v1882, %v1882
  %v1935 = vpack.c.bf16 %v1883, %v1883
  %v1936 = vpack.c.bf16 %v1884, %v1884
  %v1937 = vpack.c.bf16 %v1885, %v1885
  %v1938 = vpack.c.bf16 %v1886, %v1886
  %v1939 = vpack.c.bf16 %v1887, %v1887
  %v1940 = vpack.c.bf16 %v1888, %v1888
  %v1941 = vpack.c.bf16 %v1889, %v1889
  %v1942 = vpack.c.bf16 %v1890, %v1890
  %v1943 = vpack.c.bf16 %v1891, %v1891
  %v1944 = vpack.c.bf16 %v1892, %v1892
  %v1945 = vpack.c.bf16 %v1893, %v1893
  %v1946 = vpack.c.bf16 %v1894, %v1894
  %1947 = vst [vmem:[%s3] sm:$0xf] %v1895
  %1948 = vst [vmem:[%s3 + $0x4] sm:$0xf] %v1896
  %1949 = vst [vmem:[%s3 + $0x8] sm:$0xf] %v1897
  %1950 = vst [vmem:[%s3 + $0xc] sm:$0xf] %v1898
  %1951 = vst [vmem:[%s3 + $0x10] sm:$0xf] %v1899
  %1952 = vst [vmem:[%s3 + $0x14] sm:$0xf] %v1900
  %1953 = vst [vmem:[%s3 + $0x18] sm:$0xf] %v1901
  %1954 = vst [vmem:[%s3 + $0x1c] sm:$0xf] %v1902
  %1955 = vst [vmem:[%s3 + $0x20] sm:$0xf] %v1903
  %1956 = vst [vmem:[%s3 + $0x24] sm:$0xf] %v1904
  %1957 = vst [vmem:[%s3 + $0x28] sm:$0xf] %v1905
  %1958 = vst [vmem:[%s3 + $0x2c] sm:$0xf] %v1906
  %1959 = vst [vmem:[%s3 + $0x30] sm:$0xf] %v1907
  %1960 = vst [vmem:[%s3 + $0x34] sm:$0xf] %v1908
  %1961 = vst [vmem:[%s3 + $0x38] sm:$0xf] %v1909
  %1962 = vst [vmem:[%s3 + $0x3c] sm:$0xf] %v1910
  %1963 = vst [vmem:[%s3 + $0x40] sm:$0xf] %v1911
  %1964 = vst [vmem:[%s3 + $0x44] sm:$0xf] %v1912
  %1965 = vst [vmem:[%s3 + $0x48] sm:$0xf] %v1913
  %1966 = vst [vmem:[%s3 + $0x4c] sm:$0xf] %v1914
  %1967 = vst [vmem:[%s3 + $0x50] sm:$0xf] %v1915
  %1968 = vst [vmem:[%s3 + $0x54] sm:$0xf] %v1916
  %1969 = vst [vmem:[%s3 + $0x58] sm:$0xf] %v1917
  %1970 = vst [vmem:[%s3 + $0x5c] sm:$0xf] %v1918
  %1971 = vst [vmem:[%s3 + $0x60] sm:$0xf] %v1919
  %1972 = vst [vmem:[%s3 + $0x64] sm:$0xf] %v1920
  %1973 = vst [vmem:[%s3 + $0x68] sm:$0xf] %v1921
  %1974 = vst [vmem:[%s3 + $0x6c] sm:$0xf] %v1922
  %1975 = vst [vmem:[%s3 + $0x70] sm:$0xf] %v1923
  %1976 = vst [vmem:[%s3 + $0x74] sm:$0xf] %v1924
  %1977 = vst [vmem:[%s3 + $0x78] sm:$0xf] %v1925
  %1978 = vst [vmem:[%s3 + $0x7c] sm:$0xf] %v1926
  %1979 = vst [vmem:[%s3 + $0x80] sm:$0xf] %v1927
  %1980 = vst [vmem:[%s3 + $0x84] sm:$0xf] %v1928
  %1981 = vst [vmem:[%s3 + $0x88] sm:$0xf] %v1929
  %1982 = vst [vmem:[%s3 + $0x8c] sm:$0xf] %v1930
  %1983 = vst [vmem:[%s3 + $0x90] sm:$0xf] %v1931
  %1984 = vst [vmem:[%s3 + $0x94] sm:$0xf] %v1932
  %1985 = vst [vmem:[%s3 + $0x98] sm:$0xf] %v1933
  %1986 = vst [vmem:[%s3 + $0x9c] sm:$0xf] %v1934
  %1987 = vst [vmem:[%s3 + $0xa0] sm:$0xf] %v1935
  %1988 = vst [vmem:[%s3 + $0xa4] sm:$0xf] %v1936
  %1989 = vst [vmem:[%s3 + $0xa8] sm:$0xf] %v1937
  %1990 = vst [vmem:[%s3 + $0xac] sm:$0xf] %v1938
  %1991 = vst [vmem:[%s3 + $0xb0] sm:$0xf] %v1939
  %1992 = vst [vmem:[%s3 + $0xb4] sm:$0xf] %v1940
  %1993 = vst [vmem:[%s3 + $0xb8] sm:$0xf] %v1941
  %1994 = vst [vmem:[%s3 + $0xbc] sm:$0xf] %v1942
  %1995 = vst [vmem:[%s3 + $0xc0] sm:$0xf] %v1943
  %1996 = vst [vmem:[%s3 + $0xc4] sm:$0xf] %v1944
  %1997 = vst [vmem:[%s3 + $0xc8] sm:$0xf] %v1945
  %1998 = vst [vmem:[%s3 + $0xcc] sm:$0xf] %v1946
  // Predicated region
  $region14: #{lenet5_forward.3} parent=0 // pred_check
    _
  $region15: #{lenet5_forward.3} parent=0 // pred_check_branch
    %2000 = sbr.rel (0) target = $region17
  $region16: #{lenet5_forward.3} parent=0 // pred_region
    _
  $region17: #{lenet5_forward.3} parent=0 // pred_fallthru
    _
  // Predicated region
  $region18: #{lenet5_forward.3} parent=0 // pred_check
    _
  $region19: #{lenet5_forward.3} parent=0 // pred_check_branch
    %2002 = sbr.rel (0) target = $region21
  $region20: #{lenet5_forward.3} parent=0 // pred_region
    _
  $region21: #{lenet5_forward.3} parent=0 // pred_fallthru
    _

// kernel: lenet5_forward.4
$region0: #{lenet5_forward.4}
  #allocation0 [shape = 'u32[]', space=smem, size = 0x4, offset = 0x4, fixed_abs, tag = 'smem constant byte address 0x4 - core index']
  #allocation1 [shape = 'u32[72,128]{1,0:T(1,128)}', space=vmem, size = 0x9000, scoped, tag = 'internal scratch']
  %s0 = inlined_call_operand.vmem [shape: bf16[2,4,32,450], index: 0, kind: input, shape index: {}]
  %s1 = inlined_call_operand.vmem [shape: bf16[450,128], index: 1, kind: input, shape index: {}]
  %s2 = inlined_call_operand.vmem [shape: f32[1,128], index: 2, kind: input, shape index: {}]
  %s3 = inlined_call_operand.vmem [shape: bf16[2,32,128], index: 3, kind: output, shape index: {}]
  %s4 = sld [smem:[#allocation0]]
  $region22: #{lenet5_forward.4} parent=0
    _
  %s6 = ssub.s32 1, %s4
  %s7 = scalar_select 0, %s6, %s4
  // Predicated region
  $region2: #{lenet5_forward.4} parent=0 // pred_check
    _
  $region3: #{lenet5_forward.4} parent=0 // pred_check_branch
    %9 = sbr.rel (0) target = $region5
  $region4: #{lenet5_forward.4} parent=0 // pred_region
    _
  $region5: #{lenet5_forward.4} parent=0 // pred_fallthru
    _
  // Predicated region
  $region6: #{lenet5_forward.4} parent=0 // pred_check
    _
  $region7: #{lenet5_forward.4} parent=0 // pred_check_branch
    %11 = sbr.rel (0) target = $region9
  $region8: #{lenet5_forward.4} parent=0 // pred_region
    _
  $region9: #{lenet5_forward.4} parent=0 // pred_fallthru
    _
  // Predicated region
  $region10: #{lenet5_forward.4} parent=0 // pred_check
    _
  $region11: #{lenet5_forward.4} parent=0 // pred_check_branch
    %13 = sbr.rel (0) target = $region13
  $region12: #{lenet5_forward.4} parent=0 // pred_region
    _
  $region13: #{lenet5_forward.4} parent=0 // pred_fallthru
    _
  %v15 = vld [vmem:[%s0] sm:$0xff]
  %v16 = vld [vmem:[%s0 + $0x8] sm:$0xff]
  %v17 = vld [vmem:[%s0 + $0x10] sm:$0xff]
  %v18 = vld [vmem:[%s0 + $0x18] sm:$0xff]
  %v19 = vld [vmem:[%s0 + $0x20] sm:$0xff]
  %v20 = vld [vmem:[%s0 + $0x28] sm:$0xff]
  %v21 = vld [vmem:[%s0 + $0x30] sm:$0xff]
  %v22 = vld [vmem:[%s0 + $0x38] sm:$0xff]
  %v23 = vld [vmem:[%s0 + $0x40] sm:$0xff]
  %v24 = vld [vmem:[%s0 + $0x48] sm:$0xff]
  %v25 = vld [vmem:[%s0 + $0x50] sm:$0xff]
  %v26 = vld [vmem:[%s0 + $0x58] sm:$0xff]
  %v27 = vld [vmem:[%s0 + $0x60] sm:$0xff]
  %v28 = vld [vmem:[%s0 + $0x68] sm:$0xff]
  %v29 = vld [vmem:[%s0 + $0x70] sm:$0xff]
  %v30 = vld [vmem:[%s0 + $0x78] sm:$0xff]
  %v31 = vld [vmem:[%s0 + $0x80] sm:$0xff]
  %v32 = vld [vmem:[%s0 + $0x88] sm:$0xff]
  %v33 = vld [vmem:[%s0 + $0x90] sm:$0xff]
  %v34 = vld [vmem:[%s0 + $0x98] sm:$0xff]
  %v35 = vld [vmem:[%s0 + $0xa0] sm:$0xff]
  %v36 = vld [vmem:[%s0 + $0xa8] sm:$0xff]
  %v37 = vld [vmem:[%s0 + $0xb0] sm:$0xff]
  %v38 = vld [vmem:[%s0 + $0xb8] sm:$0xff]
  %v39 = vld [vmem:[%s0 + $0xc0] sm:$0xff]
  %v40 = vld [vmem:[%s0 + $0xc8] sm:$0xff]
  %v41 = vld [vmem:[%s0 + $0xd0] sm:$0xff]
  %v42 = vld [vmem:[%s0 + $0xd8] sm:$0xff]
  %v43 = vld [vmem:[%s0 + $0xe0] sm:$0xff]
  %v44 = vld [vmem:[%s0 + $0xe8] sm:$0xff]
  %v45 = vld [vmem:[%s0 + $0xf0] sm:$0xff]
  %v46 = vld [vmem:[%s0 + $0xf8] sm:$0xff]
  %v47 = vld [vmem:[%s0 + $0x100] sm:$0xff]
  %v48 = vld [vmem:[%s0 + $0x108] sm:$0xff]
  %v49 = vld [vmem:[%s0 + $0x110] sm:$0xff]
  %v50 = vld [vmem:[%s0 + $0x118] sm:$0xff]
  %v51 = vld [vmem:[%s0 + $0x120] sm:$0xff]
  %v52 = vld [vmem:[%s0 + $0x128] sm:$0xff]
  %v53 = vld [vmem:[%s0 + $0x130] sm:$0xff]
  %v54 = vld [vmem:[%s0 + $0x138] sm:$0xff]
  %v55 = vld [vmem:[%s0 + $0x140] sm:$0xff]
  %v56 = vld [vmem:[%s0 + $0x148] sm:$0xff]
  %v57 = vld [vmem:[%s0 + $0x150] sm:$0xff]
  %v58 = vld [vmem:[%s0 + $0x158] sm:$0xff]
  %v59 = vld [vmem:[%s0 + $0x160] sm:$0xff]
  %v60 = vld [vmem:[%s0 + $0x168] sm:$0xff]
  %v61 = vld [vmem:[%s0 + $0x170] sm:$0xff]
  %v62 = vld [vmem:[%s0 + $0x178] sm:$0xff]
  %v63 = vld [vmem:[%s0 + $0x180] sm:$0xff]
  %v64 = vld [vmem:[%s0 + $0x188] sm:$0xff]
  %v65 = vld [vmem:[%s0 + $0x190] sm:$0xff]
  %v66 = vld [vmem:[%s0 + $0x198] sm:$0xff]
  %v67 = vld [vmem:[%s0 + $0x1a0] sm:$0xff]
  %v68 = vld [vmem:[%s0 + $0x1a8] sm:$0xff]
  %v69 = vld [vmem:[%s0 + $0x1b0] sm:$0xff]
  %v70 = vld [vmem:[%s0 + $0x1b8] sm:$0xff]
  %v71 = vld [vmem:[%s0 + $0x1c0] sm:$0xff]
  %v72 = vld [vmem:[%s0 + $0x1c8] sm:$0xff]
  %v73 = vld [vmem:[%s0 + $0x1d0] sm:$0xff]
  %v74 = vld [vmem:[%s0 + $0x1d8] sm:$0xff]
  %v75 = vld [vmem:[%s0 + $0x1e0] sm:$0xff]
  %v76 = vld [vmem:[%s0 + $0x1e8] sm:$0xff]
  %v77 = vld [vmem:[%s0 + $0x1f0] sm:$0xff]
  %v78 = vld [vmem:[%s0 + $0x1f8] sm:$0xff]
  %v79 = vld [vmem:[%s1] sm:$0xf]
  %v80 = vld [vmem:[%s1 + $0x4] sm:$0xf]
  %v81 = vld [vmem:[%s1 + $0x8] sm:$0xf]
  %v82 = vld [vmem:[%s1 + $0xc] sm:$0xf]
  %v83 = vld [vmem:[%s1 + $0x10] sm:$0xf]
  %v84 = vld [vmem:[%s1 + $0x14] sm:$0xf]
  %v85 = vld [vmem:[%s1 + $0x18] sm:$0xf]
  %v86 = vld [vmem:[%s1 + $0x1c] sm:$0xf]
  %v87 = vld [vmem:[%s1 + $0x20] sm:$0xf]
  %v88 = vld [vmem:[%s1 + $0x24] sm:$0xf]
  %v89 = vld [vmem:[%s1 + $0x28] sm:$0xf]
  %v90 = vld [vmem:[%s1 + $0x2c] sm:$0xf]
  %v91 = vld [vmem:[%s1 + $0x30] sm:$0xf]
  %v92 = vld [vmem:[%s1 + $0x34] sm:$0xf]
  %v93 = vld [vmem:[%s1 + $0x38] sm:$0xf]
  %v94 = vld [vmem:[%s1 + $0x3c] sm:$0xf]
  %v95 = vld [vmem:[%s1 + $0x40] sm:$0xf]
  %v96 = vld [vmem:[%s1 + $0x44] sm:$0xf]
  %v97 = vld [vmem:[%s1 + $0x48] sm:$0xf]
  %v98 = vld [vmem:[%s1 + $0x4c] sm:$0xf]
  %v99 = vld [vmem:[%s1 + $0x50] sm:$0xf]
  %v100 = vld [vmem:[%s1 + $0x54] sm:$0xf]
  %v101 = vld [vmem:[%s1 + $0x58] sm:$0xf]
  %v102 = vld [vmem:[%s1 + $0x5c] sm:$0xf]
  %v103 = vld [vmem:[%s1 + $0x60] sm:$0xf]
  %v104 = vld [vmem:[%s1 + $0x64] sm:$0xf]
  %v105 = vld [vmem:[%s1 + $0x68] sm:$0xf]
  %v106 = vld [vmem:[%s1 + $0x6c] sm:$0xf]
  %v107 = vld [vmem:[%s1 + $0x70] sm:$0xf]
  %v108 = vld [vmem:[%s1 + $0x74] sm:$0xf]
  %v109 = vld [vmem:[%s1 + $0x78] sm:$0xf]
  %v110 = vld [vmem:[%s1 + $0x7c] sm:$0xf]
  %v111 = vld [vmem:[%s1 + $0x80] sm:$0xf]
  %v112 = vld [vmem:[%s1 + $0x84] sm:$0xf]
  %v113 = vld [vmem:[%s1 + $0x88] sm:$0xf]
  %v114 = vld [vmem:[%s1 + $0x8c] sm:$0xf]
  %v115 = vld [vmem:[%s1 + $0x90] sm:$0xf]
  %v116 = vld [vmem:[%s1 + $0x94] sm:$0xf]
  %v117 = vld [vmem:[%s1 + $0x98] sm:$0xf]
  %v118 = vld [vmem:[%s1 + $0x9c] sm:$0xf]
  %v119 = vld [vmem:[%s1 + $0xa0] sm:$0xf]
  %v120 = vld [vmem:[%s1 + $0xa4] sm:$0xf]
  %v121 = vld [vmem:[%s1 + $0xa8] sm:$0xf]
  %v122 = vld [vmem:[%s1 + $0xac] sm:$0xf]
  %v123 = vld [vmem:[%s1 + $0xb0] sm:$0xf]
  %v124 = vld [vmem:[%s1 + $0xb4] sm:$0xf]
  %v125 = vld [vmem:[%s1 + $0xb8] sm:$0xf]
  %v126 = vld [vmem:[%s1 + $0xbc] sm:$0xf]
  %v127 = vld [vmem:[%s1 + $0xc0] sm:$0xf]
  %v128 = vld [vmem:[%s1 + $0xc4] sm:$0xf]
  %v129 = vld [vmem:[%s1 + $0xc8] sm:$0xf]
  %v130 = vld [vmem:[%s1 + $0xcc] sm:$0xf]
  %v131 = vld [vmem:[%s1 + $0xd0] sm:$0xf]
  %v132 = vld [vmem:[%s1 + $0xd4] sm:$0xf]
  %v133 = vld [vmem:[%s1 + $0xd8] sm:$0xf]
  %v134 = vld [vmem:[%s1 + $0xdc] sm:$0xf]
  %v135 = vld [vmem:[%s1 + $0xe0] sm:$0x1]
  %v200 = vunpack.c.l.b16 %v15
  %v201 = vunpack.c.h.b16 %v15
  %v202 = vunpack.c.l.b16 %v16
  %v203 = vunpack.c.h.b16 %v16
  %v204 = vunpack.c.l.b16 %v17
  %v205 = vunpack.c.h.b16 %v17
  %v206 = vunpack.c.l.b16 %v18
  %v207 = vunpack.c.h.b16 %v18
  %v208 = vunpack.c.l.b16 %v19
  %v209 = vunpack.c.h.b16 %v19
  %v210 = vunpack.c.l.b16 %v20
  %v211 = vunpack.c.h.b16 %v20
  %v212 = vunpack.c.l.b16 %v21
  %v213 = vunpack.c.h.b16 %v21
  %v214 = vunpack.c.l.b16 %v22
  %v215 = vunpack.c.h.b16 %v22
  %v216 = vunpack.c.l.b16 %v23
  %v217 = vunpack.c.h.b16 %v23
  %v218 = vunpack.c.l.b16 %v24
  %v219 = vunpack.c.h.b16 %v24
  %v220 = vunpack.c.l.b16 %v25
  %v221 = vunpack.c.h.b16 %v25
  %v222 = vunpack.c.l.b16 %v26
  %v223 = vunpack.c.h.b16 %v26
  %v224 = vunpack.c.l.b16 %v27
  %v225 = vunpack.c.h.b16 %v27
  %v226 = vunpack.c.l.b16 %v28
  %v227 = vunpack.c.h.b16 %v28
  %v228 = vunpack.c.l.b16 %v29
  %v229 = vunpack.c.h.b16 %v29
  %v230 = vunpack.c.l.b16 %v30
  %v231 = vunpack.c.h.b16 %v30
  %v232 = vunpack.c.l.b16 %v31
  %v233 = vunpack.c.h.b16 %v31
  %v234 = vunpack.c.l.b16 %v32
  %v235 = vunpack.c.h.b16 %v32
  %v236 = vunpack.c.l.b16 %v33
  %v237 = vunpack.c.h.b16 %v33
  %v238 = vunpack.c.l.b16 %v34
  %v239 = vunpack.c.h.b16 %v34
  %v240 = vunpack.c.l.b16 %v35
  %v241 = vunpack.c.h.b16 %v35
  %v242 = vunpack.c.l.b16 %v36
  %v243 = vunpack.c.h.b16 %v36
  %v244 = vunpack.c.l.b16 %v37
  %v245 = vunpack.c.h.b16 %v37
  %v246 = vunpack.c.l.b16 %v38
  %v247 = vunpack.c.h.b16 %v38
  %v248 = vunpack.c.l.b16 %v39
  %v249 = vunpack.c.h.b16 %v39
  %v250 = vunpack.c.l.b16 %v40
  %v251 = vunpack.c.h.b16 %v40
  %v252 = vunpack.c.l.b16 %v41
  %v253 = vunpack.c.h.b16 %v41
  %v254 = vunpack.c.l.b16 %v42
  %v255 = vunpack.c.h.b16 %v42
  %v256 = vunpack.c.l.b16 %v43
  %v257 = vunpack.c.h.b16 %v43
  %v258 = vunpack.c.l.b16 %v44
  %v259 = vunpack.c.h.b16 %v44
  %v260 = vunpack.c.l.b16 %v45
  %v261 = vunpack.c.h.b16 %v45
  %v262 = vunpack.c.l.b16 %v46
  %v263 = vunpack.c.h.b16 %v46
  %v264 = vunpack.c.l.b16 %v47
  %v265 = vunpack.c.h.b16 %v47
  %v266 = vunpack.c.l.b16 %v48
  %v267 = vunpack.c.h.b16 %v48
  %v268 = vunpack.c.l.b16 %v49
  %v269 = vunpack.c.h.b16 %v49
  %v270 = vunpack.c.l.b16 %v50
  %v271 = vunpack.c.h.b16 %v50
  %v272 = vunpack.c.l.b16 %v51
  %v273 = vunpack.c.h.b16 %v51
  %v274 = vunpack.c.l.b16 %v52
  %v275 = vunpack.c.h.b16 %v52
  %v276 = vunpack.c.l.b16 %v53
  %v277 = vunpack.c.h.b16 %v53
  %v278 = vunpack.c.l.b16 %v54
  %v279 = vunpack.c.h.b16 %v54
  %v280 = vunpack.c.l.b16 %v55
  %v281 = vunpack.c.h.b16 %v55
  %v282 = vunpack.c.l.b16 %v56
  %v283 = vunpack.c.h.b16 %v56
  %v284 = vunpack.c.l.b16 %v57
  %v285 = vunpack.c.h.b16 %v57
  %v286 = vunpack.c.l.b16 %v58
  %v287 = vunpack.c.h.b16 %v58
  %v288 = vunpack.c.l.b16 %v59
  %v289 = vunpack.c.h.b16 %v59
  %v290 = vunpack.c.l.b16 %v60
  %v291 = vunpack.c.h.b16 %v60
  %v292 = vunpack.c.l.b16 %v61
  %v293 = vunpack.c.h.b16 %v61
  %v294 = vunpack.c.l.b16 %v62
  %v295 = vunpack.c.h.b16 %v62
  %v296 = vunpack.c.l.b16 %v63
  %v297 = vunpack.c.h.b16 %v63
  %v298 = vunpack.c.l.b16 %v64
  %v299 = vunpack.c.h.b16 %v64
  %v300 = vunpack.c.l.b16 %v65
  %v301 = vunpack.c.h.b16 %v65
  %v302 = vunpack.c.l.b16 %v66
  %v303 = vunpack.c.h.b16 %v66
  %v304 = vunpack.c.l.b16 %v67
  %v305 = vunpack.c.h.b16 %v67
  %v306 = vunpack.c.l.b16 %v68
  %v307 = vunpack.c.h.b16 %v68
  %v308 = vunpack.c.l.b16 %v69
  %v309 = vunpack.c.h.b16 %v69
  %v310 = vunpack.c.l.b16 %v70
  %v311 = vunpack.c.h.b16 %v70
  %v312 = vunpack.c.l.b16 %v71
  %v313 = vunpack.c.h.b16 %v71
  %v314 = vunpack.c.l.b16 %v72
  %v315 = vunpack.c.h.b16 %v72
  %v316 = vunpack.c.l.b16 %v73
  %v317 = vunpack.c.h.b16 %v73
  %v318 = vunpack.c.l.b16 %v74
  %v319 = vunpack.c.h.b16 %v74
  %v320 = vunpack.c.l.b16 %v75
  %v321 = vunpack.c.h.b16 %v75
  %v322 = vunpack.c.l.b16 %v76
  %v323 = vunpack.c.h.b16 %v76
  %v324 = vunpack.c.l.b16 %v77
  %v325 = vunpack.c.h.b16 %v77
  %v326 = vunpack.c.l.b16 %v78
  %v327 = vunpack.c.h.b16 %v78
  %v328 = vpack.c.b16 %v204, %v200
  %v329 = vpack.c.b16 %v205, %v201
  %v330 = vpack.c.b16 %v206, %v202
  %v331 = vpack.c.b16 %v207, %v203
  %v332 = vpack.c.b16 %v212, %v208
  %v333 = vpack.c.b16 %v213, %v209
  %v334 = vpack.c.b16 %v214, %v210
  %v335 = vpack.c.b16 %v215, %v211
  %v336 = vpack.c.b16 %v220, %v216
  %v337 = vpack.c.b16 %v221, %v217
  %v338 = vpack.c.b16 %v222, %v218
  %v339 = vpack.c.b16 %v223, %v219
  %v340 = vpack.c.b16 %v228, %v224
  %v341 = vpack.c.b16 %v229, %v225
  %v342 = vpack.c.b16 %v230, %v226
  %v343 = vpack.c.b16 %v231, %v227
  %v344 = vpack.c.b16 %v236, %v232
  %v345 = vpack.c.b16 %v237, %v233
  %v346 = vpack.c.b16 %v238, %v234
  %v347 = vpack.c.b16 %v239, %v235
  %v348 = vpack.c.b16 %v244, %v240
  %v349 = vpack.c.b16 %v245, %v241
  %v350 = vpack.c.b16 %v246, %v242
  %v351 = vpack.c.b16 %v247, %v243
  %v352 = vpack.c.b16 %v252, %v248
  %v353 = vpack.c.b16 %v253, %v249
  %v354 = vpack.c.b16 %v254, %v250
  %v355 = vpack.c.b16 %v255, %v251
  %v356 = vpack.c.b16 %v260, %v256
  %v357 = vpack.c.b16 %v261, %v257
  %v358 = vpack.c.b16 %v262, %v258
  %v359 = vpack.c.b16 %v263, %v259
  %v360 = vpack.c.b16 %v268, %v264
  %v361 = vpack.c.b16 %v269, %v265
  %v362 = vpack.c.b16 %v270, %v266
  %v363 = vpack.c.b16 %v271, %v267
  %v364 = vpack.c.b16 %v276, %v272
  %v365 = vpack.c.b16 %v277, %v273
  %v366 = vpack.c.b16 %v278, %v274
  %v367 = vpack.c.b16 %v279, %v275
  %v368 = vpack.c.b16 %v284, %v280
  %v369 = vpack.c.b16 %v285, %v281
  %v370 = vpack.c.b16 %v286, %v282
  %v371 = vpack.c.b16 %v287, %v283
  %v372 = vpack.c.b16 %v292, %v288
  %v373 = vpack.c.b16 %v293, %v289
  %v374 = vpack.c.b16 %v294, %v290
  %v375 = vpack.c.b16 %v295, %v291
  %v376 = vpack.c.b16 %v300, %v296
  %v377 = vpack.c.b16 %v301, %v297
  %v378 = vpack.c.b16 %v302, %v298
  %v379 = vpack.c.b16 %v303, %v299
  %v380 = vpack.c.b16 %v308, %v304
  %v381 = vpack.c.b16 %v309, %v305
  %v382 = vpack.c.b16 %v310, %v306
  %v383 = vpack.c.b16 %v311, %v307
  %v384 = vpack.c.b16 %v316, %v312
  %v385 = vpack.c.b16 %v317, %v313
  %v386 = vpack.c.b16 %v318, %v314
  %v387 = vpack.c.b16 %v319, %v315
  %v388 = vpack.c.b16 %v324, %v320
  %v389 = vpack.c.b16 %v325, %v321
  %v390 = vpack.c.b16 %v326, %v322
  %v391 = vpack.c.b16 %v327, %v323
  %v497 = vunpack.c.l.b16 %v79
  %v498 = vunpack.c.l.b16 %v80
  %v499 = vunpack.c.l.b16 %v81
  %v500 = vunpack.c.l.b16 %v82
  %v501 = vunpack.c.l.b16 %v83
  %v502 = vunpack.c.l.b16 %v84
  %v503 = vunpack.c.l.b16 %v85
  %v504 = vunpack.c.l.b16 %v86
  %v505 = vunpack.c.l.b16 %v87
  %v506 = vunpack.c.l.b16 %v88
  %v507 = vunpack.c.l.b16 %v89
  %v508 = vunpack.c.l.b16 %v90
  %v509 = vunpack.c.l.b16 %v91
  %v510 = vunpack.c.l.b16 %v92
  %v511 = vunpack.c.l.b16 %v93
  %v512 = vunpack.c.l.b16 %v94
  %v513 = vunpack.c.l.b16 %v95
  %v514 = vunpack.c.l.b16 %v96
  %v515 = vunpack.c.l.b16 %v97
  %v516 = vunpack.c.l.b16 %v98
  %v517 = vunpack.c.l.b16 %v99
  %v518 = vunpack.c.l.b16 %v100
  %v519 = vunpack.c.l.b16 %v101
  %v520 = vunpack.c.l.b16 %v102
  %v521 = vunpack.c.l.b16 %v103
  %v522 = vunpack.c.l.b16 %v104
  %v523 = vunpack.c.l.b16 %v105
  %v524 = vunpack.c.l.b16 %v106
  %v525 = vunpack.c.l.b16 %v107
  %v526 = vunpack.c.l.b16 %v108
  %v527 = vunpack.c.l.b16 %v109
  %v528 = vunpack.c.l.b16 %v110
  %v529 = vunpack.c.l.b16 %v111
  %v530 = vunpack.c.l.b16 %v112
  %v531 = vunpack.c.l.b16 %v113
  %v532 = vunpack.c.l.b16 %v114
  %v533 = vunpack.c.l.b16 %v115
  %v534 = vunpack.c.l.b16 %v116
  %v535 = vunpack.c.l.b16 %v117
  %v536 = vunpack.c.l.b16 %v118
  %v537 = vunpack.c.l.b16 %v119
  %v538 = vunpack.c.l.b16 %v120
  %v539 = vunpack.c.l.b16 %v121
  %v540 = vunpack.c.l.b16 %v122
  %v541 = vunpack.c.l.b16 %v123
  %v542 = vunpack.c.l.b16 %v124
  %v543 = vunpack.c.l.b16 %v125
  %v544 = vunpack.c.l.b16 %v126
  %v545 = vunpack.c.l.b16 %v127
  %v546 = vunpack.c.l.b16 %v128
  %v547 = vunpack.c.l.b16 %v129
  %v548 = vunpack.c.l.b16 %v130
  %v549 = vunpack.c.l.b16 %v131
  %v550 = vunpack.c.l.b16 %v132
  %v551 = vunpack.c.l.b16 %v133
  %v552 = vunpack.c.l.b16 %v134
  %v553 = vunpack.c.l.b16 %v135
  %v554 = vpack.c.b16 %v498, %v497
  %v555 = vpack.c.b16 %v500, %v499
  %v556 = vpack.c.b16 %v502, %v501
  %v557 = vpack.c.b16 %v504, %v503
  %v558 = vpack.c.b16 %v506, %v505
  %v559 = vpack.c.b16 %v508, %v507
  %v560 = vpack.c.b16 %v510, %v509
  %v561 = vpack.c.b16 %v512, %v511
  %v562 = vpack.c.b16 %v514, %v513
  %v563 = vpack.c.b16 %v516, %v515
  %v564 = vpack.c.b16 %v518, %v517
  %v565 = vpack.c.b16 %v520, %v519
  %v566 = vpack.c.b16 %v522, %v521
  %v567 = vpack.c.b16 %v524, %v523
  %v568 = vpack.c.b16 %v526, %v525
  %v569 = vpack.c.b16 %v528, %v527
  %v570 = vpack.c.b16 %v530, %v529
  %v571 = vpack.c.b16 %v532, %v531
  %v572 = vpack.c.b16 %v534, %v533
  %v573 = vpack.c.b16 %v536, %v535
  %v574 = vpack.c.b16 %v538, %v537
  %v575 = vpack.c.b16 %v540, %v539
  %v576 = vpack.c.b16 %v542, %v541
  %v577 = vpack.c.b16 %v544, %v543
  %v578 = vpack.c.b16 %v546, %v545
  %v579 = vpack.c.b16 %v548, %v547
  %v580 = vpack.c.b16 %v550, %v549
  %v581 = vpack.c.b16 %v552, %v551
  %v582 = vpack.c.b16 %v553, %v553
  %vm611 = vcmask 539648
  %v613 = vsel %vm611, %v331, 0
  %v616 = vsel %vm611, %v335, 0
  %v619 = vsel %vm611, %v339, 0
  %v622 = vsel %vm611, %v343, 0
  %v625 = vsel %vm611, %v347, 0
  %v628 = vsel %vm611, %v351, 0
  %v631 = vsel %vm611, %v355, 0
  %v634 = vsel %vm611, %v359, 0
  %v637 = vsel %vm611, %v363, 0
  %v640 = vsel %vm611, %v367, 0
  %v643 = vsel %vm611, %v371, 0
  %v646 = vsel %vm611, %v375, 0
  %v649 = vsel %vm611, %v379, 0
  %v652 = vsel %vm611, %v383, 0
  %v655 = vsel %vm611, %v387, 0
  %v658 = vsel %vm611, %v391, 0
  %vm660 = vcmask 1040384
  %v662 = vsel %vm660, %v582, 0
  %664 = vmatpush.bf16.msra.mxu0 %v561
  %665 = vmatpush.bf16.msra.mxu0 %v560
  %666 = vmatpush.bf16.msra.mxu0 %v559
  %667 = vmatpush.bf16.msra.mxu0 %v558
  %668 = vmatpush.bf16.msra.mxu0 %v557
  %669 = vmatpush.bf16.msra.mxu0 %v556
  %670 = vmatpush.bf16.msra.mxu0 %v555
  %671 = vmatpush.bf16.msra.mxu0 %v554
  %672 = vmatmul.bf16.gmra.mxu0 %v328
  %v673 = vpop.f32.mrf.mxu0
  %v674 = vadd.f32 0.0, %v673
  %v675 = vpop.f32.mrf.mxu0
  %v676 = vadd.f32 0.0, %v675
  %677 = vmatmul.bf16.gmra.mxu0 %v332
  %v678 = vpop.f32.mrf.mxu0
  %v679 = vadd.f32 0.0, %v678
  %v680 = vpop.f32.mrf.mxu0
  %v681 = vadd.f32 0.0, %v680
  %682 = vmatmul.bf16.gmra.mxu0 %v336
  %v683 = vpop.f32.mrf.mxu0
  %v684 = vadd.f32 0.0, %v683
  %v685 = vpop.f32.mrf.mxu0
  %v686 = vadd.f32 0.0, %v685
  %687 = vmatmul.bf16.gmra.mxu0 %v340
  %v688 = vpop.f32.mrf.mxu0
  %v689 = vadd.f32 0.0, %v688
  %v690 = vpop.f32.mrf.mxu0
  %v691 = vadd.f32 0.0, %v690
  %692 = vmatmul.bf16.gmra.mxu0 %v344
  %v693 = vpop.f32.mrf.mxu0
  %v694 = vadd.f32 0.0, %v693
  %v695 = vpop.f32.mrf.mxu0
  %v696 = vadd.f32 0.0, %v695
  %697 = vmatmul.bf16.gmra.mxu0 %v348
  %v698 = vpop.f32.mrf.mxu0
  %v699 = vadd.f32 0.0, %v698
  %v700 = vpop.f32.mrf.mxu0
  %v701 = vadd.f32 0.0, %v700
  %702 = vmatmul.bf16.gmra.mxu0 %v352
  %v703 = vpop.f32.mrf.mxu0
  %v704 = vadd.f32 0.0, %v703
  %v705 = vpop.f32.mrf.mxu0
  %v706 = vadd.f32 0.0, %v705
  %707 = vmatmul.bf16.gmra.mxu0 %v356
  %v708 = vpop.f32.mrf.mxu0
  %v709 = vadd.f32 0.0, %v708
  %v710 = vpop.f32.mrf.mxu0
  %v711 = vadd.f32 0.0, %v710
  %712 = vmatmul.bf16.gmra.mxu0 %v360
  %v713 = vpop.f32.mrf.mxu0
  %v714 = vadd.f32 0.0, %v713
  %v715 = vpop.f32.mrf.mxu0
  %v716 = vadd.f32 0.0, %v715
  %717 = vmatmul.bf16.gmra.mxu0 %v364
  %v718 = vpop.f32.mrf.mxu0
  %v719 = vadd.f32 0.0, %v718
  %v720 = vpop.f32.mrf.mxu0
  %v721 = vadd.f32 0.0, %v720
  %722 = vmatmul.bf16.gmra.mxu0 %v368
  %v723 = vpop.f32.mrf.mxu0
  %v724 = vadd.f32 0.0, %v723
  %v725 = vpop.f32.mrf.mxu0
  %v726 = vadd.f32 0.0, %v725
  %727 = vmatmul.bf16.gmra.mxu0 %v372
  %v728 = vpop.f32.mrf.mxu0
  %v729 = vadd.f32 0.0, %v728
  %v730 = vpop.f32.mrf.mxu0
  %v731 = vadd.f32 0.0, %v730
  %732 = vmatmul.bf16.gmra.mxu0 %v376
  %v733 = vpop.f32.mrf.mxu0
  %v734 = vadd.f32 0.0, %v733
  %v735 = vpop.f32.mrf.mxu0
  %v736 = vadd.f32 0.0, %v735
  %737 = vmatmul.bf16.gmra.mxu0 %v380
  %v738 = vpop.f32.mrf.mxu0
  %v739 = vadd.f32 0.0, %v738
  %v740 = vpop.f32.mrf.mxu0
  %v741 = vadd.f32 0.0, %v740
  %742 = vmatmul.bf16.gmra.mxu0 %v384
  %v743 = vpop.f32.mrf.mxu0
  %v744 = vadd.f32 0.0, %v743
  %v745 = vpop.f32.mrf.mxu0
  %v746 = vadd.f32 0.0, %v745
  %747 = vmatmul.bf16.gmra.mxu0 %v388
  %v748 = vpop.f32.mrf.mxu0
  %v749 = vadd.f32 0.0, %v748
  %v750 = vpop.f32.mrf.mxu0
  %v751 = vadd.f32 0.0, %v750
  %752 = vdwg.mxu0
  %753 = vmatpush.bf16.msra.mxu0 %v569
  %754 = vmatpush.bf16.msra.mxu0 %v568
  %755 = vmatpush.bf16.msra.mxu0 %v567
  %756 = vmatpush.bf16.msra.mxu0 %v566
  %757 = vmatpush.bf16.msra.mxu0 %v565
  %758 = vmatpush.bf16.msra.mxu0 %v564
  %759 = vmatpush.bf16.msra.mxu0 %v563
  %760 = vmatpush.bf16.msra.mxu0 %v562
  %761 = vmatmul.bf16.gmra.mxu0 %v329
  %v762 = vpop.f32.mrf.mxu0
  %v763 = vadd.f32 %v674, %v762
  %v764 = vpop.f32.mrf.mxu0
  %v765 = vadd.f32 %v676, %v764
  %766 = vmatmul.bf16.gmra.mxu0 %v333
  %v767 = vpop.f32.mrf.mxu0
  %v768 = vadd.f32 %v679, %v767
  %v769 = vpop.f32.mrf.mxu0
  %v770 = vadd.f32 %v681, %v769
  %771 = vmatmul.bf16.gmra.mxu0 %v337
  %v772 = vpop.f32.mrf.mxu0
  %v773 = vadd.f32 %v684, %v772
  %v774 = vpop.f32.mrf.mxu0
  %v775 = vadd.f32 %v686, %v774
  %776 = vmatmul.bf16.gmra.mxu0 %v341
  %v777 = vpop.f32.mrf.mxu0
  %v778 = vadd.f32 %v689, %v777
  %v779 = vpop.f32.mrf.mxu0
  %v780 = vadd.f32 %v691, %v779
  %781 = vmatmul.bf16.gmra.mxu0 %v345
  %v782 = vpop.f32.mrf.mxu0
  %v783 = vadd.f32 %v694, %v782
  %v784 = vpop.f32.mrf.mxu0
  %v785 = vadd.f32 %v696, %v784
  %786 = vmatmul.bf16.gmra.mxu0 %v349
  %v787 = vpop.f32.mrf.mxu0
  %v788 = vadd.f32 %v699, %v787
  %v789 = vpop.f32.mrf.mxu0
  %v790 = vadd.f32 %v701, %v789
  %791 = vmatmul.bf16.gmra.mxu0 %v353
  %v792 = vpop.f32.mrf.mxu0
  %v793 = vadd.f32 %v704, %v792
  %v794 = vpop.f32.mrf.mxu0
  %v795 = vadd.f32 %v706, %v794
  %796 = vmatmul.bf16.gmra.mxu0 %v357
  %v797 = vpop.f32.mrf.mxu0
  %v798 = vadd.f32 %v709, %v797
  %v799 = vpop.f32.mrf.mxu0
  %v800 = vadd.f32 %v711, %v799
  %801 = vmatmul.bf16.gmra.mxu0 %v361
  %v802 = vpop.f32.mrf.mxu0
  %v803 = vadd.f32 %v714, %v802
  %v804 = vpop.f32.mrf.mxu0
  %v805 = vadd.f32 %v716, %v804
  %806 = vmatmul.bf16.gmra.mxu0 %v365
  %v807 = vpop.f32.mrf.mxu0
  %v808 = vadd.f32 %v719, %v807
  %v809 = vpop.f32.mrf.mxu0
  %v810 = vadd.f32 %v721, %v809
  %811 = vmatmul.bf16.gmra.mxu0 %v369
  %v812 = vpop.f32.mrf.mxu0
  %v813 = vadd.f32 %v724, %v812
  %v814 = vpop.f32.mrf.mxu0
  %v815 = vadd.f32 %v726, %v814
  %816 = vmatmul.bf16.gmra.mxu0 %v373
  %v817 = vpop.f32.mrf.mxu0
  %v818 = vadd.f32 %v729, %v817
  %v819 = vpop.f32.mrf.mxu0
  %v820 = vadd.f32 %v731, %v819
  %821 = vmatmul.bf16.gmra.mxu0 %v377
  %v822 = vpop.f32.mrf.mxu0
  %v823 = vadd.f32 %v734, %v822
  %v824 = vpop.f32.mrf.mxu0
  %v825 = vadd.f32 %v736, %v824
  %826 = vmatmul.bf16.gmra.mxu0 %v381
  %v827 = vpop.f32.mrf.mxu0
  %v828 = vadd.f32 %v739, %v827
  %v829 = vpop.f32.mrf.mxu0
  %v830 = vadd.f32 %v741, %v829
  %831 = vmatmul.bf16.gmra.mxu0 %v385
  %v832 = vpop.f32.mrf.mxu0
  %v833 = vadd.f32 %v744, %v832
  %v834 = vpop.f32.mrf.mxu0
  %v835 = vadd.f32 %v746, %v834
  %836 = vmatmul.bf16.gmra.mxu0 %v389
  %v837 = vpop.f32.mrf.mxu0
  %v838 = vadd.f32 %v749, %v837
  %v839 = vpop.f32.mrf.mxu0
  %v840 = vadd.f32 %v751, %v839
  %841 = vdwg.mxu0
  %842 = vmatpush.bf16.msra.mxu0 %v577
  %843 = vmatpush.bf16.msra.mxu0 %v576
  %844 = vmatpush.bf16.msra.mxu0 %v575
  %845 = vmatpush.bf16.msra.mxu0 %v574
  %846 = vmatpush.bf16.msra.mxu0 %v573
  %847 = vmatpush.bf16.msra.mxu0 %v572
  %848 = vmatpush.bf16.msra.mxu0 %v571
  %849 = vmatpush.bf16.msra.mxu0 %v570
  %850 = vmatmul.bf16.gmra.mxu0 %v330
  %v851 = vpop.f32.mrf.mxu0
  %v852 = vadd.f32 %v763, %v851
  %v853 = vpop.f32.mrf.mxu0
  %v854 = vadd.f32 %v765, %v853
  %855 = vmatmul.bf16.gmra.mxu0 %v334
  %v856 = vpop.f32.mrf.mxu0
  %v857 = vadd.f32 %v768, %v856
  %v858 = vpop.f32.mrf.mxu0
  %v859 = vadd.f32 %v770, %v858
  %860 = vmatmul.bf16.gmra.mxu0 %v338
  %v861 = vpop.f32.mrf.mxu0
  %v862 = vadd.f32 %v773, %v861
  %v863 = vpop.f32.mrf.mxu0
  %v864 = vadd.f32 %v775, %v863
  %865 = vmatmul.bf16.gmra.mxu0 %v342
  %v866 = vpop.f32.mrf.mxu0
  %v867 = vadd.f32 %v778, %v866
  %v868 = vpop.f32.mrf.mxu0
  %v869 = vadd.f32 %v780, %v868
  %870 = vmatmul.bf16.gmra.mxu0 %v346
  %v871 = vpop.f32.mrf.mxu0
  %v872 = vadd.f32 %v783, %v871
  %v873 = vpop.f32.mrf.mxu0
  %v874 = vadd.f32 %v785, %v873
  %875 = vmatmul.bf16.gmra.mxu0 %v350
  %v876 = vpop.f32.mrf.mxu0
  %v877 = vadd.f32 %v788, %v876
  %v878 = vpop.f32.mrf.mxu0
  %v879 = vadd.f32 %v790, %v878
  %880 = vmatmul.bf16.gmra.mxu0 %v354
  %v881 = vpop.f32.mrf.mxu0
  %v882 = vadd.f32 %v793, %v881
  %v883 = vpop.f32.mrf.mxu0
  %v884 = vadd.f32 %v795, %v883
  %885 = vmatmul.bf16.gmra.mxu0 %v358
  %v886 = vpop.f32.mrf.mxu0
  %v887 = vadd.f32 %v798, %v886
  %v888 = vpop.f32.mrf.mxu0
  %v889 = vadd.f32 %v800, %v888
  %890 = vmatmul.bf16.gmra.mxu0 %v362
  %v891 = vpop.f32.mrf.mxu0
  %v892 = vadd.f32 %v803, %v891
  %v893 = vpop.f32.mrf.mxu0
  %v894 = vadd.f32 %v805, %v893
  %895 = vmatmul.bf16.gmra.mxu0 %v366
  %v896 = vpop.f32.mrf.mxu0
  %v897 = vadd.f32 %v808, %v896
  %v898 = vpop.f32.mrf.mxu0
  %v899 = vadd.f32 %v810, %v898
  %900 = vmatmul.bf16.gmra.mxu0 %v370
  %v901 = vpop.f32.mrf.mxu0
  %v902 = vadd.f32 %v813, %v901
  %v903 = vpop.f32.mrf.mxu0
  %v904 = vadd.f32 %v815, %v903
  %905 = vmatmul.bf16.gmra.mxu0 %v374
  %v906 = vpop.f32.mrf.mxu0
  %v907 = vadd.f32 %v818, %v906
  %v908 = vpop.f32.mrf.mxu0
  %v909 = vadd.f32 %v820, %v908
  %910 = vmatmul.bf16.gmra.mxu0 %v378
  %v911 = vpop.f32.mrf.mxu0
  %v912 = vadd.f32 %v823, %v911
  %v913 = vpop.f32.mrf.mxu0
  %v914 = vadd.f32 %v825, %v913
  %915 = vmatmul.bf16.gmra.mxu0 %v382
  %v916 = vpop.f32.mrf.mxu0
  %v917 = vadd.f32 %v828, %v916
  %v918 = vpop.f32.mrf.mxu0
  %v919 = vadd.f32 %v830, %v918
  %920 = vmatmul.bf16.gmra.mxu0 %v386
  %v921 = vpop.f32.mrf.mxu0
  %v922 = vadd.f32 %v833, %v921
  %v923 = vpop.f32.mrf.mxu0
  %v924 = vadd.f32 %v835, %v923
  %925 = vmatmul.bf16.gmra.mxu0 %v390
  %v926 = vpop.f32.mrf.mxu0
  %v927 = vadd.f32 %v838, %v926
  %v928 = vpop.f32.mrf.mxu0
  %v929 = vadd.f32 %v840, %v928
  %930 = vdwg.mxu0
  %931 = vmatpush.bf16.msra.mxu0 0
  %932 = vmatpush.bf16.msra.mxu0 0
  %933 = vmatpush.bf16.msra.mxu0 0
  %934 = vmatpush.bf16.msra.mxu0 %v662
  %935 = vmatpush.bf16.msra.mxu0 %v581
  %936 = vmatpush.bf16.msra.mxu0 %v580
  %937 = vmatpush.bf16.msra.mxu0 %v579
  %938 = vmatpush.bf16.msra.mxu0 %v578
  %939 = vmatmul.bf16.gmra.mxu0 %v613
  %v940 = vpop.f32.mrf.mxu0
  %v941 = vadd.f32 %v852, %v940
  %v942 = vpop.f32.mrf.mxu0
  %v943 = vadd.f32 %v854, %v942
  %944 = vmatmul.bf16.gmra.mxu0 %v616
  %v945 = vpop.f32.mrf.mxu0
  %v946 = vadd.f32 %v857, %v945
  %v947 = vpop.f32.mrf.mxu0
  %v948 = vadd.f32 %v859, %v947
  %949 = vmatmul.bf16.gmra.mxu0 %v619
  %v950 = vpop.f32.mrf.mxu0
  %v951 = vadd.f32 %v862, %v950
  %v952 = vpop.f32.mrf.mxu0
  %v953 = vadd.f32 %v864, %v952
  %954 = vmatmul.bf16.gmra.mxu0 %v622
  %v955 = vpop.f32.mrf.mxu0
  %v956 = vadd.f32 %v867, %v955
  %v957 = vpop.f32.mrf.mxu0
  %v958 = vadd.f32 %v869, %v957
  %959 = vmatmul.bf16.gmra.mxu0 %v625
  %v960 = vpop.f32.mrf.mxu0
  %v961 = vadd.f32 %v872, %v960
  %v962 = vpop.f32.mrf.mxu0
  %v963 = vadd.f32 %v874, %v962
  %964 = vmatmul.bf16.gmra.mxu0 %v628
  %v965 = vpop.f32.mrf.mxu0
  %v966 = vadd.f32 %v877, %v965
  %v967 = vpop.f32.mrf.mxu0
  %v968 = vadd.f32 %v879, %v967
  %969 = vmatmul.bf16.gmra.mxu0 %v631
  %v970 = vpop.f32.mrf.mxu0
  %v971 = vadd.f32 %v882, %v970
  %v972 = vpop.f32.mrf.mxu0
  %v973 = vadd.f32 %v884, %v972
  %974 = vmatmul.bf16.gmra.mxu0 %v634
  %v975 = vpop.f32.mrf.mxu0
  %v976 = vadd.f32 %v887, %v975
  %v977 = vpop.f32.mrf.mxu0
  %v978 = vadd.f32 %v889, %v977
  %979 = vmatmul.bf16.gmra.mxu0 %v637
  %v980 = vpop.f32.mrf.mxu0
  %v981 = vadd.f32 %v892, %v980
  %v982 = vpop.f32.mrf.mxu0
  %v983 = vadd.f32 %v894, %v982
  %984 = vmatmul.bf16.gmra.mxu0 %v640
  %v985 = vpop.f32.mrf.mxu0
  %v986 = vadd.f32 %v897, %v985
  %v987 = vpop.f32.mrf.mxu0
  %v988 = vadd.f32 %v899, %v987
  %989 = vmatmul.bf16.gmra.mxu0 %v643
  %v990 = vpop.f32.mrf.mxu0
  %v991 = vadd.f32 %v902, %v990
  %v992 = vpop.f32.mrf.mxu0
  %v993 = vadd.f32 %v904, %v992
  %994 = vmatmul.bf16.gmra.mxu0 %v646
  %v995 = vpop.f32.mrf.mxu0
  %v996 = vadd.f32 %v907, %v995
  %v997 = vpop.f32.mrf.mxu0
  %v998 = vadd.f32 %v909, %v997
  %999 = vmatmul.bf16.gmra.mxu0 %v649
  %v1000 = vpop.f32.mrf.mxu0
  %v1001 = vadd.f32 %v912, %v1000
  %v1002 = vpop.f32.mrf.mxu0
  %v1003 = vadd.f32 %v914, %v1002
  %1004 = vmatmul.bf16.gmra.mxu0 %v652
  %v1005 = vpop.f32.mrf.mxu0
  %v1006 = vadd.f32 %v917, %v1005
  %v1007 = vpop.f32.mrf.mxu0
  %v1008 = vadd.f32 %v919, %v1007
  %1009 = vmatmul.bf16.gmra.mxu0 %v655
  %v1010 = vpop.f32.mrf.mxu0
  %v1011 = vadd.f32 %v922, %v1010
  %v1012 = vpop.f32.mrf.mxu0
  %v1013 = vadd.f32 %v924, %v1012
  %1014 = vmatmul.bf16.gmra.mxu0 %v658
  %v1015 = vpop.f32.mrf.mxu0
  %v1016 = vadd.f32 %v927, %v1015
  %v1017 = vpop.f32.mrf.mxu0
  %v1018 = vadd.f32 %v929, %v1017
  %1019 = vdwg.mxu0
  %v1020 = vmax.f32 %v941, %v951
  %v1021 = vmax.f32 %v943, %v953
  %v1022 = vmax.f32 %v946, %v956
  %v1023 = vmax.f32 %v948, %v958
  %v1024 = vmax.f32 %v981, %v991
  %v1025 = vmax.f32 %v983, %v993
  %v1026 = vmax.f32 %v986, %v996
  %v1027 = vmax.f32 %v988, %v998
  %v1028 = vmax.f32 %v961, %v971
  %v1029 = vmax.f32 %v963, %v973
  %v1030 = vmax.f32 %v966, %v976
  %v1031 = vmax.f32 %v968, %v978
  %v1032 = vmax.f32 %v1001, %v1011
  %v1033 = vmax.f32 %v1003, %v1013
  %v1034 = vmax.f32 %v1006, %v1016
  %v1035 = vmax.f32 %v1008, %v1018
  %v1036 = vmax.f32 %v1020, %v1028
  %v1037 = vmax.f32 %v1021, %v1029
  %v1038 = vmax.f32 %v1022, %v1030
  %v1039 = vmax.f32 %v1023, %v1031
  %v1040 = vmax.f32 %v1024, %v1032
  %v1041 = vmax.f32 %v1025, %v1033
  %v1042 = vmax.f32 %v1026, %v1034
  %v1043 = vmax.f32 %v1027, %v1035
  %v1044 = vld [vmem:[%s2] sm:$0x1]
  %v1046 = vperm.slane %v1044, 0
  %v1048 = vadd.f32 %v1036, %v1046
  %v1049 = vadd.f32 %v1037, %v1046
  %v1050 = vadd.f32 %v1038, %v1046
  %v1051 = vadd.f32 %v1039, %v1046
  %v1052 = vadd.f32 %v1040, %v1046
  %v1053 = vadd.f32 %v1041, %v1046
  %v1054 = vadd.f32 %v1042, %v1046
  %v1055 = vadd.f32 %v1043, %v1046
  %v1056 = vtanh.pop %v1048
  %v1057 = vtanh.pop %v1049
  %v1058 = vtanh.pop %v1050
  %v1059 = vtanh.pop %v1051
  %v1060 = vtanh.pop %v1052
  %v1061 = vtanh.pop %v1053
  %v1062 = vtanh.pop %v1054
  %v1063 = vtanh.pop %v1055
  %v1064 = vpack.c.bf16 %v1056, %v1056
  %v1065 = vpack.c.bf16 %v1057, %v1057
  %v1066 = vpack.c.bf16 %v1058, %v1058
  %v1067 = vpack.c.bf16 %v1059, %v1059
  %v1068 = vpack.c.bf16 %v1060, %v1060
  %v1069 = vpack.c.bf16 %v1061, %v1061
  %v1070 = vpack.c.bf16 %v1062, %v1062
  %v1071 = vpack.c.bf16 %v1063, %v1063
  %1072 = vst [vmem:[%s3] sm:$0xf] %v1064
  %1073 = vst [vmem:[%s3 + $0x4] sm:$0xf] %v1065
  %1074 = vst [vmem:[%s3 + $0x8] sm:$0xf] %v1066
  %1075 = vst [vmem:[%s3 + $0xc] sm:$0xf] %v1067
  %1076 = vst [vmem:[%s3 + $0x10] sm:$0xf] %v1068
  %1077 = vst [vmem:[%s3 + $0x14] sm:$0xf] %v1069
  %1078 = vst [vmem:[%s3 + $0x18] sm:$0xf] %v1070
  %1079 = vst [vmem:[%s3 + $0x1c] sm:$0xf] %v1071
  // Predicated region
  $region14: #{lenet5_forward.4} parent=0 // pred_check
    _
  $region15: #{lenet5_forward.4} parent=0 // pred_check_branch
    %1081 = sbr.rel (0) target = $region17
  $region16: #{lenet5_forward.4} parent=0 // pred_region
    _
  $region17: #{lenet5_forward.4} parent=0 // pred_fallthru
    _
  // Predicated region
  $region18: #{lenet5_forward.4} parent=0 // pred_check
    _
  $region19: #{lenet5_forward.4} parent=0 // pred_check_branch
    %1083 = sbr.rel (0) target = $region21
  $region20: #{lenet5_forward.4} parent=0 // pred_region
    _
  $region21: #{lenet5_forward.4} parent=0 // pred_fallthru
    _

// kernel: lenet5_forward.5
$region0: #{lenet5_forward.5}
  #allocation0 [shape = 'u32[]', space=smem, size = 0x4, offset = 0x4, fixed_abs, tag = 'smem constant byte address 0x4 - core index']
  #allocation1 [shape = 'u32[72,128]{1,0:T(1,128)}', space=vmem, size = 0x9000, scoped, tag = 'internal scratch']
  %s0 = inlined_call_operand.vmem [shape: bf16[8,1200], index: 0, kind: input, shape index: {}]
  %s1 = inlined_call_operand.vmem [shape: bf16[1200,384], index: 1, kind: input, shape index: {}]
  %s2 = inlined_call_operand.vmem [shape: f32[1,384], index: 2, kind: input, shape index: {}]
  %s3 = inlined_call_operand.vmem [shape: bf16[384,256], index: 3, kind: input, shape index: {}]
  %s4 = inlined_call_operand.vmem [shape: f32[1,256], index: 4, kind: input, shape index: {}]
  %s5 = inlined_call_operand.vmem [shape: bf16[256,128], index: 5, kind: input, shape index: {}]
  %s6 = inlined_call_operand.vmem [shape: f32[1,128], index: 6, kind: input, shape index: {}]
  %s7 = inlined_call_operand.vmem [shape: f32[8,128], index: 7, kind: output, shape index: {}]
  %s8 = sld [smem:[#allocation0]]
  $region38: #{lenet5_forward.5} parent=0
    _
  %s10 = ssub.s32 1, %s8
  %s11 = scalar_select 0, %s10, %s8
  // Predicated region
  $region2: #{lenet5_forward.5} parent=0 // pred_check
    _
  $region3: #{lenet5_forward.5} parent=0 // pred_check_branch
    %13 = sbr.rel (0) target = $region5
  $region4: #{lenet5_forward.5} parent=0 // pred_region
    _
  $region5: #{lenet5_forward.5} parent=0 // pred_fallthru
    _
  // Predicated region
  $region6: #{lenet5_forward.5} parent=0 // pred_check
    _
  $region7: #{lenet5_forward.5} parent=0 // pred_check_branch
    %15 = sbr.rel (0) target = $region9
  $region8: #{lenet5_forward.5} parent=0 // pred_region
    _
  $region9: #{lenet5_forward.5} parent=0 // pred_fallthru
    _
  // Predicated region
  $region10: #{lenet5_forward.5} parent=0 // pred_check
    _
  $region11: #{lenet5_forward.5} parent=0 // pred_check_branch
    %17 = sbr.rel (0) target = $region13
  $region12: #{lenet5_forward.5} parent=0 // pred_region
    _
  $region13: #{lenet5_forward.5} parent=0 // pred_fallthru
    _
  // Predicated region
  $region14: #{lenet5_forward.5} parent=0 // pred_check
    _
  $region15: #{lenet5_forward.5} parent=0 // pred_check_branch
    %19 = sbr.rel (0) target = $region17
  $region16: #{lenet5_forward.5} parent=0 // pred_region
    _
  $region17: #{lenet5_forward.5} parent=0 // pred_fallthru
    _
  // Predicated region
  $region18: #{lenet5_forward.5} parent=0 // pred_check
    _
  $region19: #{lenet5_forward.5} parent=0 // pred_check_branch
    %21 = sbr.rel (0) target = $region21
  $region20: #{lenet5_forward.5} parent=0 // pred_region
    _
  $region21: #{lenet5_forward.5} parent=0 // pred_fallthru
    _
  // Predicated region
  $region22: #{lenet5_forward.5} parent=0 // pred_check
    _
  $region23: #{lenet5_forward.5} parent=0 // pred_check_branch
    %23 = sbr.rel (0) target = $region25
  $region24: #{lenet5_forward.5} parent=0 // pred_region
    _
  $region25: #{lenet5_forward.5} parent=0 // pred_fallthru
    _
  // Predicated region
  $region26: #{lenet5_forward.5} parent=0 // pred_check
    _
  $region27: #{lenet5_forward.5} parent=0 // pred_check_branch
    %25 = sbr.rel (0) target = $region29
  $region28: #{lenet5_forward.5} parent=0 // pred_region
    _
  $region29: #{lenet5_forward.5} parent=0 // pred_fallthru
    _
  %v27 = vld [vmem:[%s0] sm:$0xff]
  %v28 = vld [vmem:[%s0 + $0x8] sm:$0xff]
  %v29 = vld [vmem:[%s0 + $0x10] sm:$0xff]
  %v30 = vld [vmem:[%s0 + $0x18] sm:$0xff]
  %v31 = vld [vmem:[%s0 + $0x20] sm:$0xff]
  %v32 = vld [vmem:[%s1] sm:$0xff]
  %v33 = vld [vmem:[%s1 + $0x8] sm:$0xf]
  %v34 = vld [vmem:[%s1 + $0xc] sm:$0xff]
  %v35 = vld [vmem:[%s1 + $0x14] sm:$0xf]
  %v36 = vld [vmem:[%s1 + $0x18] sm:$0xff]
  %v37 = vld [vmem:[%s1 + $0x20] sm:$0xf]
  %v38 = vld [vmem:[%s1 + $0x24] sm:$0xff]
  %v39 = vld [vmem:[%s1 + $0x2c] sm:$0xf]
  %v40 = vld [vmem:[%s1 + $0x30] sm:$0xff]
  %v41 = vld [vmem:[%s1 + $0x38] sm:$0xf]
  %v42 = vld [vmem:[%s1 + $0x3c] sm:$0xff]
  %v43 = vld [vmem:[%s1 + $0x44] sm:$0xf]
  %v44 = vld [vmem:[%s1 + $0x48] sm:$0xff]
  %v45 = vld [vmem:[%s1 + $0x50] sm:$0xf]
  %v46 = vld [vmem:[%s1 + $0x54] sm:$0xff]
  %v47 = vld [vmem:[%s1 + $0x5c] sm:$0xf]
  %v48 = vld [vmem:[%s1 + $0x60] sm:$0xff]
  %v49 = vld [vmem:[%s1 + $0x68] sm:$0xf]
  %v50 = vld [vmem:[%s1 + $0x6c] sm:$0xff]
  %v51 = vld [vmem:[%s1 + $0x74] sm:$0xf]
  %v52 = vld [vmem:[%s1 + $0x78] sm:$0xff]
  %v53 = vld [vmem:[%s1 + $0x80] sm:$0xf]
  %v54 = vld [vmem:[%s1 + $0x84] sm:$0xff]
  %v55 = vld [vmem:[%s1 + $0x8c] sm:$0xf]
  %v56 = vld [vmem:[%s1 + $0x90] sm:$0xff]
  %v57 = vld [vmem:[%s1 + $0x98] sm:$0xf]
  %v58 = vld [vmem:[%s1 + $0x9c] sm:$0xff]
  %v59 = vld [vmem:[%s1 + $0xa4] sm:$0xf]
  %v60 = vld [vmem:[%s1 + $0xa8] sm:$0xff]
  %v61 = vld [vmem:[%s1 + $0xb0] sm:$0xf]
  %v62 = vld [vmem:[%s1 + $0xb4] sm:$0xff]
  %v63 = vld [vmem:[%s1 + $0xbc] sm:$0xf]
  %v64 = vld [vmem:[%s1 + $0xc0] sm:$0xff]
  %v65 = vld [vmem:[%s1 + $0xc8] sm:$0xf]
  %v66 = vld [vmem:[%s1 + $0xcc] sm:$0xff]
  %v67 = vld [vmem:[%s1 + $0xd4] sm:$0xf]
  %v68 = vld [vmem:[%s1 + $0xd8] sm:$0xff]
  %v69 = vld [vmem:[%s1 + $0xe0] sm:$0xf]
  %v70 = vld [vmem:[%s1 + $0xe4] sm:$0xff]
  %v71 = vld [vmem:[%s1 + $0xec] sm:$0xf]
  %v72 = vld [vmem:[%s1 + $0xf0] sm:$0xff]
  %v73 = vld [vmem:[%s1 + $0xf8] sm:$0xf]
  %v74 = vld [vmem:[%s1 + $0xfc] sm:$0xff]
  %v75 = vld [vmem:[%s1 + $0x104] sm:$0xf]
  %v76 = vld [vmem:[%s1 + $0x108] sm:$0xff]
  %v77 = vld [vmem:[%s1 + $0x110] sm:$0xf]
  %v78 = vld [vmem:[%s1 + $0x114] sm:$0xff]
  %v79 = vld [vmem:[%s1 + $0x11c] sm:$0xf]
  %v80 = vld [vmem:[%s1 + $0x120] sm:$0xff]
  %v81 = vld [vmem:[%s1 + $0x128] sm:$0xf]
  %v82 = vld [vmem:[%s1 + $0x12c] sm:$0xff]
  %v83 = vld [vmem:[%s1 + $0x134] sm:$0xf]
  %v84 = vld [vmem:[%s1 + $0x138] sm:$0xff]
  %v85 = vld [vmem:[%s1 + $0x140] sm:$0xf]
  %v86 = vld [vmem:[%s1 + $0x144] sm:$0xff]
  %v87 = vld [vmem:[%s1 + $0x14c] sm:$0xf]
  %v88 = vld [vmem:[%s1 + $0x150] sm:$0xff]
  %v89 = vld [vmem:[%s1 + $0x158] sm:$0xf]
  %v90 = vld [vmem:[%s1 + $0x15c] sm:$0xff]
  %v91 = vld [vmem:[%s1 + $0x164] sm:$0xf]
  %v92 = vld [vmem:[%s1 + $0x168] sm:$0xff]
  %v93 = vld [vmem:[%s1 + $0x170] sm:$0xf]
  %v94 = vld [vmem:[%s1 + $0x174] sm:$0xff]
  %v95 = vld [vmem:[%s1 + $0x17c] sm:$0xf]
  %v96 = vld [vmem:[%s1 + $0x180] sm:$0xff]
  %v97 = vld [vmem:[%s1 + $0x188] sm:$0xf]
  %v98 = vld [vmem:[%s1 + $0x18c] sm:$0xff]
  %v99 = vld [vmem:[%s1 + $0x194] sm:$0xf]
  %v100 = vld [vmem:[%s1 + $0x198] sm:$0xff]
  %v101 = vld [vmem:[%s1 + $0x1a0] sm:$0xf]
  %v102 = vld [vmem:[%s1 + $0x1a4] sm:$0xff]
  %v103 = vld [vmem:[%s1 + $0x1ac] sm:$0xf]
  %v104 = vld [vmem:[%s1 + $0x1b0] sm:$0xff]
  %v105 = vld [vmem:[%s1 + $0x1b8] sm:$0xf]
  %v106 = vld [vmem:[%s1 + $0x1bc] sm:$0xff]
  %v107 = vld [vmem:[%s1 + $0x1c4] sm:$0xf]
  %v108 = vld [vmem:[%s1 + $0x1c8] sm:$0xff]
  %v109 = vld [vmem:[%s1 + $0x1d0] sm:$0xf]
  %v110 = vld [vmem:[%s1 + $0x1d4] sm:$0xff]
  %v111 = vld [vmem:[%s1 + $0x1dc] sm:$0xf]
  %v112 = vld [vmem:[%s1 + $0x1e0] sm:$0xff]
  %v113 = vld [vmem:[%s1 + $0x1e8] sm:$0xf]
  %v114 = vld [vmem:[%s1 + $0x1ec] sm:$0xff]
  %v115 = vld [vmem:[%s1 + $0x1f4] sm:$0xf]
  %v116 = vld [vmem:[%s1 + $0x1f8] sm:$0xff]
  %v117 = vld [vmem:[%s1 + $0x200] sm:$0xf]
  %v118 = vld [vmem:[%s1 + $0x204] sm:$0xff]
  %v119 = vld [vmem:[%s1 + $0x20c] sm:$0xf]
  %v120 = vld [vmem:[%s1 + $0x210] sm:$0xff]
  %v121 = vld [vmem:[%s1 + $0x218] sm:$0xf]
  %v122 = vld [vmem:[%s1 + $0x21c] sm:$0xff]
  %v123 = vld [vmem:[%s1 + $0x224] sm:$0xf]
  %v124 = vld [vmem:[%s1 + $0x228] sm:$0xff]
  %v125 = vld [vmem:[%s1 + $0x230] sm:$0xf]
  %v126 = vld [vmem:[%s1 + $0x234] sm:$0xff]
  %v127 = vld [vmem:[%s1 + $0x23c] sm:$0xf]
  %v128 = vld [vmem:[%s1 + $0x240] sm:$0xff]
  %v129 = vld [vmem:[%s1 + $0x248] sm:$0xf]
  %v130 = vld [vmem:[%s1 + $0x24c] sm:$0xff]
  %v131 = vld [vmem:[%s1 + $0x254] sm:$0xf]
  %v132 = vld [vmem:[%s1 + $0x258] sm:$0xff]
  %v133 = vld [vmem:[%s1 + $0x260] sm:$0xf]
  %v134 = vld [vmem:[%s1 + $0x264] sm:$0xff]
  %v135 = vld [vmem:[%s1 + $0x26c] sm:$0xf]
  %v136 = vld [vmem:[%s1 + $0x270] sm:$0xff]
  %v137 = vld [vmem:[%s1 + $0x278] sm:$0xf]
  %v138 = vld [vmem:[%s1 + $0x27c] sm:$0xff]
  %v139 = vld [vmem:[%s1 + $0x284] sm:$0xf]
  %v140 = vld [vmem:[%s1 + $0x288] sm:$0xff]
  %v141 = vld [vmem:[%s1 + $0x290] sm:$0xf]
  %v142 = vld [vmem:[%s1 + $0x294] sm:$0xff]
  %v143 = vld [vmem:[%s1 + $0x29c] sm:$0xf]
  %v144 = vld [vmem:[%s1 + $0x2a0] sm:$0xff]
  %v145 = vld [vmem:[%s1 + $0x2a8] sm:$0xf]
  %v146 = vld [vmem:[%s1 + $0x2ac] sm:$0xff]
  %v147 = vld [vmem:[%s1 + $0x2b4] sm:$0xf]
  %v148 = vld [vmem:[%s1 + $0x2b8] sm:$0xff]
  %v149 = vld [vmem:[%s1 + $0x2c0] sm:$0xf]
  %v150 = vld [vmem:[%s1 + $0x2c4] sm:$0xff]
  %v151 = vld [vmem:[%s1 + $0x2cc] sm:$0xf]
  %v152 = vld [vmem:[%s1 + $0x2d0] sm:$0xff]
  %v153 = vld [vmem:[%s1 + $0x2d8] sm:$0xf]
  %v154 = vld [vmem:[%s1 + $0x2dc] sm:$0xff]
  %v155 = vld [vmem:[%s1 + $0x2e4] sm:$0xf]
  %v156 = vld [vmem:[%s1 + $0x2e8] sm:$0xff]
  %v157 = vld [vmem:[%s1 + $0x2f0] sm:$0xf]
  %v158 = vld [vmem:[%s1 + $0x2f4] sm:$0xff]
  %v159 = vld [vmem:[%s1 + $0x2fc] sm:$0xf]
  %v160 = vld [vmem:[%s1 + $0x300] sm:$0xff]
  %v161 = vld [vmem:[%s1 + $0x308] sm:$0xf]
  %v162 = vld [vmem:[%s1 + $0x30c] sm:$0xff]
  %v163 = vld [vmem:[%s1 + $0x314] sm:$0xf]
  %v164 = vld [vmem:[%s1 + $0x318] sm:$0xff]
  %v165 = vld [vmem:[%s1 + $0x320] sm:$0xf]
  %v166 = vld [vmem:[%s1 + $0x324] sm:$0xff]
  %v167 = vld [vmem:[%s1 + $0x32c] sm:$0xf]
  %v168 = vld [vmem:[%s1 + $0x330] sm:$0xff]
  %v169 = vld [vmem:[%s1 + $0x338] sm:$0xf]
  %v170 = vld [vmem:[%s1 + $0x33c] sm:$0xff]
  %v171 = vld [vmem:[%s1 + $0x344] sm:$0xf]
  %v172 = vld [vmem:[%s1 + $0x348] sm:$0xff]
  %v173 = vld [vmem:[%s1 + $0x350] sm:$0xf]
  %v174 = vld [vmem:[%s1 + $0x354] sm:$0xff]
  %v175 = vld [vmem:[%s1 + $0x35c] sm:$0xf]
  %v176 = vld [vmem:[%s1 + $0x360] sm:$0xff]
  %v177 = vld [vmem:[%s1 + $0x368] sm:$0xf]
  %v178 = vld [vmem:[%s1 + $0x36c] sm:$0xff]
  %v179 = vld [vmem:[%s1 + $0x374] sm:$0xf]
  %v180 = vld [vmem:[%s1 + $0x378] sm:$0xff]
  %v181 = vld [vmem:[%s1 + $0x380] sm:$0xf]
  %v182 = vld [vmem:[%s1 + $0x384] sm:$0xff]
  %v183 = vld [vmem:[%s1 + $0x38c] sm:$0xf]
  %v184 = vld [vmem:[%s1 + $0x390] sm:$0xff]
  %v185 = vld [vmem:[%s1 + $0x398] sm:$0xf]
  %v186 = vld [vmem:[%s1 + $0x39c] sm:$0xff]
  %v187 = vld [vmem:[%s1 + $0x3a4] sm:$0xf]
  %v188 = vld [vmem:[%s1 + $0x3a8] sm:$0xff]
  %v189 = vld [vmem:[%s1 + $0x3b0] sm:$0xf]
  %v190 = vld [vmem:[%s1 + $0x3b4] sm:$0xff]
  %v191 = vld [vmem:[%s1 + $0x3bc] sm:$0xf]
  %v192 = vld [vmem:[%s1 + $0x3c0] sm:$0xff]
  %v193 = vld [vmem:[%s1 + $0x3c8] sm:$0xf]
  %v194 = vld [vmem:[%s1 + $0x3cc] sm:$0xff]
  %v195 = vld [vmem:[%s1 + $0x3d4] sm:$0xf]
  %v196 = vld [vmem:[%s1 + $0x3d8] sm:$0xff]
  %v197 = vld [vmem:[%s1 + $0x3e0] sm:$0xf]
  %v198 = vld [vmem:[%s1 + $0x3e4] sm:$0xff]
  %v199 = vld [vmem:[%s1 + $0x3ec] sm:$0xf]
  %v200 = vld [vmem:[%s1 + $0x3f0] sm:$0xff]
  %v201 = vld [vmem:[%s1 + $0x3f8] sm:$0xf]
  %v202 = vld [vmem:[%s1 + $0x3fc] sm:$0xff]
  %v203 = vld [vmem:[%s1 + $0x404] sm:$0xf]
  %v204 = vld [vmem:[%s1 + $0x408] sm:$0xff]
  %v205 = vld [vmem:[%s1 + $0x410] sm:$0xf]
  %v206 = vld [vmem:[%s1 + $0x414] sm:$0xff]
  %v207 = vld [vmem:[%s1 + $0x41c] sm:$0xf]
  %v208 = vld [vmem:[%s1 + $0x420] sm:$0xff]
  %v209 = vld [vmem:[%s1 + $0x428] sm:$0xf]
  %v210 = vld [vmem:[%s1 + $0x42c] sm:$0xff]
  %v211 = vld [vmem:[%s1 + $0x434] sm:$0xf]
  %v212 = vld [vmem:[%s1 + $0x438] sm:$0xff]
  %v213 = vld [vmem:[%s1 + $0x440] sm:$0xf]
  %v214 = vld [vmem:[%s1 + $0x444] sm:$0xff]
  %v215 = vld [vmem:[%s1 + $0x44c] sm:$0xf]
  %v216 = vld [vmem:[%s1 + $0x450] sm:$0xff]
  %v217 = vld [vmem:[%s1 + $0x458] sm:$0xf]
  %v218 = vld [vmem:[%s1 + $0x45c] sm:$0xff]
  %v219 = vld [vmem:[%s1 + $0x464] sm:$0xf]
  %v220 = vld [vmem:[%s1 + $0x468] sm:$0xff]
  %v221 = vld [vmem:[%s1 + $0x470] sm:$0xf]
  %v222 = vld [vmem:[%s1 + $0x474] sm:$0xff]
  %v223 = vld [vmem:[%s1 + $0x47c] sm:$0xf]
  %v224 = vld [vmem:[%s1 + $0x480] sm:$0xff]
  %v225 = vld [vmem:[%s1 + $0x488] sm:$0xf]
  %v226 = vld [vmem:[%s1 + $0x48c] sm:$0xff]
  %v227 = vld [vmem:[%s1 + $0x494] sm:$0xf]
  %v228 = vld [vmem:[%s1 + $0x498] sm:$0xff]
  %v229 = vld [vmem:[%s1 + $0x4a0] sm:$0xf]
  %v230 = vld [vmem:[%s1 + $0x4a4] sm:$0xff]
  %v231 = vld [vmem:[%s1 + $0x4ac] sm:$0xf]
  %v232 = vld [vmem:[%s1 + $0x4b0] sm:$0xff]
  %v233 = vld [vmem:[%s1 + $0x4b8] sm:$0xf]
  %v234 = vld [vmem:[%s1 + $0x4bc] sm:$0xff]
  %v235 = vld [vmem:[%s1 + $0x4c4] sm:$0xf]
  %v236 = vld [vmem:[%s1 + $0x4c8] sm:$0xff]
  %v237 = vld [vmem:[%s1 + $0x4d0] sm:$0xf]
  %v238 = vld [vmem:[%s1 + $0x4d4] sm:$0xff]
  %v239 = vld [vmem:[%s1 + $0x4dc] sm:$0xf]
  %v240 = vld [vmem:[%s1 + $0x4e0] sm:$0xff]
  %v241 = vld [vmem:[%s1 + $0x4e8] sm:$0xf]
  %v242 = vld [vmem:[%s1 + $0x4ec] sm:$0xff]
  %v243 = vld [vmem:[%s1 + $0x4f4] sm:$0xf]
  %v244 = vld [vmem:[%s1 + $0x4f8] sm:$0xff]
  %v245 = vld [vmem:[%s1 + $0x500] sm:$0xf]
  %v246 = vld [vmem:[%s1 + $0x504] sm:$0xff]
  %v247 = vld [vmem:[%s1 + $0x50c] sm:$0xf]
  %v248 = vld [vmem:[%s1 + $0x510] sm:$0xff]
  %v249 = vld [vmem:[%s1 + $0x518] sm:$0xf]
  %v250 = vld [vmem:[%s1 + $0x51c] sm:$0xff]
  %v251 = vld [vmem:[%s1 + $0x524] sm:$0xf]
  %v252 = vld [vmem:[%s1 + $0x528] sm:$0xff]
  %v253 = vld [vmem:[%s1 + $0x530] sm:$0xf]
  %v254 = vld [vmem:[%s1 + $0x534] sm:$0xff]
  %v255 = vld [vmem:[%s1 + $0x53c] sm:$0xf]
  %v256 = vld [vmem:[%s1 + $0x540] sm:$0xff]
  %v257 = vld [vmem:[%s1 + $0x548] sm:$0xf]
  %v258 = vld [vmem:[%s1 + $0x54c] sm:$0xff]
  %v259 = vld [vmem:[%s1 + $0x554] sm:$0xf]
  %v260 = vld [vmem:[%s1 + $0x558] sm:$0xff]
  %v261 = vld [vmem:[%s1 + $0x560] sm:$0xf]
  %v262 = vld [vmem:[%s1 + $0x564] sm:$0xff]
  %v263 = vld [vmem:[%s1 + $0x56c] sm:$0xf]
  %v264 = vld [vmem:[%s1 + $0x570] sm:$0xff]
  %v265 = vld [vmem:[%s1 + $0x578] sm:$0xf]
  %v266 = vld [vmem:[%s1 + $0x57c] sm:$0xff]
  %v267 = vld [vmem:[%s1 + $0x584] sm:$0xf]
  %v268 = vld [vmem:[%s1 + $0x588] sm:$0xff]
  %v269 = vld [vmem:[%s1 + $0x590] sm:$0xf]
  %v270 = vld [vmem:[%s1 + $0x594] sm:$0xff]
  %v271 = vld [vmem:[%s1 + $0x59c] sm:$0xf]
  %v272 = vld [vmem:[%s1 + $0x5a0] sm:$0xff]
  %v273 = vld [vmem:[%s1 + $0x5a8] sm:$0xf]
  %v274 = vld [vmem:[%s1 + $0x5ac] sm:$0xff]
  %v275 = vld [vmem:[%s1 + $0x5b4] sm:$0xf]
  %v276 = vld [vmem:[%s1 + $0x5b8] sm:$0xff]
  %v277 = vld [vmem:[%s1 + $0x5c0] sm:$0xf]
  %v278 = vld [vmem:[%s1 + $0x5c4] sm:$0xff]
  %v279 = vld [vmem:[%s1 + $0x5cc] sm:$0xf]
  %v280 = vld [vmem:[%s1 + $0x5d0] sm:$0xff]
  %v281 = vld [vmem:[%s1 + $0x5d8] sm:$0xf]
  %v282 = vld [vmem:[%s1 + $0x5dc] sm:$0xff]
  %v283 = vld [vmem:[%s1 + $0x5e4] sm:$0xf]
  %v284 = vld [vmem:[%s1 + $0x5e8] sm:$0xff]
  %v285 = vld [vmem:[%s1 + $0x5f0] sm:$0xf]
  %v286 = vld [vmem:[%s1 + $0x5f4] sm:$0xff]
  %v287 = vld [vmem:[%s1 + $0x5fc] sm:$0xf]
  %v288 = vld [vmem:[%s1 + $0x600] sm:$0xff]
  %v289 = vld [vmem:[%s1 + $0x608] sm:$0xf]
  %v290 = vld [vmem:[%s1 + $0x60c] sm:$0xff]
  %v291 = vld [vmem:[%s1 + $0x614] sm:$0xf]
  %v292 = vld [vmem:[%s1 + $0x618] sm:$0xff]
  %v293 = vld [vmem:[%s1 + $0x620] sm:$0xf]
  %v294 = vld [vmem:[%s1 + $0x624] sm:$0xff]
  %v295 = vld [vmem:[%s1 + $0x62c] sm:$0xf]
  %v296 = vld [vmem:[%s1 + $0x630] sm:$0xff]
  %v297 = vld [vmem:[%s1 + $0x638] sm:$0xf]
  %v298 = vld [vmem:[%s1 + $0x63c] sm:$0xff]
  %v299 = vld [vmem:[%s1 + $0x644] sm:$0xf]
  %v300 = vld [vmem:[%s1 + $0x648] sm:$0xff]
  %v301 = vld [vmem:[%s1 + $0x650] sm:$0xf]
  %v302 = vld [vmem:[%s1 + $0x654] sm:$0xff]
  %v303 = vld [vmem:[%s1 + $0x65c] sm:$0xf]
  %v304 = vld [vmem:[%s1 + $0x660] sm:$0xff]
  %v305 = vld [vmem:[%s1 + $0x668] sm:$0xf]
  %v306 = vld [vmem:[%s1 + $0x66c] sm:$0xff]
  %v307 = vld [vmem:[%s1 + $0x674] sm:$0xf]
  %v308 = vld [vmem:[%s1 + $0x678] sm:$0xff]
  %v309 = vld [vmem:[%s1 + $0x680] sm:$0xf]
  %v310 = vld [vmem:[%s1 + $0x684] sm:$0xff]
  %v311 = vld [vmem:[%s1 + $0x68c] sm:$0xf]
  %v312 = vld [vmem:[%s1 + $0x690] sm:$0xff]
  %v313 = vld [vmem:[%s1 + $0x698] sm:$0xf]
  %v314 = vld [vmem:[%s1 + $0x69c] sm:$0xff]
  %v315 = vld [vmem:[%s1 + $0x6a4] sm:$0xf]
  %v316 = vld [vmem:[%s1 + $0x6a8] sm:$0xff]
  %v317 = vld [vmem:[%s1 + $0x6b0] sm:$0xf]
  %v318 = vld [vmem:[%s1 + $0x6b4] sm:$0xff]
  %v319 = vld [vmem:[%s1 + $0x6bc] sm:$0xf]
  %v320 = vld [vmem:[%s1 + $0x6c0] sm:$0xff]
  %v321 = vld [vmem:[%s1 + $0x6c8] sm:$0xf]
  %v322 = vld [vmem:[%s1 + $0x6cc] sm:$0xff]
  %v323 = vld [vmem:[%s1 + $0x6d4] sm:$0xf]
  %v324 = vld [vmem:[%s1 + $0x6d8] sm:$0xff]
  %v325 = vld [vmem:[%s1 + $0x6e0] sm:$0xf]
  %v326 = vld [vmem:[%s1 + $0x6e4] sm:$0xff]
  %v327 = vld [vmem:[%s1 + $0x6ec] sm:$0xf]
  %v328 = vld [vmem:[%s1 + $0x6f0] sm:$0xff]
  %v329 = vld [vmem:[%s1 + $0x6f8] sm:$0xf]
  %v330 = vld [vmem:[%s1 + $0x6fc] sm:$0xff]
  %v331 = vld [vmem:[%s1 + $0x704] sm:$0xf]
  %v332 = vld [vmem:[%s2] sm:$0x7]
  %v334 = vperm.slane %v332, 0
  %v335 = vperm.slane %v332, 1
  %v336 = vperm.slane %v332, 2
  %v345 = vunpack.c.l.b16 %v27
  %v346 = vunpack.c.h.b16 %v27
  %v347 = vunpack.c.l.b16 %v28
  %v348 = vunpack.c.h.b16 %v28
  %v349 = vunpack.c.l.b16 %v29
  %v350 = vunpack.c.h.b16 %v29
  %v351 = vunpack.c.l.b16 %v30
  %v352 = vunpack.c.h.b16 %v30
  %v353 = vunpack.c.l.b16 %v31
  %v354 = vunpack.c.h.b16 %v31
  %v355 = vpack.c.b16 %v345, %v345
  %v356 = vpack.c.b16 %v346, %v346
  %v357 = vpack.c.b16 %v347, %v347
  %v358 = vpack.c.b16 %v348, %v348
  %v359 = vpack.c.b16 %v349, %v349
  %v360 = vpack.c.b16 %v350, %v350
  %v361 = vpack.c.b16 %v351, %v351
  %v362 = vpack.c.b16 %v352, %v352
  %v363 = vpack.c.b16 %v353, %v353
  %v364 = vpack.c.b16 %v354, %v354
  %v674 = vunpack.c.l.b16 %v32
  %v675 = vunpack.c.h.b16 %v32
  %v676 = vunpack.c.l.b16 %v33
  %v677 = vunpack.c.l.b16 %v34
  %v678 = vunpack.c.h.b16 %v34
  %v679 = vunpack.c.l.b16 %v35
  %v680 = vunpack.c.l.b16 %v36
  %v681 = vunpack.c.h.b16 %v36
  %v682 = vunpack.c.l.b16 %v37
  %v683 = vunpack.c.l.b16 %v38
  %v684 = vunpack.c.h.b16 %v38
  %v685 = vunpack.c.l.b16 %v39
  %v686 = vunpack.c.l.b16 %v40
  %v687 = vunpack.c.h.b16 %v40
  %v688 = vunpack.c.l.b16 %v41
  %v689 = vunpack.c.l.b16 %v42
  %v690 = vunpack.c.h.b16 %v42
  %v691 = vunpack.c.l.b16 %v43
  %v692 = vunpack.c.l.b16 %v44
  %v693 = vunpack.c.h.b16 %v44
  %v694 = vunpack.c.l.b16 %v45
  %v695 = vunpack.c.l.b16 %v46
  %v696 = vunpack.c.h.b16 %v46
  %v697 = vunpack.c.l.b16 %v47
  %v698 = vunpack.c.l.b16 %v48
  %v699 = vunpack.c.h.b16 %v48
  %v700 = vunpack.c.l.b16 %v49
  %v701 = vunpack.c.l.b16 %v50
  %v702 = vunpack.c.h.b16 %v50
  %v703 = vunpack.c.l.b16 %v51
  %v704 = vunpack.c.l.b16 %v52
  %v705 = vunpack.c.h.b16 %v52
  %v706 = vunpack.c.l.b16 %v53
  %v707 = vunpack.c.l.b16 %v54
  %v708 = vunpack.c.h.b16 %v54
  %v709 = vunpack.c.l.b16 %v55
  %v710 = vunpack.c.l.b16 %v56
  %v711 = vunpack.c.h.b16 %v56
  %v712 = vunpack.c.l.b16 %v57
  %v713 = vunpack.c.l.b16 %v58
  %v714 = vunpack.c.h.b16 %v58
  %v715 = vunpack.c.l.b16 %v59
  %v716 = vunpack.c.l.b16 %v60
  %v717 = vunpack.c.h.b16 %v60
  %v718 = vunpack.c.l.b16 %v61
  %v719 = vunpack.c.l.b16 %v62
  %v720 = vunpack.c.h.b16 %v62
  %v721 = vunpack.c.l.b16 %v63
  %v722 = vunpack.c.l.b16 %v64
  %v723 = vunpack.c.h.b16 %v64
  %v724 = vunpack.c.l.b16 %v65
  %v725 = vunpack.c.l.b16 %v66
  %v726 = vunpack.c.h.b16 %v66
  %v727 = vunpack.c.l.b16 %v67
  %v728 = vunpack.c.l.b16 %v68
  %v729 = vunpack.c.h.b16 %v68
  %v730 = vunpack.c.l.b16 %v69
  %v731 = vunpack.c.l.b16 %v70
  %v732 = vunpack.c.h.b16 %v70
  %v733 = vunpack.c.l.b16 %v71
  %v734 = vunpack.c.l.b16 %v72
  %v735 = vunpack.c.h.b16 %v72
  %v736 = vunpack.c.l.b16 %v73
  %v737 = vunpack.c.l.b16 %v74
  %v738 = vunpack.c.h.b16 %v74
  %v739 = vunpack.c.l.b16 %v75
  %v740 = vunpack.c.l.b16 %v76
  %v741 = vunpack.c.h.b16 %v76
  %v742 = vunpack.c.l.b16 %v77
  %v743 = vunpack.c.l.b16 %v78
  %v744 = vunpack.c.h.b16 %v78
  %v745 = vunpack.c.l.b16 %v79
  %v746 = vunpack.c.l.b16 %v80
  %v747 = vunpack.c.h.b16 %v80
  %v748 = vunpack.c.l.b16 %v81
  %v749 = vunpack.c.l.b16 %v82
  %v750 = vunpack.c.h.b16 %v82
  %v751 = vunpack.c.l.b16 %v83
  %v752 = vunpack.c.l.b16 %v84
  %v753 = vunpack.c.h.b16 %v84
  %v754 = vunpack.c.l.b16 %v85
  %v755 = vunpack.c.l.b16 %v86
  %v756 = vunpack.c.h.b16 %v86
  %v757 = vunpack.c.l.b16 %v87
  %v758 = vunpack.c.l.b16 %v88
  %v759 = vunpack.c.h.b16 %v88
  %v760 = vunpack.c.l.b16 %v89
  %v761 = vunpack.c.l.b16 %v90
  %v762 = vunpack.c.h.b16 %v90
  %v763 = vunpack.c.l.b16 %v91
  %v764 = vunpack.c.l.b16 %v92
  %v765 = vunpack.c.h.b16 %v92
  %v766 = vunpack.c.l.b16 %v93
  %v767 = vunpack.c.l.b16 %v94
  %v768 = vunpack.c.h.b16 %v94
  %v769 = vunpack.c.l.b16 %v95
  %v770 = vunpack.c.l.b16 %v96
  %v771 = vunpack.c.h.b16 %v96
  %v772 = vunpack.c.l.b16 %v97
  %v773 = vunpack.c.l.b16 %v98
  %v774 = vunpack.c.h.b16 %v98
  %v775 = vunpack.c.l.b16 %v99
  %v776 = vunpack.c.l.b16 %v100
  %v777 = vunpack.c.h.b16 %v100
  %v778 = vunpack.c.l.b16 %v101
  %v779 = vunpack.c.l.b16 %v102
  %v780 = vunpack.c.h.b16 %v102
  %v781 = vunpack.c.l.b16 %v103
  %v782 = vunpack.c.l.b16 %v104
  %v783 = vunpack.c.h.b16 %v104
  %v784 = vunpack.c.l.b16 %v105
  %v785 = vunpack.c.l.b16 %v106
  %v786 = vunpack.c.h.b16 %v106
  %v787 = vunpack.c.l.b16 %v107
  %v788 = vunpack.c.l.b16 %v108
  %v789 = vunpack.c.h.b16 %v108
  %v790 = vunpack.c.l.b16 %v109
  %v791 = vunpack.c.l.b16 %v110
  %v792 = vunpack.c.h.b16 %v110
  %v793 = vunpack.c.l.b16 %v111
  %v794 = vunpack.c.l.b16 %v112
  %v795 = vunpack.c.h.b16 %v112
  %v796 = vunpack.c.l.b16 %v113
  %v797 = vunpack.c.l.b16 %v114
  %v798 = vunpack.c.h.b16 %v114
  %v799 = vunpack.c.l.b16 %v115
  %v800 = vunpack.c.l.b16 %v116
  %v801 = vunpack.c.h.b16 %v116
  %v802 = vunpack.c.l.b16 %v117
  %v803 = vunpack.c.l.b16 %v118
  %v804 = vunpack.c.h.b16 %v118
  %v805 = vunpack.c.l.b16 %v119
  %v806 = vunpack.c.l.b16 %v120
  %v807 = vunpack.c.h.b16 %v120
  %v808 = vunpack.c.l.b16 %v121
  %v809 = vunpack.c.l.b16 %v122
  %v810 = vunpack.c.h.b16 %v122
  %v811 = vunpack.c.l.b16 %v123
  %v812 = vunpack.c.l.b16 %v124
  %v813 = vunpack.c.h.b16 %v124
  %v814 = vunpack.c.l.b16 %v125
  %v815 = vunpack.c.l.b16 %v126
  %v816 = vunpack.c.h.b16 %v126
  %v817 = vunpack.c.l.b16 %v127
  %v818 = vunpack.c.l.b16 %v128
  %v819 = vunpack.c.h.b16 %v128
  %v820 = vunpack.c.l.b16 %v129
  %v821 = vunpack.c.l.b16 %v130
  %v822 = vunpack.c.h.b16 %v130
  %v823 = vunpack.c.l.b16 %v131
  %v824 = vunpack.c.l.b16 %v132
  %v825 = vunpack.c.h.b16 %v132
  %v826 = vunpack.c.l.b16 %v133
  %v827 = vunpack.c.l.b16 %v134
  %v828 = vunpack.c.h.b16 %v134
  %v829 = vunpack.c.l.b16 %v135
  %v830 = vunpack.c.l.b16 %v136
  %v831 = vunpack.c.h.b16 %v136
  %v832 = vunpack.c.l.b16 %v137
  %v833 = vunpack.c.l.b16 %v138
  %v834 = vunpack.c.h.b16 %v138
  %v835 = vunpack.c.l.b16 %v139
  %v836 = vunpack.c.l.b16 %v140
  %v837 = vunpack.c.h.b16 %v140
  %v838 = vunpack.c.l.b16 %v141
  %v839 = vunpack.c.l.b16 %v142
  %v840 = vunpack.c.h.b16 %v142
  %v841 = vunpack.c.l.b16 %v143
  %v842 = vunpack.c.l.b16 %v144
  %v843 = vunpack.c.h.b16 %v144
  %v844 = vunpack.c.l.b16 %v145
  %v845 = vunpack.c.l.b16 %v146
  %v846 = vunpack.c.h.b16 %v146
  %v847 = vunpack.c.l.b16 %v147
  %v848 = vunpack.c.l.b16 %v148
  %v849 = vunpack.c.h.b16 %v148
  %v850 = vunpack.c.l.b16 %v149
  %v851 = vunpack.c.l.b16 %v150
  %v852 = vunpack.c.h.b16 %v150
  %v853 = vunpack.c.l.b16 %v151
  %v854 = vunpack.c.l.b16 %v152
  %v855 = vunpack.c.h.b16 %v152
  %v856 = vunpack.c.l.b16 %v153
  %v857 = vunpack.c.l.b16 %v154
  %v858 = vunpack.c.h.b16 %v154
  %v859 = vunpack.c.l.b16 %v155
  %v860 = vunpack.c.l.b16 %v156
  %v861 = vunpack.c.h.b16 %v156
  %v862 = vunpack.c.l.b16 %v157
  %v863 = vunpack.c.l.b16 %v158
  %v864 = vunpack.c.h.b16 %v158
  %v865 = vunpack.c.l.b16 %v159
  %v866 = vunpack.c.l.b16 %v160
  %v867 = vunpack.c.h.b16 %v160
  %v868 = vunpack.c.l.b16 %v161
  %v869 = vunpack.c.l.b16 %v162
  %v870 = vunpack.c.h.b16 %v162
  %v871 = vunpack.c.l.b16 %v163
  %v872 = vunpack.c.l.b16 %v164
  %v873 = vunpack.c.h.b16 %v164
  %v874 = vunpack.c.l.b16 %v165
  %v875 = vunpack.c.l.b16 %v166
  %v876 = vunpack.c.h.b16 %v166
  %v877 = vunpack.c.l.b16 %v167
  %v878 = vunpack.c.l.b16 %v168
  %v879 = vunpack.c.h.b16 %v168
  %v880 = vunpack.c.l.b16 %v169
  %v881 = vunpack.c.l.b16 %v170
  %v882 = vunpack.c.h.b16 %v170
  %v883 = vunpack.c.l.b16 %v171
  %v884 = vunpack.c.l.b16 %v172
  %v885 = vunpack.c.h.b16 %v172
  %v886 = vunpack.c.l.b16 %v173
  %v887 = vunpack.c.l.b16 %v174
  %v888 = vunpack.c.h.b16 %v174
  %v889 = vunpack.c.l.b16 %v175
  %v890 = vunpack.c.l.b16 %v176
  %v891 = vunpack.c.h.b16 %v176
  %v892 = vunpack.c.l.b16 %v177
  %v893 = vunpack.c.l.b16 %v178
  %v894 = vunpack.c.h.b16 %v178
  %v895 = vunpack.c.l.b16 %v179
  %v896 = vunpack.c.l.b16 %v180
  %v897 = vunpack.c.h.b16 %v180
  %v898 = vunpack.c.l.b16 %v181
  %v899 = vunpack.c.l.b16 %v182
  %v900 = vunpack.c.h.b16 %v182
  %v901 = vunpack.c.l.b16 %v183
  %v902 = vunpack.c.l.b16 %v184
  %v903 = vunpack.c.h.b16 %v184
  %v904 = vunpack.c.l.b16 %v185
  %v905 = vunpack.c.l.b16 %v186
  %v906 = vunpack.c.h.b16 %v186
  %v907 = vunpack.c.l.b16 %v187
  %v908 = vunpack.c.l.b16 %v188
  %v909 = vunpack.c.h.b16 %v188
  %v910 = vunpack.c.l.b16 %v189
  %v911 = vunpack.c.l.b16 %v190
  %v912 = vunpack.c.h.b16 %v190
  %v913 = vunpack.c.l.b16 %v191
  %v914 = vunpack.c.l.b16 %v192
  %v915 = vunpack.c.h.b16 %v192
  %v916 = vunpack.c.l.b16 %v193
  %v917 = vunpack.c.l.b16 %v194
  %v918 = vunpack.c.h.b16 %v194
  %v919 = vunpack.c.l.b16 %v195
  %v920 = vunpack.c.l.b16 %v196
  %v921 = vunpack.c.h.b16 %v196
  %v922 = vunpack.c.l.b16 %v197
  %v923 = vunpack.c.l.b16 %v198
  %v924 = vunpack.c.h.b16 %v198
  %v925 = vunpack.c.l.b16 %v199
  %v926 = vunpack.c.l.b16 %v200
  %v927 = vunpack.c.h.b16 %v200
  %v928 = vunpack.c.l.b16 %v201
  %v929 = vunpack.c.l.b16 %v202
  %v930 = vunpack.c.h.b16 %v202
  %v931 = vunpack.c.l.b16 %v203
  %v932 = vunpack.c.l.b16 %v204
  %v933 = vunpack.c.h.b16 %v204
  %v934 = vunpack.c.l.b16 %v205
  %v935 = vunpack.c.l.b16 %v206
  %v936 = vunpack.c.h.b16 %v206
  %v937 = vunpack.c.l.b16 %v207
  %v938 = vunpack.c.l.b16 %v208
  %v939 = vunpack.c.h.b16 %v208
  %v940 = vunpack.c.l.b16 %v209
  %v941 = vunpack.c.l.b16 %v210
  %v942 = vunpack.c.h.b16 %v210
  %v943 = vunpack.c.l.b16 %v211
  %v944 = vunpack.c.l.b16 %v212
  %v945 = vunpack.c.h.b16 %v212
  %v946 = vunpack.c.l.b16 %v213
  %v947 = vunpack.c.l.b16 %v214
  %v948 = vunpack.c.h.b16 %v214
  %v949 = vunpack.c.l.b16 %v215
  %v950 = vunpack.c.l.b16 %v216
  %v951 = vunpack.c.h.b16 %v216
  %v952 = vunpack.c.l.b16 %v217
  %v953 = vunpack.c.l.b16 %v218
  %v954 = vunpack.c.h.b16 %v218
  %v955 = vunpack.c.l.b16 %v219
  %v956 = vunpack.c.l.b16 %v220
  %v957 = vunpack.c.h.b16 %v220
  %v958 = vunpack.c.l.b16 %v221
  %v959 = vunpack.c.l.b16 %v222
  %v960 = vunpack.c.h.b16 %v222
  %v961 = vunpack.c.l.b16 %v223
  %v962 = vunpack.c.l.b16 %v224
  %v963 = vunpack.c.h.b16 %v224
  %v964 = vunpack.c.l.b16 %v225
  %v965 = vunpack.c.l.b16 %v226
  %v966 = vunpack.c.h.b16 %v226
  %v967 = vunpack.c.l.b16 %v227
  %v968 = vunpack.c.l.b16 %v228
  %v969 = vunpack.c.h.b16 %v228
  %v970 = vunpack.c.l.b16 %v229
  %v971 = vunpack.c.l.b16 %v230
  %v972 = vunpack.c.h.b16 %v230
  %v973 = vunpack.c.l.b16 %v231
  %v974 = vunpack.c.l.b16 %v232
  %v975 = vunpack.c.h.b16 %v232
  %v976 = vunpack.c.l.b16 %v233
  %v977 = vunpack.c.l.b16 %v234
  %v978 = vunpack.c.h.b16 %v234
  %v979 = vunpack.c.l.b16 %v235
  %v980 = vunpack.c.l.b16 %v236
  %v981 = vunpack.c.h.b16 %v236
  %v982 = vunpack.c.l.b16 %v237
  %v983 = vunpack.c.l.b16 %v238
  %v984 = vunpack.c.h.b16 %v238
  %v985 = vunpack.c.l.b16 %v239
  %v986 = vunpack.c.l.b16 %v240
  %v987 = vunpack.c.h.b16 %v240
  %v988 = vunpack.c.l.b16 %v241
  %v989 = vunpack.c.l.b16 %v242
  %v990 = vunpack.c.h.b16 %v242
  %v991 = vunpack.c.l.b16 %v243
  %v992 = vunpack.c.l.b16 %v244
  %v993 = vunpack.c.h.b16 %v244
  %v994 = vunpack.c.l.b16 %v245
  %v995 = vunpack.c.l.b16 %v246
  %v996 = vunpack.c.h.b16 %v246
  %v997 = vunpack.c.l.b16 %v247
  %v998 = vunpack.c.l.b16 %v248
  %v999 = vunpack.c.h.b16 %v248
  %v1000 = vunpack.c.l.b16 %v249
  %v1001 = vunpack.c.l.b16 %v250
  %v1002 = vunpack.c.h.b16 %v250
  %v1003 = vunpack.c.l.b16 %v251
  %v1004 = vunpack.c.l.b16 %v252
  %v1005 = vunpack.c.h.b16 %v252
  %v1006 = vunpack.c.l.b16 %v253
  %v1007 = vunpack.c.l.b16 %v254
  %v1008 = vunpack.c.h.b16 %v254
  %v1009 = vunpack.c.l.b16 %v255
  %v1010 = vunpack.c.l.b16 %v256
  %v1011 = vunpack.c.h.b16 %v256
  %v1012 = vunpack.c.l.b16 %v257
  %v1013 = vunpack.c.l.b16 %v258
  %v1014 = vunpack.c.h.b16 %v258
  %v1015 = vunpack.c.l.b16 %v259
  %v1016 = vunpack.c.l.b16 %v260
  %v1017 = vunpack.c.h.b16 %v260
  %v1018 = vunpack.c.l.b16 %v261
  %v1019 = vunpack.c.l.b16 %v262
  %v1020 = vunpack.c.h.b16 %v262
  %v1021 = vunpack.c.l.b16 %v263
  %v1022 = vunpack.c.l.b16 %v264
  %v1023 = vunpack.c.h.b16 %v264
  %v1024 = vunpack.c.l.b16 %v265
  %v1025 = vunpack.c.l.b16 %v266
  %v1026 = vunpack.c.h.b16 %v266
  %v1027 = vunpack.c.l.b16 %v267
  %v1028 = vunpack.c.l.b16 %v268
  %v1029 = vunpack.c.h.b16 %v268
  %v1030 = vunpack.c.l.b16 %v269
  %v1031 = vunpack.c.l.b16 %v270
  %v1032 = vunpack.c.h.b16 %v270
  %v1033 = vunpack.c.l.b16 %v271
  %v1034 = vunpack.c.l.b16 %v272
  %v1035 = vunpack.c.h.b16 %v272
  %v1036 = vunpack.c.l.b16 %v273
  %v1037 = vunpack.c.l.b16 %v274
  %v1038 = vunpack.c.h.b16 %v274
  %v1039 = vunpack.c.l.b16 %v275
  %v1040 = vunpack.c.l.b16 %v276
  %v1041 = vunpack.c.h.b16 %v276
  %v1042 = vunpack.c.l.b16 %v277
  %v1043 = vunpack.c.l.b16 %v278
  %v1044 = vunpack.c.h.b16 %v278
  %v1045 = vunpack.c.l.b16 %v279
  %v1046 = vunpack.c.l.b16 %v280
  %v1047 = vunpack.c.h.b16 %v280
  %v1048 = vunpack.c.l.b16 %v281
  %v1049 = vunpack.c.l.b16 %v282
  %v1050 = vunpack.c.h.b16 %v282
  %v1051 = vunpack.c.l.b16 %v283
  %v1052 = vunpack.c.l.b16 %v284
  %v1053 = vunpack.c.h.b16 %v284
  %v1054 = vunpack.c.l.b16 %v285
  %v1055 = vunpack.c.l.b16 %v286
  %v1056 = vunpack.c.h.b16 %v286
  %v1057 = vunpack.c.l.b16 %v287
  %v1058 = vunpack.c.l.b16 %v288
  %v1059 = vunpack.c.h.b16 %v288
  %v1060 = vunpack.c.l.b16 %v289
  %v1061 = vunpack.c.l.b16 %v290
  %v1062 = vunpack.c.h.b16 %v290
  %v1063 = vunpack.c.l.b16 %v291
  %v1064 = vunpack.c.l.b16 %v292
  %v1065 = vunpack.c.h.b16 %v292
  %v1066 = vunpack.c.l.b16 %v293
  %v1067 = vunpack.c.l.b16 %v294
  %v1068 = vunpack.c.h.b16 %v294
  %v1069 = vunpack.c.l.b16 %v295
  %v1070 = vunpack.c.l.b16 %v296
  %v1071 = vunpack.c.h.b16 %v296
  %v1072 = vunpack.c.l.b16 %v297
  %v1073 = vunpack.c.l.b16 %v298
  %v1074 = vunpack.c.h.b16 %v298
  %v1075 = vunpack.c.l.b16 %v299
  %v1076 = vunpack.c.l.b16 %v300
  %v1077 = vunpack.c.h.b16 %v300
  %v1078 = vunpack.c.l.b16 %v301
  %v1079 = vunpack.c.l.b16 %v302
  %v1080 = vunpack.c.h.b16 %v302
  %v1081 = vunpack.c.l.b16 %v303
  %v1082 = vunpack.c.l.b16 %v304
  %v1083 = vunpack.c.h.b16 %v304
  %v1084 = vunpack.c.l.b16 %v305
  %v1085 = vunpack.c.l.b16 %v306
  %v1086 = vunpack.c.h.b16 %v306
  %v1087 = vunpack.c.l.b16 %v307
  %v1088 = vunpack.c.l.b16 %v308
  %v1089 = vunpack.c.h.b16 %v308
  %v1090 = vunpack.c.l.b16 %v309
  %v1091 = vunpack.c.l.b16 %v310
  %v1092 = vunpack.c.h.b16 %v310
  %v1093 = vunpack.c.l.b16 %v311
  %v1094 = vunpack.c.l.b16 %v312
  %v1095 = vunpack.c.h.b16 %v312
  %v1096 = vunpack.c.l.b16 %v313
  %v1097 = vunpack.c.l.b16 %v314
  %v1098 = vunpack.c.h.b16 %v314
  %v1099 = vunpack.c.l.b16 %v315
  %v1100 = vunpack.c.l.b16 %v316
  %v1101 = vunpack.c.h.b16 %v316
  %v1102 = vunpack.c.l.b16 %v317
  %v1103 = vunpack.c.l.b16 %v318
  %v1104 = vunpack.c.h.b16 %v318
  %v1105 = vunpack.c.l.b16 %v319
  %v1106 = vunpack.c.l.b16 %v320
  %v1107 = vunpack.c.h.b16 %v320
  %v1108 = vunpack.c.l.b16 %v321
  %v1109 = vunpack.c.l.b16 %v322
  %v1110 = vunpack.c.h.b16 %v322
  %v1111 = vunpack.c.l.b16 %v323
  %v1112 = vunpack.c.l.b16 %v324
  %v1113 = vunpack.c.h.b16 %v324
  %v1114 = vunpack.c.l.b16 %v325
  %v1115 = vunpack.c.l.b16 %v326
  %v1116 = vunpack.c.h.b16 %v326
  %v1117 = vunpack.c.l.b16 %v327
  %v1118 = vunpack.c.l.b16 %v328
  %v1119 = vunpack.c.h.b16 %v328
  %v1120 = vunpack.c.l.b16 %v329
  %v1121 = vunpack.c.l.b16 %v330
  %v1122 = vunpack.c.h.b16 %v330
  %v1123 = vunpack.c.l.b16 %v331
  %v1124 = vpack.c.b16 %v677, %v674
  %v1125 = vpack.c.b16 %v678, %v675
  %v1126 = vpack.c.b16 %v679, %v676
  %v1127 = vpack.c.b16 %v683, %v680
  %v1128 = vpack.c.b16 %v684, %v681
  %v1129 = vpack.c.b16 %v685, %v682
  %v1130 = vpack.c.b16 %v689, %v686
  %v1131 = vpack.c.b16 %v690, %v687
  %v1132 = vpack.c.b16 %v691, %v688
  %v1133 = vpack.c.b16 %v695, %v692
  %v1134 = vpack.c.b16 %v696, %v693
  %v1135 = vpack.c.b16 %v697, %v694
  %v1136 = vpack.c.b16 %v701, %v698
  %v1137 = vpack.c.b16 %v702, %v699
  %v1138 = vpack.c.b16 %v703, %v700
  %v1139 = vpack.c.b16 %v707, %v704
  %v1140 = vpack.c.b16 %v708, %v705
  %v1141 = vpack.c.b16 %v709, %v706
  %v1142 = vpack.c.b16 %v713, %v710
  %v1143 = vpack.c.b16 %v714, %v711
  %v1144 = vpack.c.b16 %v715, %v712
  %v1145 = vpack.c.b16 %v719, %v716
  %v1146 = vpack.c.b16 %v720, %v717
  %v1147 = vpack.c.b16 %v721, %v718
  %v1148 = vpack.c.b16 %v725, %v722
  %v1149 = vpack.c.b16 %v726, %v723
  %v1150 = vpack.c.b16 %v727, %v724
  %v1151 = vpack.c.b16 %v731, %v728
  %v1152 = vpack.c.b16 %v732, %v729
  %v1153 = vpack.c.b16 %v733, %v730
  %v1154 = vpack.c.b16 %v737, %v734
  %v1155 = vpack.c.b16 %v738, %v735
  %v1156 = vpack.c.b16 %v739, %v736
  %v1157 = vpack.c.b16 %v743, %v740
  %v1158 = vpack.c.b16 %v744, %v741
  %v1159 = vpack.c.b16 %v745, %v742
  %v1160 = vpack.c.b16 %v749, %v746
  %v1161 = vpack.c.b16 %v750, %v747
  %v1162 = vpack.c.b16 %v751, %v748
  %v1163 = vpack.c.b16 %v755, %v752
  %v1164 = vpack.c.b16 %v756, %v753
  %v1165 = vpack.c.b16 %v757, %v754
  %v1166 = vpack.c.b16 %v761, %v758
  %v1167 = vpack.c.b16 %v762, %v759
  %v1168 = vpack.c.b16 %v763, %v760
  %v1169 = vpack.c.b16 %v767, %v764
  %v1170 = vpack.c.b16 %v768, %v765
  %v1171 = vpack.c.b16 %v769, %v766
  %v1172 = vpack.c.b16 %v773, %v770
  %v1173 = vpack.c.b16 %v774, %v771
  %v1174 = vpack.c.b16 %v775, %v772
  %v1175 = vpack.c.b16 %v779, %v776
  %v1176 = vpack.c.b16 %v780, %v777
  %v1177 = vpack.c.b16 %v781, %v778
  %v1178 = vpack.c.b16 %v785, %v782
  %v1179 = vpack.c.b16 %v786, %v783
  %v1180 = vpack.c.b16 %v787, %v784
  %v1181 = vpack.c.b16 %v791, %v788
  %v1182 = vpack.c.b16 %v792, %v789
  %v1183 = vpack.c.b16 %v793, %v790
  %v1184 = vpack.c.b16 %v797, %v794
  %v1185 = vpack.c.b16 %v798, %v795
  %v1186 = vpack.c.b16 %v799, %v796
  %v1187 = vpack.c.b16 %v803, %v800
  %v1188 = vpack.c.b16 %v804, %v801
  %v1189 = vpack.c.b16 %v805, %v802
  %v1190 = vpack.c.b16 %v809, %v806
  %v1191 = vpack.c.b16 %v810, %v807
  %v1192 = vpack.c.b16 %v811, %v808
  %v1193 = vpack.c.b16 %v815, %v812
  %v1194 = vpack.c.b16 %v816, %v813
  %v1195 = vpack.c.b16 %v817, %v814
  %v1196 = vpack.c.b16 %v821, %v818
  %v1197 = vpack.c.b16 %v822, %v819
  %v1198 = vpack.c.b16 %v823, %v820
  %v1199 = vpack.c.b16 %v827, %v824
  %v1200 = vpack.c.b16 %v828, %v825
  %v1201 = vpack.c.b16 %v829, %v826
  %v1202 = vpack.c.b16 %v833, %v830
  %v1203 = vpack.c.b16 %v834, %v831
  %v1204 = vpack.c.b16 %v835, %v832
  %v1205 = vpack.c.b16 %v839, %v836
  %v1206 = vpack.c.b16 %v840, %v837
  %v1207 = vpack.c.b16 %v841, %v838
  %v1208 = vpack.c.b16 %v845, %v842
  %v1209 = vpack.c.b16 %v846, %v843
  %v1210 = vpack.c.b16 %v847, %v844
  %v1211 = vpack.c.b16 %v851, %v848
  %v1212 = vpack.c.b16 %v852, %v849
  %v1213 = vpack.c.b16 %v853, %v850
  %v1214 = vpack.c.b16 %v857, %v854
  %v1215 = vpack.c.b16 %v858, %v855
  %v1216 = vpack.c.b16 %v859, %v856
  %v1217 = vpack.c.b16 %v863, %v860
  %v1218 = vpack.c.b16 %v864, %v861
  %v1219 = vpack.c.b16 %v865, %v862
  %v1220 = vpack.c.b16 %v869, %v866
  %v1221 = vpack.c.b16 %v870, %v867
  %v1222 = vpack.c.b16 %v871, %v868
  %v1223 = vpack.c.b16 %v875, %v872
  %v1224 = vpack.c.b16 %v876, %v873
  %v1225 = vpack.c.b16 %v877, %v874
  %v1226 = vpack.c.b16 %v881, %v878
  %v1227 = vpack.c.b16 %v882, %v879
  %v1228 = vpack.c.b16 %v883, %v880
  %v1229 = vpack.c.b16 %v887, %v884
  %v1230 = vpack.c.b16 %v888, %v885
  %v1231 = vpack.c.b16 %v889, %v886
  %v1232 = vpack.c.b16 %v893, %v890
  %v1233 = vpack.c.b16 %v894, %v891
  %v1234 = vpack.c.b16 %v895, %v892
  %v1235 = vpack.c.b16 %v899, %v896
  %v1236 = vpack.c.b16 %v900, %v897
  %v1237 = vpack.c.b16 %v901, %v898
  %v1238 = vpack.c.b16 %v905, %v902
  %v1239 = vpack.c.b16 %v906, %v903
  %v1240 = vpack.c.b16 %v907, %v904
  %v1241 = vpack.c.b16 %v911, %v908
  %v1242 = vpack.c.b16 %v912, %v909
  %v1243 = vpack.c.b16 %v913, %v910
  %v1244 = vpack.c.b16 %v917, %v914
  %v1245 = vpack.c.b16 %v918, %v915
  %v1246 = vpack.c.b16 %v919, %v916
  %v1247 = vpack.c.b16 %v923, %v920
  %v1248 = vpack.c.b16 %v924, %v921
  %v1249 = vpack.c.b16 %v925, %v922
  %v1250 = vpack.c.b16 %v929, %v926
  %v1251 = vpack.c.b16 %v930, %v927
  %v1252 = vpack.c.b16 %v931, %v928
  %v1253 = vpack.c.b16 %v935, %v932
  %v1254 = vpack.c.b16 %v936, %v933
  %v1255 = vpack.c.b16 %v937, %v934
  %v1256 = vpack.c.b16 %v941, %v938
  %v1257 = vpack.c.b16 %v942, %v939
  %v1258 = vpack.c.b16 %v943, %v940
  %v1259 = vpack.c.b16 %v947, %v944
  %v1260 = vpack.c.b16 %v948, %v945
  %v1261 = vpack.c.b16 %v949, %v946
  %v1262 = vpack.c.b16 %v953, %v950
  %v1263 = vpack.c.b16 %v954, %v951
  %v1264 = vpack.c.b16 %v955, %v952
  %v1265 = vpack.c.b16 %v959, %v956
  %v1266 = vpack.c.b16 %v960, %v957
  %v1267 = vpack.c.b16 %v961, %v958
  %v1268 = vpack.c.b16 %v965, %v962
  %v1269 = vpack.c.b16 %v966, %v963
  %v1270 = vpack.c.b16 %v967, %v964
  %v1271 = vpack.c.b16 %v971, %v968
  %v1272 = vpack.c.b16 %v972, %v969
  %v1273 = vpack.c.b16 %v973, %v970
  %v1274 = vpack.c.b16 %v977, %v974
  %v1275 = vpack.c.b16 %v978, %v975
  %v1276 = vpack.c.b16 %v979, %v976
  %v1277 = vpack.c.b16 %v983, %v980
  %v1278 = vpack.c.b16 %v984, %v981
  %v1279 = vpack.c.b16 %v985, %v982
  %v1280 = vpack.c.b16 %v989, %v986
  %v1281 = vpack.c.b16 %v990, %v987
  %v1282 = vpack.c.b16 %v991, %v988
  %v1283 = vpack.c.b16 %v995, %v992
  %v1284 = vpack.c.b16 %v996, %v993
  %v1285 = vpack.c.b16 %v997, %v994
  %v1286 = vpack.c.b16 %v1001, %v998
  %v1287 = vpack.c.b16 %v1002, %v999
  %v1288 = vpack.c.b16 %v1003, %v1000
  %v1289 = vpack.c.b16 %v1007, %v1004
  %v1290 = vpack.c.b16 %v1008, %v1005
  %v1291 = vpack.c.b16 %v1009, %v1006
  %v1292 = vpack.c.b16 %v1013, %v1010
  %v1293 = vpack.c.b16 %v1014, %v1011
  %v1294 = vpack.c.b16 %v1015, %v1012
  %v1295 = vpack.c.b16 %v1019, %v1016
  %v1296 = vpack.c.b16 %v1020, %v1017
  %v1297 = vpack.c.b16 %v1021, %v1018
  %v1298 = vpack.c.b16 %v1025, %v1022
  %v1299 = vpack.c.b16 %v1026, %v1023
  %v1300 = vpack.c.b16 %v1027, %v1024
  %v1301 = vpack.c.b16 %v1031, %v1028
  %v1302 = vpack.c.b16 %v1032, %v1029
  %v1303 = vpack.c.b16 %v1033, %v1030
  %v1304 = vpack.c.b16 %v1037, %v1034
  %v1305 = vpack.c.b16 %v1038, %v1035
  %v1306 = vpack.c.b16 %v1039, %v1036
  %v1307 = vpack.c.b16 %v1043, %v1040
  %v1308 = vpack.c.b16 %v1044, %v1041
  %v1309 = vpack.c.b16 %v1045, %v1042
  %v1310 = vpack.c.b16 %v1049, %v1046
  %v1311 = vpack.c.b16 %v1050, %v1047
  %v1312 = vpack.c.b16 %v1051, %v1048
  %v1313 = vpack.c.b16 %v1055, %v1052
  %v1314 = vpack.c.b16 %v1056, %v1053
  %v1315 = vpack.c.b16 %v1057, %v1054
  %v1316 = vpack.c.b16 %v1061, %v1058
  %v1317 = vpack.c.b16 %v1062, %v1059
  %v1318 = vpack.c.b16 %v1063, %v1060
  %v1319 = vpack.c.b16 %v1067, %v1064
  %v1320 = vpack.c.b16 %v1068, %v1065
  %v1321 = vpack.c.b16 %v1069, %v1066
  %v1322 = vpack.c.b16 %v1073, %v1070
  %v1323 = vpack.c.b16 %v1074, %v1071
  %v1324 = vpack.c.b16 %v1075, %v1072
  %v1325 = vpack.c.b16 %v1079, %v1076
  %v1326 = vpack.c.b16 %v1080, %v1077
  %v1327 = vpack.c.b16 %v1081, %v1078
  %v1328 = vpack.c.b16 %v1085, %v1082
  %v1329 = vpack.c.b16 %v1086, %v1083
  %v1330 = vpack.c.b16 %v1087, %v1084
  %v1331 = vpack.c.b16 %v1091, %v1088
  %v1332 = vpack.c.b16 %v1092, %v1089
  %v1333 = vpack.c.b16 %v1093, %v1090
  %v1334 = vpack.c.b16 %v1097, %v1094
  %v1335 = vpack.c.b16 %v1098, %v1095
  %v1336 = vpack.c.b16 %v1099, %v1096
  %v1337 = vpack.c.b16 %v1103, %v1100
  %v1338 = vpack.c.b16 %v1104, %v1101
  %v1339 = vpack.c.b16 %v1105, %v1102
  %v1340 = vpack.c.b16 %v1109, %v1106
  %v1341 = vpack.c.b16 %v1110, %v1107
  %v1342 = vpack.c.b16 %v1111, %v1108
  %v1343 = vpack.c.b16 %v1115, %v1112
  %v1344 = vpack.c.b16 %v1116, %v1113
  %v1345 = vpack.c.b16 %v1117, %v1114
  %v1346 = vpack.c.b16 %v1121, %v1118
  %v1347 = vpack.c.b16 %v1122, %v1119
  %v1348 = vpack.c.b16 %v1123, %v1120
  %vm1574 = vcmask 392192
  %v1576 = vsel %vm1574, %v364, 0
  %1578 = vmatpush.bf16.msra.mxu0 %v1145
  %1579 = vmatpush.bf16.msra.mxu0 %v1142
  %1580 = vmatpush.bf16.msra.mxu0 %v1139
  %1581 = vmatpush.bf16.msra.mxu0 %v1136
  %1582 = vmatpush.bf16.msra.mxu0 %v1133
  %1583 = vmatpush.bf16.msra.mxu0 %v1130
  %1584 = vmatpush.bf16.msra.mxu0 %v1127
  %1585 = vmatpush.bf16.msra.mxu0 %v1124
  %1586 = vmatmul.bf16.gmra.mxu0 %v355
  %v1587 = vpop.f32.mrf.mxu0
  %v1588 = vadd.f32 %v334, %v1587
  %v1589 = vpop.f32.mrf.mxu0
  %1590 = vdwg.mxu0
  %1591 = vmatpush.bf16.msra.mxu0 %v1169
  %1592 = vmatpush.bf16.msra.mxu0 %v1166
  %1593 = vmatpush.bf16.msra.mxu0 %v1163
  %1594 = vmatpush.bf16.msra.mxu0 %v1160
  %1595 = vmatpush.bf16.msra.mxu0 %v1157
  %1596 = vmatpush.bf16.msra.mxu0 %v1154
  %1597 = vmatpush.bf16.msra.mxu0 %v1151
  %1598 = vmatpush.bf16.msra.mxu0 %v1148
  %1599 = vmatmul.bf16.gmra.mxu0 %v356
  %v1600 = vpop.f32.mrf.mxu0
  %v1601 = vadd.f32 %v1588, %v1600
  %v1602 = vpop.f32.mrf.mxu0
  %1603 = vdwg.mxu0
  %1604 = vmatpush.bf16.msra.mxu0 %v1193
  %1605 = vmatpush.bf16.msra.mxu0 %v1190
  %1606 = vmatpush.bf16.msra.mxu0 %v1187
  %1607 = vmatpush.bf16.msra.mxu0 %v1184
  %1608 = vmatpush.bf16.msra.mxu0 %v1181
  %1609 = vmatpush.bf16.msra.mxu0 %v1178
  %1610 = vmatpush.bf16.msra.mxu0 %v1175
  %1611 = vmatpush.bf16.msra.mxu0 %v1172
  %1612 = vmatmul.bf16.gmra.mxu0 %v357
  %v1613 = vpop.f32.mrf.mxu0
  %v1614 = vadd.f32 %v1601, %v1613
  %v1615 = vpop.f32.mrf.mxu0
  %1616 = vdwg.mxu0
  %1617 = vmatpush.bf16.msra.mxu0 %v1217
  %1618 = vmatpush.bf16.msra.mxu0 %v1214
  %1619 = vmatpush.bf16.msra.mxu0 %v1211
  %1620 = vmatpush.bf16.msra.mxu0 %v1208
  %1621 = vmatpush.bf16.msra.mxu0 %v1205
  %1622 = vmatpush.bf16.msra.mxu0 %v1202
  %1623 = vmatpush.bf16.msra.mxu0 %v1199
  %1624 = vmatpush.bf16.msra.mxu0 %v1196
  %1625 = vmatmul.bf16.gmra.mxu0 %v358
  %v1626 = vpop.f32.mrf.mxu0
  %v1627 = vadd.f32 %v1614, %v1626
  %v1628 = vpop.f32.mrf.mxu0
  %1629 = vdwg.mxu0
  %1630 = vmatpush.bf16.msra.mxu0 %v1241
  %1631 = vmatpush.bf16.msra.mxu0 %v1238
  %1632 = vmatpush.bf16.msra.mxu0 %v1235
  %1633 = vmatpush.bf16.msra.mxu0 %v1232
  %1634 = vmatpush.bf16.msra.mxu0 %v1229
  %1635 = vmatpush.bf16.msra.mxu0 %v1226
  %1636 = vmatpush.bf16.msra.mxu0 %v1223
  %1637 = vmatpush.bf16.msra.mxu0 %v1220
  %1638 = vmatmul.bf16.gmra.mxu0 %v359
  %v1639 = vpop.f32.mrf.mxu0
  %v1640 = vadd.f32 %v1627, %v1639
  %v1641 = vpop.f32.mrf.mxu0
  %1642 = vdwg.mxu0
  %1643 = vmatpush.bf16.msra.mxu0 %v1265
  %1644 = vmatpush.bf16.msra.mxu0 %v1262
  %1645 = vmatpush.bf16.msra.mxu0 %v1259
  %1646 = vmatpush.bf16.msra.mxu0 %v1256
  %1647 = vmatpush.bf16.msra.mxu0 %v1253
  %1648 = vmatpush.bf16.msra.mxu0 %v1250
  %1649 = vmatpush.bf16.msra.mxu0 %v1247
  %1650 = vmatpush.bf16.msra.mxu0 %v1244
  %1651 = vmatmul.bf16.gmra.mxu0 %v360
  %v1652 = vpop.f32.mrf.mxu0
  %v1653 = vadd.f32 %v1640, %v1652
  %v1654 = vpop.f32.mrf.mxu0
  %1655 = vdwg.mxu0
  %1656 = vmatpush.bf16.msra.mxu0 %v1289
  %1657 = vmatpush.bf16.msra.mxu0 %v1286
  %1658 = vmatpush.bf16.msra.mxu0 %v1283
  %1659 = vmatpush.bf16.msra.mxu0 %v1280
  %1660 = vmatpush.bf16.msra.mxu0 %v1277
  %1661 = vmatpush.bf16.msra.mxu0 %v1274
  %1662 = vmatpush.bf16.msra.mxu0 %v1271
  %1663 = vmatpush.bf16.msra.mxu0 %v1268
  %1664 = vmatmul.bf16.gmra.mxu0 %v361
  %v1665 = vpop.f32.mrf.mxu0
  %v1666 = vadd.f32 %v1653, %v1665
  %v1667 = vpop.f32.mrf.mxu0
  %1668 = vdwg.mxu0
  %1669 = vmatpush.bf16.msra.mxu0 %v1313
  %1670 = vmatpush.bf16.msra.mxu0 %v1310
  %1671 = vmatpush.bf16.msra.mxu0 %v1307
  %1672 = vmatpush.bf16.msra.mxu0 %v1304
  %1673 = vmatpush.bf16.msra.mxu0 %v1301
  %1674 = vmatpush.bf16.msra.mxu0 %v1298
  %1675 = vmatpush.bf16.msra.mxu0 %v1295
  %1676 = vmatpush.bf16.msra.mxu0 %v1292
  %1677 = vmatmul.bf16.gmra.mxu0 %v362
  %v1678 = vpop.f32.mrf.mxu0
  %v1679 = vadd.f32 %v1666, %v1678
  %v1680 = vpop.f32.mrf.mxu0
  %1681 = vdwg.mxu0
  %1682 = vmatpush.bf16.msra.mxu0 %v1337
  %1683 = vmatpush.bf16.msra.mxu0 %v1334
  %1684 = vmatpush.bf16.msra.mxu0 %v1331
  %1685 = vmatpush.bf16.msra.mxu0 %v1328
  %1686 = vmatpush.bf16.msra.mxu0 %v1325
  %1687 = vmatpush.bf16.msra.mxu0 %v1322
  %1688 = vmatpush.bf16.msra.mxu0 %v1319
  %1689 = vmatpush.bf16.msra.mxu0 %v1316
  %1690 = vmatmul.bf16.gmra.mxu0 %v363
  %v1691 = vpop.f32.mrf.mxu0
  %v1692 = vadd.f32 %v1679, %v1691
  %v1693 = vpop.f32.mrf.mxu0
  %1694 = vdwg.mxu0
  %1695 = vmatpush.bf16.msra.mxu0 0
  %1696 = vmatpush.bf16.msra.mxu0 0
  %1697 = vmatpush.bf16.msra.mxu0 0
  %1698 = vmatpush.bf16.msra.mxu0 0
  %1699 = vmatpush.bf16.msra.mxu0 0
  %1700 = vmatpush.bf16.msra.mxu0 %v1346
  %1701 = vmatpush.bf16.msra.mxu0 %v1343
  %1702 = vmatpush.bf16.msra.mxu0 %v1340
  %1703 = vmatmul.bf16.gmra.mxu0 %v1576
  %v1704 = vpop.f32.mrf.mxu0
  %v1705 = vadd.f32 %v1692, %v1704
  %v1706 = vpop.f32.mrf.mxu0
  %1707 = vdwg.mxu0
  %1708 = vmatpush.bf16.msra.mxu0 %v1146
  %1709 = vmatpush.bf16.msra.mxu0 %v1143
  %1710 = vmatpush.bf16.msra.mxu0 %v1140
  %1711 = vmatpush.bf16.msra.mxu0 %v1137
  %1712 = vmatpush.bf16.msra.mxu0 %v1134
  %1713 = vmatpush.bf16.msra.mxu0 %v1131
  %1714 = vmatpush.bf16.msra.mxu0 %v1128
  %1715 = vmatpush.bf16.msra.mxu0 %v1125
  %1716 = vmatmul.bf16.gmra.mxu0 %v355
  %v1717 = vpop.f32.mrf.mxu0
  %v1718 = vadd.f32 %v335, %v1717
  %v1719 = vpop.f32.mrf.mxu0
  %1720 = vdwg.mxu0
  %1721 = vmatpush.bf16.msra.mxu0 %v1170
  %1722 = vmatpush.bf16.msra.mxu0 %v1167
  %1723 = vmatpush.bf16.msra.mxu0 %v1164
  %1724 = vmatpush.bf16.msra.mxu0 %v1161
  %1725 = vmatpush.bf16.msra.mxu0 %v1158
  %1726 = vmatpush.bf16.msra.mxu0 %v1155
  %1727 = vmatpush.bf16.msra.mxu0 %v1152
  %1728 = vmatpush.bf16.msra.mxu0 %v1149
  %1729 = vmatmul.bf16.gmra.mxu0 %v356
  %v1730 = vpop.f32.mrf.mxu0
  %v1731 = vadd.f32 %v1718, %v1730
  %v1732 = vpop.f32.mrf.mxu0
  %1733 = vdwg.mxu0
  %1734 = vmatpush.bf16.msra.mxu0 %v1194
  %1735 = vmatpush.bf16.msra.mxu0 %v1191
  %1736 = vmatpush.bf16.msra.mxu0 %v1188
  %1737 = vmatpush.bf16.msra.mxu0 %v1185
  %1738 = vmatpush.bf16.msra.mxu0 %v1182
  %1739 = vmatpush.bf16.msra.mxu0 %v1179
  %1740 = vmatpush.bf16.msra.mxu0 %v1176
  %1741 = vmatpush.bf16.msra.mxu0 %v1173
  %1742 = vmatmul.bf16.gmra.mxu0 %v357
  %v1743 = vpop.f32.mrf.mxu0
  %v1744 = vadd.f32 %v1731, %v1743
  %v1745 = vpop.f32.mrf.mxu0
  %1746 = vdwg.mxu0
  %1747 = vmatpush.bf16.msra.mxu0 %v1218
  %1748 = vmatpush.bf16.msra.mxu0 %v1215
  %1749 = vmatpush.bf16.msra.mxu0 %v1212
  %1750 = vmatpush.bf16.msra.mxu0 %v1209
  %1751 = vmatpush.bf16.msra.mxu0 %v1206
  %1752 = vmatpush.bf16.msra.mxu0 %v1203
  %1753 = vmatpush.bf16.msra.mxu0 %v1200
  %1754 = vmatpush.bf16.msra.mxu0 %v1197
  %1755 = vmatmul.bf16.gmra.mxu0 %v358
  %v1756 = vpop.f32.mrf.mxu0
  %v1757 = vadd.f32 %v1744, %v1756
  %v1758 = vpop.f32.mrf.mxu0
  %1759 = vdwg.mxu0
  %1760 = vmatpush.bf16.msra.mxu0 %v1242
  %1761 = vmatpush.bf16.msra.mxu0 %v1239
  %1762 = vmatpush.bf16.msra.mxu0 %v1236
  %1763 = vmatpush.bf16.msra.mxu0 %v1233
  %1764 = vmatpush.bf16.msra.mxu0 %v1230
  %1765 = vmatpush.bf16.msra.mxu0 %v1227
  %1766 = vmatpush.bf16.msra.mxu0 %v1224
  %1767 = vmatpush.bf16.msra.mxu0 %v1221
  %1768 = vmatmul.bf16.gmra.mxu0 %v359
  %v1769 = vpop.f32.mrf.mxu0
  %v1770 = vadd.f32 %v1757, %v1769
  %v1771 = vpop.f32.mrf.mxu0
  %1772 = vdwg.mxu0
  %1773 = vmatpush.bf16.msra.mxu0 %v1266
  %1774 = vmatpush.bf16.msra.mxu0 %v1263
  %1775 = vmatpush.bf16.msra.mxu0 %v1260
  %1776 = vmatpush.bf16.msra.mxu0 %v1257
  %1777 = vmatpush.bf16.msra.mxu0 %v1254
  %1778 = vmatpush.bf16.msra.mxu0 %v1251
  %1779 = vmatpush.bf16.msra.mxu0 %v1248
  %1780 = vmatpush.bf16.msra.mxu0 %v1245
  %1781 = vmatmul.bf16.gmra.mxu0 %v360
  %v1782 = vpop.f32.mrf.mxu0
  %v1783 = vadd.f32 %v1770, %v1782
  %v1784 = vpop.f32.mrf.mxu0
  %1785 = vdwg.mxu0
  %1786 = vmatpush.bf16.msra.mxu0 %v1290
  %1787 = vmatpush.bf16.msra.mxu0 %v1287
  %1788 = vmatpush.bf16.msra.mxu0 %v1284
  %1789 = vmatpush.bf16.msra.mxu0 %v1281
  %1790 = vmatpush.bf16.msra.mxu0 %v1278
  %1791 = vmatpush.bf16.msra.mxu0 %v1275
  %1792 = vmatpush.bf16.msra.mxu0 %v1272
  %1793 = vmatpush.bf16.msra.mxu0 %v1269
  %1794 = vmatmul.bf16.gmra.mxu0 %v361
  %v1795 = vpop.f32.mrf.mxu0
  %v1796 = vadd.f32 %v1783, %v1795
  %v1797 = vpop.f32.mrf.mxu0
  %1798 = vdwg.mxu0
  %1799 = vmatpush.bf16.msra.mxu0 %v1314
  %1800 = vmatpush.bf16.msra.mxu0 %v1311
  %1801 = vmatpush.bf16.msra.mxu0 %v1308
  %1802 = vmatpush.bf16.msra.mxu0 %v1305
  %1803 = vmatpush.bf16.msra.mxu0 %v1302
  %1804 = vmatpush.bf16.msra.mxu0 %v1299
  %1805 = vmatpush.bf16.msra.mxu0 %v1296
  %1806 = vmatpush.bf16.msra.mxu0 %v1293
  %1807 = vmatmul.bf16.gmra.mxu0 %v362
  %v1808 = vpop.f32.mrf.mxu0
  %v1809 = vadd.f32 %v1796, %v1808
  %v1810 = vpop.f32.mrf.mxu0
  %1811 = vdwg.mxu0
  %1812 = vmatpush.bf16.msra.mxu0 %v1338
  %1813 = vmatpush.bf16.msra.mxu0 %v1335
  %1814 = vmatpush.bf16.msra.mxu0 %v1332
  %1815 = vmatpush.bf16.msra.mxu0 %v1329
  %1816 = vmatpush.bf16.msra.mxu0 %v1326
  %1817 = vmatpush.bf16.msra.mxu0 %v1323
  %1818 = vmatpush.bf16.msra.mxu0 %v1320
  %1819 = vmatpush.bf16.msra.mxu0 %v1317
  %1820 = vmatmul.bf16.gmra.mxu0 %v363
  %v1821 = vpop.f32.mrf.mxu0
  %v1822 = vadd.f32 %v1809, %v1821
  %v1823 = vpop.f32.mrf.mxu0
  %1824 = vdwg.mxu0
  %1825 = vmatpush.bf16.msra.mxu0 0
  %1826 = vmatpush.bf16.msra.mxu0 0
  %1827 = vmatpush.bf16.msra.mxu0 0
  %1828 = vmatpush.bf16.msra.mxu0 0
  %1829 = vmatpush.bf16.msra.mxu0 0
  %1830 = vmatpush.bf16.msra.mxu0 %v1347
  %1831 = vmatpush.bf16.msra.mxu0 %v1344
  %1832 = vmatpush.bf16.msra.mxu0 %v1341
  %1833 = vmatmul.bf16.gmra.mxu0 %v1576
  %v1834 = vpop.f32.mrf.mxu0
  %v1835 = vadd.f32 %v1822, %v1834
  %v1836 = vpop.f32.mrf.mxu0
  %1837 = vdwg.mxu0
  %1838 = vmatpush.bf16.msra.mxu0 %v1147
  %1839 = vmatpush.bf16.msra.mxu0 %v1144
  %1840 = vmatpush.bf16.msra.mxu0 %v1141
  %1841 = vmatpush.bf16.msra.mxu0 %v1138
  %1842 = vmatpush.bf16.msra.mxu0 %v1135
  %1843 = vmatpush.bf16.msra.mxu0 %v1132
  %1844 = vmatpush.bf16.msra.mxu0 %v1129
  %1845 = vmatpush.bf16.msra.mxu0 %v1126
  %1846 = vmatmul.bf16.gmra.mxu0 %v355
  %v1847 = vpop.f32.mrf.mxu0
  %v1848 = vadd.f32 %v336, %v1847
  %v1849 = vpop.f32.mrf.mxu0
  %1850 = vdwg.mxu0
  %1851 = vmatpush.bf16.msra.mxu0 %v1171
  %1852 = vmatpush.bf16.msra.mxu0 %v1168
  %1853 = vmatpush.bf16.msra.mxu0 %v1165
  %1854 = vmatpush.bf16.msra.mxu0 %v1162
  %1855 = vmatpush.bf16.msra.mxu0 %v1159
  %1856 = vmatpush.bf16.msra.mxu0 %v1156
  %1857 = vmatpush.bf16.msra.mxu0 %v1153
  %1858 = vmatpush.bf16.msra.mxu0 %v1150
  %1859 = vmatmul.bf16.gmra.mxu0 %v356
  %v1860 = vpop.f32.mrf.mxu0
  %v1861 = vadd.f32 %v1848, %v1860
  %v1862 = vpop.f32.mrf.mxu0
  %1863 = vdwg.mxu0
  %1864 = vmatpush.bf16.msra.mxu0 %v1195
  %1865 = vmatpush.bf16.msra.mxu0 %v1192
  %1866 = vmatpush.bf16.msra.mxu0 %v1189
  %1867 = vmatpush.bf16.msra.mxu0 %v1186
  %1868 = vmatpush.bf16.msra.mxu0 %v1183
  %1869 = vmatpush.bf16.msra.mxu0 %v1180
  %1870 = vmatpush.bf16.msra.mxu0 %v1177
  %1871 = vmatpush.bf16.msra.mxu0 %v1174
  %1872 = vmatmul.bf16.gmra.mxu0 %v357
  %v1873 = vpop.f32.mrf.mxu0
  %v1874 = vadd.f32 %v1861, %v1873
  %v1875 = vpop.f32.mrf.mxu0
  %1876 = vdwg.mxu0
  %1877 = vmatpush.bf16.msra.mxu0 %v1219
  %1878 = vmatpush.bf16.msra.mxu0 %v1216
  %1879 = vmatpush.bf16.msra.mxu0 %v1213
  %1880 = vmatpush.bf16.msra.mxu0 %v1210
  %1881 = vmatpush.bf16.msra.mxu0 %v1207
  %1882 = vmatpush.bf16.msra.mxu0 %v1204
  %1883 = vmatpush.bf16.msra.mxu0 %v1201
  %1884 = vmatpush.bf16.msra.mxu0 %v1198
  %1885 = vmatmul.bf16.gmra.mxu0 %v358
  %v1886 = vpop.f32.mrf.mxu0
  %v1887 = vadd.f32 %v1874, %v1886
  %v1888 = vpop.f32.mrf.mxu0
  %1889 = vdwg.mxu0
  %1890 = vmatpush.bf16.msra.mxu0 %v1243
  %1891 = vmatpush.bf16.msra.mxu0 %v1240
  %1892 = vmatpush.bf16.msra.mxu0 %v1237
  %1893 = vmatpush.bf16.msra.mxu0 %v1234
  %1894 = vmatpush.bf16.msra.mxu0 %v1231
  %1895 = vmatpush.bf16.msra.mxu0 %v1228
  %1896 = vmatpush.bf16.msra.mxu0 %v1225
  %1897 = vmatpush.bf16.msra.mxu0 %v1222
  %1898 = vmatmul.bf16.gmra.mxu0 %v359
  %v1899 = vpop.f32.mrf.mxu0
  %v1900 = vadd.f32 %v1887, %v1899
  %v1901 = vpop.f32.mrf.mxu0
  %1902 = vdwg.mxu0
  %1903 = vmatpush.bf16.msra.mxu0 %v1267
  %1904 = vmatpush.bf16.msra.mxu0 %v1264
  %1905 = vmatpush.bf16.msra.mxu0 %v1261
  %1906 = vmatpush.bf16.msra.mxu0 %v1258
  %1907 = vmatpush.bf16.msra.mxu0 %v1255
  %1908 = vmatpush.bf16.msra.mxu0 %v1252
  %1909 = vmatpush.bf16.msra.mxu0 %v1249
  %1910 = vmatpush.bf16.msra.mxu0 %v1246
  %1911 = vmatmul.bf16.gmra.mxu0 %v360
  %v1912 = vpop.f32.mrf.mxu0
  %v1913 = vadd.f32 %v1900, %v1912
  %v1914 = vpop.f32.mrf.mxu0
  %1915 = vdwg.mxu0
  %1916 = vmatpush.bf16.msra.mxu0 %v1291
  %1917 = vmatpush.bf16.msra.mxu0 %v1288
  %1918 = vmatpush.bf16.msra.mxu0 %v1285
  %1919 = vmatpush.bf16.msra.mxu0 %v1282
  %1920 = vmatpush.bf16.msra.mxu0 %v1279
  %1921 = vmatpush.bf16.msra.mxu0 %v1276
  %1922 = vmatpush.bf16.msra.mxu0 %v1273
  %1923 = vmatpush.bf16.msra.mxu0 %v1270
  %1924 = vmatmul.bf16.gmra.mxu0 %v361
  %v1925 = vpop.f32.mrf.mxu0
  %v1926 = vadd.f32 %v1913, %v1925
  %v1927 = vpop.f32.mrf.mxu0
  %1928 = vdwg.mxu0
  %1929 = vmatpush.bf16.msra.mxu0 %v1315
  %1930 = vmatpush.bf16.msra.mxu0 %v1312
  %1931 = vmatpush.bf16.msra.mxu0 %v1309
  %1932 = vmatpush.bf16.msra.mxu0 %v1306
  %1933 = vmatpush.bf16.msra.mxu0 %v1303
  %1934 = vmatpush.bf16.msra.mxu0 %v1300
  %1935 = vmatpush.bf16.msra.mxu0 %v1297
  %1936 = vmatpush.bf16.msra.mxu0 %v1294
  %1937 = vmatmul.bf16.gmra.mxu0 %v362
  %v1938 = vpop.f32.mrf.mxu0
  %v1939 = vadd.f32 %v1926, %v1938
  %v1940 = vpop.f32.mrf.mxu0
  %1941 = vdwg.mxu0
  %1942 = vmatpush.bf16.msra.mxu0 %v1339
  %1943 = vmatpush.bf16.msra.mxu0 %v1336
  %1944 = vmatpush.bf16.msra.mxu0 %v1333
  %1945 = vmatpush.bf16.msra.mxu0 %v1330
  %1946 = vmatpush.bf16.msra.mxu0 %v1327
  %1947 = vmatpush.bf16.msra.mxu0 %v1324
  %1948 = vmatpush.bf16.msra.mxu0 %v1321
  %1949 = vmatpush.bf16.msra.mxu0 %v1318
  %1950 = vmatmul.bf16.gmra.mxu0 %v363
  %v1951 = vpop.f32.mrf.mxu0
  %v1952 = vadd.f32 %v1939, %v1951
  %v1953 = vpop.f32.mrf.mxu0
  %1954 = vdwg.mxu0
  %1955 = vmatpush.bf16.msra.mxu0 0
  %1956 = vmatpush.bf16.msra.mxu0 0
  %1957 = vmatpush.bf16.msra.mxu0 0
  %1958 = vmatpush.bf16.msra.mxu0 0
  %1959 = vmatpush.bf16.msra.mxu0 0
  %1960 = vmatpush.bf16.msra.mxu0 %v1348
  %1961 = vmatpush.bf16.msra.mxu0 %v1345
  %1962 = vmatpush.bf16.msra.mxu0 %v1342
  %1963 = vmatmul.bf16.gmra.mxu0 %v1576
  %v1964 = vpop.f32.mrf.mxu0
  %v1965 = vadd.f32 %v1952, %v1964
  %v1966 = vpop.f32.mrf.mxu0
  %1967 = vdwg.mxu0
  %v1968 = vtanh.pop %v1705
  %v1969 = vtanh.pop %v1835
  %v1970 = vtanh.pop %v1965
  %v1971 = vpack.c.bf16 %v1968, %v1968
  %v1972 = vpack.c.bf16 %v1969, %v1969
  %v1973 = vpack.c.bf16 %v1970, %v1970
  %v1974 = vld [vmem:[%s3] sm:$0xff]
  %v1975 = vld [vmem:[%s3 + $0x8] sm:$0xff]
  %v1976 = vld [vmem:[%s3 + $0x10] sm:$0xff]
  %v1977 = vld [vmem:[%s3 + $0x18] sm:$0xff]
  %v1978 = vld [vmem:[%s3 + $0x20] sm:$0xff]
  %v1979 = vld [vmem:[%s3 + $0x28] sm:$0xff]
  %v1980 = vld [vmem:[%s3 + $0x30] sm:$0xff]
  %v1981 = vld [vmem:[%s3 + $0x38] sm:$0xff]
  %v1982 = vld [vmem:[%s3 + $0x40] sm:$0xff]
  %v1983 = vld [vmem:[%s3 + $0x48] sm:$0xff]
  %v1984 = vld [vmem:[%s3 + $0x50] sm:$0xff]
  %v1985 = vld [vmem:[%s3 + $0x58] sm:$0xff]
  %v1986 = vld [vmem:[%s3 + $0x60] sm:$0xff]
  %v1987 = vld [vmem:[%s3 + $0x68] sm:$0xff]
  %v1988 = vld [vmem:[%s3 + $0x70] sm:$0xff]
  %v1989 = vld [vmem:[%s3 + $0x78] sm:$0xff]
  %v1990 = vld [vmem:[%s3 + $0x80] sm:$0xff]
  %v1991 = vld [vmem:[%s3 + $0x88] sm:$0xff]
  %v1992 = vld [vmem:[%s3 + $0x90] sm:$0xff]
  %v1993 = vld [vmem:[%s3 + $0x98] sm:$0xff]
  %v1994 = vld [vmem:[%s3 + $0xa0] sm:$0xff]
  %v1995 = vld [vmem:[%s3 + $0xa8] sm:$0xff]
  %v1996 = vld [vmem:[%s3 + $0xb0] sm:$0xff]
  %v1997 = vld [vmem:[%s3 + $0xb8] sm:$0xff]
  %v1998 = vld [vmem:[%s3 + $0xc0] sm:$0xff]
  %v1999 = vld [vmem:[%s3 + $0xc8] sm:$0xff]
  %v2000 = vld [vmem:[%s3 + $0xd0] sm:$0xff]
  %v2001 = vld [vmem:[%s3 + $0xd8] sm:$0xff]
  %v2002 = vld [vmem:[%s3 + $0xe0] sm:$0xff]
  %v2003 = vld [vmem:[%s3 + $0xe8] sm:$0xff]
  %v2004 = vld [vmem:[%s3 + $0xf0] sm:$0xff]
  %v2005 = vld [vmem:[%s3 + $0xf8] sm:$0xff]
  %v2006 = vld [vmem:[%s3 + $0x100] sm:$0xff]
  %v2007 = vld [vmem:[%s3 + $0x108] sm:$0xff]
  %v2008 = vld [vmem:[%s3 + $0x110] sm:$0xff]
  %v2009 = vld [vmem:[%s3 + $0x118] sm:$0xff]
  %v2010 = vld [vmem:[%s3 + $0x120] sm:$0xff]
  %v2011 = vld [vmem:[%s3 + $0x128] sm:$0xff]
  %v2012 = vld [vmem:[%s3 + $0x130] sm:$0xff]
  %v2013 = vld [vmem:[%s3 + $0x138] sm:$0xff]
  %v2014 = vld [vmem:[%s3 + $0x140] sm:$0xff]
  %v2015 = vld [vmem:[%s3 + $0x148] sm:$0xff]
  %v2016 = vld [vmem:[%s3 + $0x150] sm:$0xff]
  %v2017 = vld [vmem:[%s3 + $0x158] sm:$0xff]
  %v2018 = vld [vmem:[%s3 + $0x160] sm:$0xff]
  %v2019 = vld [vmem:[%s3 + $0x168] sm:$0xff]
  %v2020 = vld [vmem:[%s3 + $0x170] sm:$0xff]
  %v2021 = vld [vmem:[%s3 + $0x178] sm:$0xff]
  %v2022 = vld [vmem:[%s4] sm:$0x3]
  %v2024 = vperm.slane %v2022, 0
  %v2025 = vperm.slane %v2022, 1
  %v2076 = vunpack.c.l.b16 %v1974
  %v2077 = vunpack.c.h.b16 %v1974
  %v2078 = vunpack.c.l.b16 %v1975
  %v2079 = vunpack.c.h.b16 %v1975
  %v2080 = vunpack.c.l.b16 %v1976
  %v2081 = vunpack.c.h.b16 %v1976
  %v2082 = vunpack.c.l.b16 %v1977
  %v2083 = vunpack.c.h.b16 %v1977
  %v2084 = vunpack.c.l.b16 %v1978
  %v2085 = vunpack.c.h.b16 %v1978
  %v2086 = vunpack.c.l.b16 %v1979
  %v2087 = vunpack.c.h.b16 %v1979
  %v2088 = vunpack.c.l.b16 %v1980
  %v2089 = vunpack.c.h.b16 %v1980
  %v2090 = vunpack.c.l.b16 %v1981
  %v2091 = vunpack.c.h.b16 %v1981
  %v2092 = vunpack.c.l.b16 %v1982
  %v2093 = vunpack.c.h.b16 %v1982
  %v2094 = vunpack.c.l.b16 %v1983
  %v2095 = vunpack.c.h.b16 %v1983
  %v2096 = vunpack.c.l.b16 %v1984
  %v2097 = vunpack.c.h.b16 %v1984
  %v2098 = vunpack.c.l.b16 %v1985
  %v2099 = vunpack.c.h.b16 %v1985
  %v2100 = vunpack.c.l.b16 %v1986
  %v2101 = vunpack.c.h.b16 %v1986
  %v2102 = vunpack.c.l.b16 %v1987
  %v2103 = vunpack.c.h.b16 %v1987
  %v2104 = vunpack.c.l.b16 %v1988
  %v2105 = vunpack.c.h.b16 %v1988
  %v2106 = vunpack.c.l.b16 %v1989
  %v2107 = vunpack.c.h.b16 %v1989
  %v2108 = vunpack.c.l.b16 %v1990
  %v2109 = vunpack.c.h.b16 %v1990
  %v2110 = vunpack.c.l.b16 %v1991
  %v2111 = vunpack.c.h.b16 %v1991
  %v2112 = vunpack.c.l.b16 %v1992
  %v2113 = vunpack.c.h.b16 %v1992
  %v2114 = vunpack.c.l.b16 %v1993
  %v2115 = vunpack.c.h.b16 %v1993
  %v2116 = vunpack.c.l.b16 %v1994
  %v2117 = vunpack.c.h.b16 %v1994
  %v2118 = vunpack.c.l.b16 %v1995
  %v2119 = vunpack.c.h.b16 %v1995
  %v2120 = vunpack.c.l.b16 %v1996
  %v2121 = vunpack.c.h.b16 %v1996
  %v2122 = vunpack.c.l.b16 %v1997
  %v2123 = vunpack.c.h.b16 %v1997
  %v2124 = vunpack.c.l.b16 %v1998
  %v2125 = vunpack.c.h.b16 %v1998
  %v2126 = vunpack.c.l.b16 %v1999
  %v2127 = vunpack.c.h.b16 %v1999
  %v2128 = vunpack.c.l.b16 %v2000
  %v2129 = vunpack.c.h.b16 %v2000
  %v2130 = vunpack.c.l.b16 %v2001
  %v2131 = vunpack.c.h.b16 %v2001
  %v2132 = vunpack.c.l.b16 %v2002
  %v2133 = vunpack.c.h.b16 %v2002
  %v2134 = vunpack.c.l.b16 %v2003
  %v2135 = vunpack.c.h.b16 %v2003
  %v2136 = vunpack.c.l.b16 %v2004
  %v2137 = vunpack.c.h.b16 %v2004
  %v2138 = vunpack.c.l.b16 %v2005
  %v2139 = vunpack.c.h.b16 %v2005
  %v2140 = vunpack.c.l.b16 %v2006
  %v2141 = vunpack.c.h.b16 %v2006
  %v2142 = vunpack.c.l.b16 %v2007
  %v2143 = vunpack.c.h.b16 %v2007
  %v2144 = vunpack.c.l.b16 %v2008
  %v2145 = vunpack.c.h.b16 %v2008
  %v2146 = vunpack.c.l.b16 %v2009
  %v2147 = vunpack.c.h.b16 %v2009
  %v2148 = vunpack.c.l.b16 %v2010
  %v2149 = vunpack.c.h.b16 %v2010
  %v2150 = vunpack.c.l.b16 %v2011
  %v2151 = vunpack.c.h.b16 %v2011
  %v2152 = vunpack.c.l.b16 %v2012
  %v2153 = vunpack.c.h.b16 %v2012
  %v2154 = vunpack.c.l.b16 %v2013
  %v2155 = vunpack.c.h.b16 %v2013
  %v2156 = vunpack.c.l.b16 %v2014
  %v2157 = vunpack.c.h.b16 %v2014
  %v2158 = vunpack.c.l.b16 %v2015
  %v2159 = vunpack.c.h.b16 %v2015
  %v2160 = vunpack.c.l.b16 %v2016
  %v2161 = vunpack.c.h.b16 %v2016
  %v2162 = vunpack.c.l.b16 %v2017
  %v2163 = vunpack.c.h.b16 %v2017
  %v2164 = vunpack.c.l.b16 %v2018
  %v2165 = vunpack.c.h.b16 %v2018
  %v2166 = vunpack.c.l.b16 %v2019
  %v2167 = vunpack.c.h.b16 %v2019
  %v2168 = vunpack.c.l.b16 %v2020
  %v2169 = vunpack.c.h.b16 %v2020
  %v2170 = vunpack.c.l.b16 %v2021
  %v2171 = vunpack.c.h.b16 %v2021
  %v2172 = vpack.c.b16 %v2078, %v2076
  %v2173 = vpack.c.b16 %v2079, %v2077
  %v2174 = vpack.c.b16 %v2082, %v2080
  %v2175 = vpack.c.b16 %v2083, %v2081
  %v2176 = vpack.c.b16 %v2086, %v2084
  %v2177 = vpack.c.b16 %v2087, %v2085
  %v2178 = vpack.c.b16 %v2090, %v2088
  %v2179 = vpack.c.b16 %v2091, %v2089
  %v2180 = vpack.c.b16 %v2094, %v2092
  %v2181 = vpack.c.b16 %v2095, %v2093
  %v2182 = vpack.c.b16 %v2098, %v2096
  %v2183 = vpack.c.b16 %v2099, %v2097
  %v2184 = vpack.c.b16 %v2102, %v2100
  %v2185 = vpack.c.b16 %v2103, %v2101
  %v2186 = vpack.c.b16 %v2106, %v2104
  %v2187 = vpack.c.b16 %v2107, %v2105
  %v2188 = vpack.c.b16 %v2110, %v2108
  %v2189 = vpack.c.b16 %v2111, %v2109
  %v2190 = vpack.c.b16 %v2114, %v2112
  %v2191 = vpack.c.b16 %v2115, %v2113
  %v2192 = vpack.c.b16 %v2118, %v2116
  %v2193 = vpack.c.b16 %v2119, %v2117
  %v2194 = vpack.c.b16 %v2122, %v2120
  %v2195 = vpack.c.b16 %v2123, %v2121
  %v2196 = vpack.c.b16 %v2126, %v2124
  %v2197 = vpack.c.b16 %v2127, %v2125
  %v2198 = vpack.c.b16 %v2130, %v2128
  %v2199 = vpack.c.b16 %v2131, %v2129
  %v2200 = vpack.c.b16 %v2134, %v2132
  %v2201 = vpack.c.b16 %v2135, %v2133
  %v2202 = vpack.c.b16 %v2138, %v2136
  %v2203 = vpack.c.b16 %v2139, %v2137
  %v2204 = vpack.c.b16 %v2142, %v2140
  %v2205 = vpack.c.b16 %v2143, %v2141
  %v2206 = vpack.c.b16 %v2146, %v2144
  %v2207 = vpack.c.b16 %v2147, %v2145
  %v2208 = vpack.c.b16 %v2150, %v2148
  %v2209 = vpack.c.b16 %v2151, %v2149
  %v2210 = vpack.c.b16 %v2154, %v2152
  %v2211 = vpack.c.b16 %v2155, %v2153
  %v2212 = vpack.c.b16 %v2158, %v2156
  %v2213 = vpack.c.b16 %v2159, %v2157
  %v2214 = vpack.c.b16 %v2162, %v2160
  %v2215 = vpack.c.b16 %v2163, %v2161
  %v2216 = vpack.c.b16 %v2166, %v2164
  %v2217 = vpack.c.b16 %v2167, %v2165
  %v2218 = vpack.c.b16 %v2170, %v2168
  %v2219 = vpack.c.b16 %v2171, %v2169
  %2268 = vmatpush.bf16.msra.mxu0 %v2186
  %2269 = vmatpush.bf16.msra.mxu0 %v2184
  %2270 = vmatpush.bf16.msra.mxu0 %v2182
  %2271 = vmatpush.bf16.msra.mxu0 %v2180
  %2272 = vmatpush.bf16.msra.mxu0 %v2178
  %2273 = vmatpush.bf16.msra.mxu0 %v2176
  %2274 = vmatpush.bf16.msra.mxu0 %v2174
  %2275 = vmatpush.bf16.msra.mxu0 %v2172
  %2276 = vmatmul.bf16.gmra.mxu0 %v1971
  %v2277 = vpop.f32.mrf.mxu0
  %v2278 = vadd.f32 %v2024, %v2277
  %v2279 = vpop.f32.mrf.mxu0
  %2280 = vdwg.mxu0
  %2281 = vmatpush.bf16.msra.mxu0 %v2202
  %2282 = vmatpush.bf16.msra.mxu0 %v2200
  %2283 = vmatpush.bf16.msra.mxu0 %v2198
  %2284 = vmatpush.bf16.msra.mxu0 %v2196
  %2285 = vmatpush.bf16.msra.mxu0 %v2194
  %2286 = vmatpush.bf16.msra.mxu0 %v2192
  %2287 = vmatpush.bf16.msra.mxu0 %v2190
  %2288 = vmatpush.bf16.msra.mxu0 %v2188
  %2289 = vmatmul.bf16.gmra.mxu0 %v1972
  %v2290 = vpop.f32.mrf.mxu0
  %v2291 = vadd.f32 %v2278, %v2290
  %v2292 = vpop.f32.mrf.mxu0
  %2293 = vdwg.mxu0
  %2294 = vmatpush.bf16.msra.mxu0 %v2218
  %2295 = vmatpush.bf16.msra.mxu0 %v2216
  %2296 = vmatpush.bf16.msra.mxu0 %v2214
  %2297 = vmatpush.bf16.msra.mxu0 %v2212
  %2298 = vmatpush.bf16.msra.mxu0 %v2210
  %2299 = vmatpush.bf16.msra.mxu0 %v2208
  %2300 = vmatpush.bf16.msra.mxu0 %v2206
  %2301 = vmatpush.bf16.msra.mxu0 %v2204
  %2302 = vmatmul.bf16.gmra.mxu0 %v1973
  %v2303 = vpop.f32.mrf.mxu0
  %v2304 = vadd.f32 %v2291, %v2303
  %v2305 = vpop.f32.mrf.mxu0
  %2306 = vdwg.mxu0
  %2307 = vmatpush.bf16.msra.mxu0 %v2187
  %2308 = vmatpush.bf16.msra.mxu0 %v2185
  %2309 = vmatpush.bf16.msra.mxu0 %v2183
  %2310 = vmatpush.bf16.msra.mxu0 %v2181
  %2311 = vmatpush.bf16.msra.mxu0 %v2179
  %2312 = vmatpush.bf16.msra.mxu0 %v2177
  %2313 = vmatpush.bf16.msra.mxu0 %v2175
  %2314 = vmatpush.bf16.msra.mxu0 %v2173
  %2315 = vmatmul.bf16.gmra.mxu0 %v1971
  %v2316 = vpop.f32.mrf.mxu0
  %v2317 = vadd.f32 %v2025, %v2316
  %v2318 = vpop.f32.mrf.mxu0
  %2319 = vdwg.mxu0
  %2320 = vmatpush.bf16.msra.mxu0 %v2203
  %2321 = vmatpush.bf16.msra.mxu0 %v2201
  %2322 = vmatpush.bf16.msra.mxu0 %v2199
  %2323 = vmatpush.bf16.msra.mxu0 %v2197
  %2324 = vmatpush.bf16.msra.mxu0 %v2195
  %2325 = vmatpush.bf16.msra.mxu0 %v2193
  %2326 = vmatpush.bf16.msra.mxu0 %v2191
  %2327 = vmatpush.bf16.msra.mxu0 %v2189
  %2328 = vmatmul.bf16.gmra.mxu0 %v1972
  %v2329 = vpop.f32.mrf.mxu0
  %v2330 = vadd.f32 %v2317, %v2329
  %v2331 = vpop.f32.mrf.mxu0
  %2332 = vdwg.mxu0
  %2333 = vmatpush.bf16.msra.mxu0 %v2219
  %2334 = vmatpush.bf16.msra.mxu0 %v2217
  %2335 = vmatpush.bf16.msra.mxu0 %v2215
  %2336 = vmatpush.bf16.msra.mxu0 %v2213
  %2337 = vmatpush.bf16.msra.mxu0 %v2211
  %2338 = vmatpush.bf16.msra.mxu0 %v2209
  %2339 = vmatpush.bf16.msra.mxu0 %v2207
  %2340 = vmatpush.bf16.msra.mxu0 %v2205
  %2341 = vmatmul.bf16.gmra.mxu0 %v1973
  %v2342 = vpop.f32.mrf.mxu0
  %v2343 = vadd.f32 %v2330, %v2342
  %v2344 = vpop.f32.mrf.mxu0
  %2345 = vdwg.mxu0
  %v2346 = vtanh.pop %v2304
  %v2347 = vtanh.pop %v2343
  %v2348 = vpack.c.bf16 %v2346, %v2346
  %v2349 = vpack.c.bf16 %v2347, %v2347
  %v2350 = vld [vmem:[%s5] sm:$0xf]
  %v2351 = vld [vmem:[%s5 + $0x4] sm:$0xf]
  %v2352 = vld [vmem:[%s5 + $0x8] sm:$0xf]
  %v2353 = vld [vmem:[%s5 + $0xc] sm:$0xf]
  %v2354 = vld [vmem:[%s5 + $0x10] sm:$0xf]
  %v2355 = vld [vmem:[%s5 + $0x14] sm:$0xf]
  %v2356 = vld [vmem:[%s5 + $0x18] sm:$0xf]
  %v2357 = vld [vmem:[%s5 + $0x1c] sm:$0xf]
  %v2358 = vld [vmem:[%s5 + $0x20] sm:$0xf]
  %v2359 = vld [vmem:[%s5 + $0x24] sm:$0xf]
  %v2360 = vld [vmem:[%s5 + $0x28] sm:$0xf]
  %v2361 = vld [vmem:[%s5 + $0x2c] sm:$0xf]
  %v2362 = vld [vmem:[%s5 + $0x30] sm:$0xf]
  %v2363 = vld [vmem:[%s5 + $0x34] sm:$0xf]
  %v2364 = vld [vmem:[%s5 + $0x38] sm:$0xf]
  %v2365 = vld [vmem:[%s5 + $0x3c] sm:$0xf]
  %v2366 = vld [vmem:[%s5 + $0x40] sm:$0xf]
  %v2367 = vld [vmem:[%s5 + $0x44] sm:$0xf]
  %v2368 = vld [vmem:[%s5 + $0x48] sm:$0xf]
  %v2369 = vld [vmem:[%s5 + $0x4c] sm:$0xf]
  %v2370 = vld [vmem:[%s5 + $0x50] sm:$0xf]
  %v2371 = vld [vmem:[%s5 + $0x54] sm:$0xf]
  %v2372 = vld [vmem:[%s5 + $0x58] sm:$0xf]
  %v2373 = vld [vmem:[%s5 + $0x5c] sm:$0xf]
  %v2374 = vld [vmem:[%s5 + $0x60] sm:$0xf]
  %v2375 = vld [vmem:[%s5 + $0x64] sm:$0xf]
  %v2376 = vld [vmem:[%s5 + $0x68] sm:$0xf]
  %v2377 = vld [vmem:[%s5 + $0x6c] sm:$0xf]
  %v2378 = vld [vmem:[%s5 + $0x70] sm:$0xf]
  %v2379 = vld [vmem:[%s5 + $0x74] sm:$0xf]
  %v2380 = vld [vmem:[%s5 + $0x78] sm:$0xf]
  %v2381 = vld [vmem:[%s5 + $0x7c] sm:$0xf]
  %v2382 = vld [vmem:[%s6] sm:$0x1]
  %v2384 = vperm.slane %v2382, 0
  %v2418 = vunpack.c.l.b16 %v2350
  %v2419 = vunpack.c.l.b16 %v2351
  %v2420 = vunpack.c.l.b16 %v2352
  %v2421 = vunpack.c.l.b16 %v2353
  %v2422 = vunpack.c.l.b16 %v2354
  %v2423 = vunpack.c.l.b16 %v2355
  %v2424 = vunpack.c.l.b16 %v2356
  %v2425 = vunpack.c.l.b16 %v2357
  %v2426 = vunpack.c.l.b16 %v2358
  %v2427 = vunpack.c.l.b16 %v2359
  %v2428 = vunpack.c.l.b16 %v2360
  %v2429 = vunpack.c.l.b16 %v2361
  %v2430 = vunpack.c.l.b16 %v2362
  %v2431 = vunpack.c.l.b16 %v2363
  %v2432 = vunpack.c.l.b16 %v2364
  %v2433 = vunpack.c.l.b16 %v2365
  %v2434 = vunpack.c.l.b16 %v2366
  %v2435 = vunpack.c.l.b16 %v2367
  %v2436 = vunpack.c.l.b16 %v2368
  %v2437 = vunpack.c.l.b16 %v2369
  %v2438 = vunpack.c.l.b16 %v2370
  %v2439 = vunpack.c.l.b16 %v2371
  %v2440 = vunpack.c.l.b16 %v2372
  %v2441 = vunpack.c.l.b16 %v2373
  %v2442 = vunpack.c.l.b16 %v2374
  %v2443 = vunpack.c.l.b16 %v2375
  %v2444 = vunpack.c.l.b16 %v2376
  %v2445 = vunpack.c.l.b16 %v2377
  %v2446 = vunpack.c.l.b16 %v2378
  %v2447 = vunpack.c.l.b16 %v2379
  %v2448 = vunpack.c.l.b16 %v2380
  %v2449 = vunpack.c.l.b16 %v2381
  %v2450 = vpack.c.b16 %v2419, %v2418
  %v2451 = vpack.c.b16 %v2421, %v2420
  %v2452 = vpack.c.b16 %v2423, %v2422
  %v2453 = vpack.c.b16 %v2425, %v2424
  %v2454 = vpack.c.b16 %v2427, %v2426
  %v2455 = vpack.c.b16 %v2429, %v2428
  %v2456 = vpack.c.b16 %v2431, %v2430
  %v2457 = vpack.c.b16 %v2433, %v2432
  %v2458 = vpack.c.b16 %v2435, %v2434
  %v2459 = vpack.c.b16 %v2437, %v2436
  %v2460 = vpack.c.b16 %v2439, %v2438
  %v2461 = vpack.c.b16 %v2441, %v2440
  %v2462 = vpack.c.b16 %v2443, %v2442
  %v2463 = vpack.c.b16 %v2445, %v2444
  %v2464 = vpack.c.b16 %v2447, %v2446
  %v2465 = vpack.c.b16 %v2449, %v2448
  %2482 = vmatpush.bf16.msra.mxu0 %v2457
  %2483 = vmatpush.bf16.msra.mxu0 %v2456
  %2484 = vmatpush.bf16.msra.mxu0 %v2455
  %2485 = vmatpush.bf16.msra.mxu0 %v2454
  %2486 = vmatpush.bf16.msra.mxu0 %v2453
  %2487 = vmatpush.bf16.msra.mxu0 %v2452
  %2488 = vmatpush.bf16.msra.mxu0 %v2451
  %2489 = vmatpush.bf16.msra.mxu0 %v2450
  %2490 = vmatmul.bf16.gmra.mxu0 %v2348
  %v2491 = vpop.f32.mrf.mxu0
  %v2492 = vadd.f32 %v2384, %v2491
  %v2493 = vpop.f32.mrf.mxu0
  %2494 = vdwg.mxu0
  %2495 = vmatpush.bf16.msra.mxu0 %v2465
  %2496 = vmatpush.bf16.msra.mxu0 %v2464
  %2497 = vmatpush.bf16.msra.mxu0 %v2463
  %2498 = vmatpush.bf16.msra.mxu0 %v2462
  %2499 = vmatpush.bf16.msra.mxu0 %v2461
  %2500 = vmatpush.bf16.msra.mxu0 %v2460
  %2501 = vmatpush.bf16.msra.mxu0 %v2459
  %2502 = vmatpush.bf16.msra.mxu0 %v2458
  %2503 = vmatmul.bf16.gmra.mxu0 %v2349
  %v2504 = vpop.f32.mrf.mxu0
  %v2505 = vadd.f32 %v2492, %v2504
  %v2506 = vpop.f32.mrf.mxu0
  %2507 = vdwg.mxu0
  %2508 = vst [vmem:[%s7] sm:$0xff] %v2505
  // Predicated region
  $region30: #{lenet5_forward.5} parent=0 // pred_check
    _
  $region31: #{lenet5_forward.5} parent=0 // pred_check_branch
    %2510 = sbr.rel (0) target = $region33
  $region32: #{lenet5_forward.5} parent=0 // pred_region
    _
  $region33: #{lenet5_forward.5} parent=0 // pred_fallthru
    _
  // Predicated region
  $region34: #{lenet5_forward.5} parent=0 // pred_check
    _
  $region35: #{lenet5_forward.5} parent=0 // pred_check_branch
    %2512 = sbr.rel (0) target = $region37
  $region36: #{lenet5_forward.5} parent=0 // pred_region
    _
  $region37: #{lenet5_forward.5} parent=0 // pred_fallthru
    _

</llo_original>
